<compile_context>
chip_gen: v6e
topology: v6e:2x2x1
jax: 0.10.0
libtpu: 0.0.40
codegen_flags: <defaults>
</compile_context>

<pallas_src>
import functools

import numpy as np
import jax
import jax.numpy as jnp
from jax import lax
from jax.experimental import pallas as pl
from jax.experimental.pallas import tpu as pltpu

EPS = 1e-5


# ------------------------------ fused kernel ------------------------------- #

def _fused_bottleneck_kernel(
    x_hbm,                    # (N, D, HWC)  raw HBM ref (pl.ANY), halo planes only
    x_ref,                    # (1, d_tile, HWC)  auto-pipelined interior block
    w1_ref, b1_ref,           # (HWC, HWCi), (1, HWCi)     projection (BN folded, block-diag)
    w2_ref, b2_ref,           # (K*HWCi, HWCi), (1, HWCi)  KxKxK conv (BN folded, banded)
    w3_ref, b3_ref,           # (HWCi, HWC), (1, HWC)      expansion (BN folded, block-diag)
    o_ref,                    # (1, d_tile, HWC)
    xhalo, y1s, sem,          # scratch: (2p, HWC), (Dh, HWCi), DMA sems (2,)
    *, d_tile, p, K, dil, HWC, HWCi):
    n = pl.program_id(0)
    dt = pl.program_id(1)
    n_dt = pl.num_programs(1)
    d0 = dt * d_tile
    Dh = d_tile + 2 * p

    # ---- kick off the (tiny) halo DMAs; they overlap the interior matmul ----
    @pl.when(dt > 0)
    def _():
        pltpu.make_async_copy(x_hbm.at[n, pl.ds(d0 - p, p)],
                              xhalo.at[pl.ds(0, p)], sem.at[0]).start()

    @pl.when(dt < n_dt - 1)
    def _():
        pltpu.make_async_copy(x_hbm.at[n, pl.ds(d0 + d_tile, p)],
                              xhalo.at[pl.ds(p, p)], sem.at[1]).start()

    # ---- (1) projection 1x1x1 conv (+BN+ReLU) on the interior planes ----
    xi = x_ref[0]                                              # (d_tile, HWC)
    y1i = jnp.dot(xi, w1_ref[...], preferred_element_type=jnp.float32)
    y1s[p:p + d_tile, :] = jnp.maximum(y1i + b1_ref[...], 0.0)

    # ---- projection of the halo planes (or exact zeros at the D boundary) ----
    @pl.when(dt > 0)
    def _():
        pltpu.make_async_copy(x_hbm.at[n, pl.ds(d0 - p, p)],
                              xhalo.at[pl.ds(0, p)], sem.at[0]).wait()
        lo = jnp.dot(xhalo[0:p, :], w1_ref[...], preferred_element_type=jnp.float32)
        y1s[0:p, :] = jnp.maximum(lo + b1_ref[...], 0.0)

    @pl.when(dt == 0)
    def _():
        # global zero padding along D must be *exact* zero (folded BN bias would
        # otherwise leak ReLU(b1) into the conv padding).
        y1s[0:p, :] = jnp.zeros((p, HWCi), jnp.float32)

    @pl.when(dt < n_dt - 1)
    def _():
        pltpu.make_async_copy(x_hbm.at[n, pl.ds(d0 + d_tile, p)],
                              xhalo.at[pl.ds(p, p)], sem.at[1]).wait()
        hi = jnp.dot(xhalo[p:2 * p, :], w1_ref[...], preferred_element_type=jnp.float32)
        y1s[p + d_tile:Dh, :] = jnp.maximum(hi + b1_ref[...], 0.0)

    @pl.when(dt == n_dt - 1)
    def _():
        y1s[p + d_tile:Dh, :] = jnp.zeros((p, HWCi), jnp.float32)

    # ---- (2) KxKxK conv (+BN+ReLU) as ONE im2col-in-VMEM matmul ----
    # lane-concat of the K D-shifted views: (d_tile, K*HWCi); the banded weight
    # absorbs the kh/kw taps and the H/W zero padding.
    lhs = jnp.concatenate(
        [y1s[kd * dil:kd * dil + d_tile, :] for kd in range(K)], axis=-1)
    y2 = jnp.dot(lhs, w2_ref[...], preferred_element_type=jnp.float32)
    y2 = jnp.maximum(y2 + b2_ref[...], 0.0)

    # ---- (3) expansion 1x1x1 conv (+BN+ReLU) ----
    y3 = jnp.dot(y2, w3_ref[...], preferred_element_type=jnp.float32)
    y3 = jnp.maximum(y3 + b3_ref[...], 0.0)

    # ---- (4) dropout(p=0) == identity; residual add + out ReLU (lane-dense) ----
    o_ref[...] = jnp.maximum(xi + y3, 0.0)[None]


# --------------------------------- wrapper --------------------------------- #

def _fold_bn(w_mat, bn, eps=EPS):
    """Fold inference-mode BatchNorm into a (Cin, Cout) matmul weight."""
    gamma, beta, mean, var = bn
    s = gamma / jnp.sqrt(var + eps)
    return w_mat * s[None, :], beta - mean * s


def _round_up(a, b):
    return -(-a // b) * b


def _padded_tile_bytes(rows, cols, itemsize=4):
    return _round_up(max(int(rows), 1), 8) * _round_up(max(int(cols), 1), 128) * itemsize


def _vmem_footprint(d_tile, HWC, HWCi, K, p):
    """Lane-padded VMEM footprint (double-buffered blocks + scratch)."""
    Dh = d_tile + 2 * p
    act = 2 * _padded_tile_bytes(d_tile, HWC) * 2                      # x block + out block
    wts = 2 * (_padded_tile_bytes(HWC, HWCi) + _padded_tile_bytes(K * HWCi, HWCi)
               + _padded_tile_bytes(HWCi, HWC) + 2 * _padded_tile_bytes(1, HWCi)
               + _padded_tile_bytes(1, HWC))
    scr = _padded_tile_bytes(Dh, HWCi) + _padded_tile_bytes(2 * p, HWC)
    return act + wts + scr


def regular_bottleneck_forward(x_ncdhw, params, *, kernel_size=3, padding=1,
                               dilation=1, d_tile=None):
    N, C, D, H, W = x_ncdhw.shape
    K, p, dil = kernel_size, padding, dilation
    Cint = params["w1_pt"].shape[0]
    assert p == dil * (K - 1) // 2, "padding must preserve the spatial size"
    assert p >= 1
    HW = H * W
    HWC, HWCi = HW * C, HW * Cint

    # ---- per-generation VMEM budget (v7x: 64 MiB/TC; v5e/v6e: 128 MiB) ----
    try:
        vmem_cap = int(pltpu.get_tpu_info().vmem_capacity_bytes)
    except Exception:
        vmem_cap = 64 * 1024 * 1024
    budget = int(0.70 * vmem_cap)

    if d_tile is None:
        # Largest depth tile that (a) keeps the (8, 128) block constraint
        # (d_tile % 8 == 0 or d_tile == D) and (b) fits the VMEM budget.
        cands = sorted({d for d in range(1, D + 1)
                        if D % d == 0 and (d == D or d % 8 == 0)}, reverse=True)
        d_tile = cands[-1]
        for d in cands:
            if _vmem_footprint(d, HWC, HWCi, K, p) <= budget:
                d_tile = d
                break
    assert D % d_tile == 0 and d_tile >= p
    assert d_tile % 8 == 0 or d_tile == D, "d_tile must respect the (8,128) tiling"
    n_dt = D // d_tile
    Dh = d_tile + 2 * p
    footprint = _vmem_footprint(d_tile, HWC, HWCi, K, p)
    vmem_limit = int(min(max(2 * footprint, 32 * 1024 * 1024), int(0.9 * vmem_cap)))

    # ---- fold inference BatchNorm + build the spatially-fused weights ----
    w1m = params["w1_pt"].reshape(Cint, C).T                       # (C, Cint)
    w3m = params["w3_pt"].reshape(C, Cint).T                       # (Cint, C)
    w1e, b1e = _fold_bn(w1m, params["bn1"])
    w3e, b3e = _fold_bn(w3m, params["bn3"])
    g2, be2, mu2, va2 = params["bn2"]
    s2 = g2 / jnp.sqrt(va2 + EPS)
    w2e = params["w2_pt"] * s2[:, None, None, None, None]          # (co, ci, kd, kh, kw)
    b2e = be2 - mu2 * s2
    w2t = jnp.transpose(w2e, (2, 3, 4, 1, 0))                      # (kd, kh, kw, ci, co)

    eye_hw = jnp.eye(HW, dtype=jnp.float32)
    w1bd = jnp.kron(eye_hw, w1e)                                   # (HWC, HWCi)
    w3bd = jnp.kron(eye_hw, w3e)                                   # (HWCi, HWC)
    b1t = jnp.tile(b1e, HW)[None, :]
    b2t = jnp.tile(b2e, HW)[None, :]
    b3t = jnp.tile(b3e, HW)[None, :]

    # Banded KxKxK weight: row (kd, h_in, w_in, ci) -> col (h_out, w_out, co),
    # absorbing the kh/kw taps, dilation and the H/W zero padding (zero blocks).
    sel = np.zeros((K, K, K, H, W, H, W), np.float32)
    for kd in range(K):
        for kh in range(K):
            for kw in range(K):
                for ho in range(H):
                    hi = ho + kh * dil - p
                    if not (0 <= hi < H):
                        continue
                    for wo in range(W):
                        wi = wo + kw * dil - p
                        if 0 <= wi < W:
                            sel[kd, kh, kw, hi, wi, ho, wo] = 1.0
    w2band = jnp.einsum("abchwHW,abcio->ahwiHWo", jnp.asarray(sel), w2t)
    w2band = w2band.reshape(K * HWCi, HWCi)

    # NCDHW -> (N, D, H*W*C): last dim is lane-dense (multiple of 128 when W*C is).
    x_nd = jnp.transpose(x_ncdhw, (0, 2, 3, 4, 1)).astype(jnp.float32).reshape(N, D, HWC)

    kernel = functools.partial(_fused_bottleneck_kernel, d_tile=d_tile, p=p, K=K,
                               dil=dil, HWC=HWC, HWCi=HWCi)

    flops = 2 * N * D * (HWC * HWCi + K * HWCi * HWCi + HWCi * HWC)
    bytes_accessed = 4 * (2 * N * D * HWC + int(w1bd.size) + int(w2band.size)
                          + int(w3bd.size) + 2 * HWCi + HWC)

    out = pl.pallas_call(
        kernel,
        out_shape=jax.ShapeDtypeStruct((N, D, HWC), jnp.float32),
        grid=(N, n_dt),
        in_specs=[
            pl.BlockSpec(memory_space=pl.ANY),                        # x (halo, manual DMA)
            pl.BlockSpec((1, d_tile, HWC), lambda n, d: (n, d, 0)),   # x interior (pipelined)
            pl.BlockSpec((HWC, HWCi), lambda n, d: (0, 0)),           # w1 block-diag
            pl.BlockSpec((1, HWCi), lambda n, d: (0, 0)),             # b1
            pl.BlockSpec((K * HWCi, HWCi), lambda n, d: (0, 0)),      # w2 banded
            pl.BlockSpec((1, HWCi), lambda n, d: (0, 0)),             # b2
            pl.BlockSpec((HWCi, HWC), lambda n, d: (0, 0)),           # w3 block-diag
            pl.BlockSpec((1, HWC), lambda n, d: (0, 0)),              # b3
        ],
        out_specs=pl.BlockSpec((1, d_tile, HWC), lambda n, d: (n, d, 0)),
        scratch_shapes=[
            pltpu.VMEM((2 * p, HWC), jnp.float32),       # halo planes of x
            pltpu.VMEM((Dh, HWCi), jnp.float32),         # y1 slab (D-halo'd, no H/W pad)
            pltpu.SemaphoreType.DMA((2,)),
        ],
        compiler_params=pltpu.CompilerParams(
            dimension_semantics=("parallel", "parallel"),
            vmem_limit_bytes=vmem_limit),
        cost_estimate=pl.CostEstimate(flops=flops, transcendentals=0,
                                      bytes_accessed=bytes_accessed),
    )(x_nd, x_nd, w1bd, b1t, w2band, b2t, w3bd, b3t)

    # (N, D, H*W*C) -> NCDHW
    return jnp.transpose(out.reshape(N, D, H, W, C), (0, 4, 1, 2, 3))


# -------------------------- parameters & reference -------------------------- #

def init_params(key, channels, internal_ratio=4, kernel_size=3):
    Cint = channels // internal_ratio
    K = kernel_size
    ks = jax.random.split(key, 6)

    def normal(k, shape, s=0.1):
        return s * jax.random.normal(k, shape, jnp.float32)

    def bn_params(k, c):
        k1, k2, k3, k4 = jax.random.split(k, 4)
        gamma = 1.0 + 0.1 * jax.random.normal(k1, (c,), jnp.float32)
        beta = 0.1 * jax.random.normal(k2, (c,), jnp.float32)
        mean = 0.1 * jax.random.normal(k3, (c,), jnp.float32)
        var = jax.random.uniform(k4, (c,), jnp.float32, minval=0.5, maxval=1.5)
        return (gamma, beta, mean, var)

    return {
        # PyTorch Conv3d weight layout: (out, in, kD, kH, kW); bias=False
        "w1_pt": normal(ks[0], (Cint, channels, 1, 1, 1)),
        "w2_pt": normal(ks[1], (Cint, Cint, K, K, K)),
        "w3_pt": normal(ks[2], (channels, Cint, 1, 1, 1)),
        "bn1": bn_params(ks[3], Cint),
        "bn2": bn_params(ks[4], Cint),
        "bn3": bn_params(ks[5], channels),
    }


def reference_forward(x, params, *, padding=1, dilation=1):
    """Independent pure-JAX (XLA conv) reference of the PyTorch forward."""
    dn = ("NCDHW", "OIDHW", "NCDHW")

    def bn(y, pp):
        g, b, m, v = pp
        sh = (1, -1, 1, 1, 1)
        return (y - m.reshape(sh)) / jnp.sqrt(v.reshape(sh) + EPS) * g.reshape(sh) + b.reshape(sh)

    y = lax.conv_general_dilated(x, params["w1_pt"], (1, 1, 1), "VALID",
                                 dimension_numbers=dn)
    y = jax.nn.relu(bn(y, params["bn1"]))
    y = lax.conv_general_dilated(y, params["w2_pt"], (1, 1, 1),
                                 [(padding, padding)] * 3,
                                 rhs_dilation=(dilation,) * 3,
                                 dimension_numbers=dn)
    y = jax.nn.relu(bn(y, params["bn2"]))
    y = lax.conv_general_dilated(y, params["w3_pt"], (1, 1, 1), "VALID",
                                 dimension_numbers=dn)
    y = jax.nn.relu(bn(y, params["bn3"]))
    return jax.nn.relu(x + y)  # dropout p=0 -> identity


# ----------------------------------- main ----------------------------------- #

if __name__ == "__main__":
    channels, internal_ratio, K, pad, dil = 16, 4, 3, 1, 1
    N, D, H, W = 2, 16, 8, 8        # W*C = 128 -> fully lane-dense input/output

    root = jax.random.PRNGKey(0)
    kx, kp = jax.random.split(root)
    x = jax.random.normal(kx, (N, channels, D, H, W), jnp.float32)
    params = init_params(kp, channels, internal_ratio, K)

    ref = jax.block_until_ready(reference_forward(x, params, padding=pad, dilation=dil))

    # Auto tile selection (whole depth for this size): grid = (N, 1).
    out_full = jax.block_until_ready(
        regular_bottleneck_forward(x, params, kernel_size=K, padding=pad, dilation=dil))
    np.testing.assert_allclose(np.asarray(out_full), np.asarray(ref),
                               rtol=5e-4, atol=5e-4)

    # Explicit D tiling (exercises the halo DMAs and boundary zeroing), grid = (N, 2).
    out_tiled = jax.block_until_ready(
        regular_bottleneck_forward(x, params, kernel_size=K, padding=pad,
                                   dilation=dil, d_tile=8))
    np.testing.assert_allclose(np.asarray(out_tiled), np.asarray(ref),
                               rtol=5e-4, atol=5e-4)

    print("KERNEL_OK")
</pallas_src>

<mosaic_0001>
module attributes {stable_mosaic.version = 11 : i64} {
  func.func @_fused_bottleneck_kernel(%arg0: i32, %arg1: i32, %arg2: memref<2x16x1024xf32, #tpu.memory_space<any>>, %arg3: memref<1x16x1024xf32, #tpu.memory_space<vmem>>, %arg4: memref<1024x256xf32, #tpu.memory_space<vmem>>, %arg5: memref<1x256xf32, #tpu.memory_space<vmem>>, %arg6: memref<768x256xf32, #tpu.memory_space<vmem>>, %arg7: memref<1x256xf32, #tpu.memory_space<vmem>>, %arg8: memref<256x1024xf32, #tpu.memory_space<vmem>>, %arg9: memref<1x1024xf32, #tpu.memory_space<vmem>>, %arg10: memref<1x16x1024xf32, #tpu.memory_space<vmem>>, %arg11: memref<2x1024xf32, #tpu.memory_space<vmem>>, %arg12: memref<18x256xf32, #tpu.memory_space<vmem>>, %arg13: memref<2x!tpu.dma_semaphore, #tpu.memory_space<semaphore_mem>>) attributes {dimension_semantics = [#tpu.dimension_semantics<parallel>, #tpu.dimension_semantics<parallel>], iteration_bounds = array<i64: 2, 1>, scalar_prefetch = 0 : i64, scratch_operands = 3 : i64, tpu.core_type = #tpu.core_type<tc>, window_params = [{}, {transform_indices = @transform_1, window_bounds = array<i64: 1, 16, 1024>}, {pipeline_mode = #tpu.pipeline_mode<synchronous>, transform_indices = @transform_2, window_bounds = array<i64: 1024, 256>}, {pipeline_mode = #tpu.pipeline_mode<synchronous>, transform_indices = @transform_3, window_bounds = array<i64: 1, 256>}, {pipeline_mode = #tpu.pipeline_mode<synchronous>, transform_indices = @transform_4, window_bounds = array<i64: 768, 256>}, {pipeline_mode = #tpu.pipeline_mode<synchronous>, transform_indices = @transform_5, window_bounds = array<i64: 1, 256>}, {pipeline_mode = #tpu.pipeline_mode<synchronous>, transform_indices = @transform_6, window_bounds = array<i64: 256, 1024>}, {pipeline_mode = #tpu.pipeline_mode<synchronous>, transform_indices = @transform_7, window_bounds = array<i64: 1, 1024>}, {transform_indices = @transform_8, window_bounds = array<i64: 1, 16, 1024>}]} {
    %c16_i32 = arith.constant 16 : i32
    %0 = arith.muli %arg1, %c16_i32 : i32
    %c0_i32 = arith.constant 0 : i32
    %1 = arith.cmpi sgt, %arg1, %c0_i32 : i32
    %2 = arith.extui %1 : i1 to i32
    %c0_i32_0 = arith.constant 0 : i32
    %3 = arith.cmpi ne, %2, %c0_i32_0 : i32
    scf.if %3 {
      %c1_i32 = arith.constant 1 : i32
      %52 = arith.subi %0, %c1_i32 : i32
      %c0_i32_40 = arith.constant 0 : i32
      %c0_i32_41 = arith.constant 0 : i32
      %53 = tpu.memref_slice %arg2[%arg0, %52, %c0_i32_41] : memref<2x16x1024xf32, #tpu.memory_space<any>> -> memref<1x1x1024xf32, #tpu.memory_space<any>>
      %54 = tpu.memref_squeeze %53 : memref<1x1x1024xf32, #tpu.memory_space<any>> -> memref<1x1024xf32, #tpu.memory_space<any>>
      %c0_i32_42 = arith.constant 0 : i32
      %c0_i32_43 = arith.constant 0 : i32
      %55 = tpu.memref_slice %arg11[%c0_i32_42, %c0_i32_43] : memref<2x1024xf32, #tpu.memory_space<vmem>> -> memref<1x1024xf32, #tpu.memory_space<vmem>>
      %56 = tpu.memref_slice %arg13[%c0_i32_40] : memref<2x!tpu.dma_semaphore, #tpu.memory_space<semaphore_mem>> -> memref<1x!tpu.dma_semaphore, #tpu.memory_space<semaphore_mem>>
      %57 = tpu.memref_squeeze %56 : memref<1x!tpu.dma_semaphore, #tpu.memory_space<semaphore_mem>> -> memref<!tpu.dma_semaphore, #tpu.memory_space<semaphore_mem>>
      tpu.enqueue_dma source(%54 : memref<1x1024xf32, #tpu.memory_space<any>>) target(%55 : memref<1x1024xf32, #tpu.memory_space<vmem>>) target_semaphore(%57 : memref<!tpu.dma_semaphore, #tpu.memory_space<semaphore_mem>>)
    } else {
    }
    %c0_i32_1 = arith.constant 0 : i32
    %4 = arith.cmpi slt, %arg1, %c0_i32_1 : i32
    %5 = arith.extui %4 : i1 to i32
    %c0_i32_2 = arith.constant 0 : i32
    %6 = arith.cmpi ne, %5, %c0_i32_2 : i32
    scf.if %6 {
      %c16_i32_40 = arith.constant 16 : i32
      %52 = arith.addi %0, %c16_i32_40 : i32
      %c1_i32 = arith.constant 1 : i32
      %c0_i32_41 = arith.constant 0 : i32
      %53 = tpu.memref_slice %arg2[%arg0, %52, %c0_i32_41] : memref<2x16x1024xf32, #tpu.memory_space<any>> -> memref<1x1x1024xf32, #tpu.memory_space<any>>
      %54 = tpu.memref_squeeze %53 : memref<1x1x1024xf32, #tpu.memory_space<any>> -> memref<1x1024xf32, #tpu.memory_space<any>>
      %c1_i32_42 = arith.constant 1 : i32
      %c0_i32_43 = arith.constant 0 : i32
      %55 = tpu.memref_slice %arg11[%c1_i32_42, %c0_i32_43] : memref<2x1024xf32, #tpu.memory_space<vmem>> -> memref<1x1024xf32, #tpu.memory_space<vmem>>
      %56 = tpu.memref_slice %arg13[%c1_i32] : memref<2x!tpu.dma_semaphore, #tpu.memory_space<semaphore_mem>> -> memref<1x!tpu.dma_semaphore, #tpu.memory_space<semaphore_mem>>
      %57 = tpu.memref_squeeze %56 : memref<1x!tpu.dma_semaphore, #tpu.memory_space<semaphore_mem>> -> memref<!tpu.dma_semaphore, #tpu.memory_space<semaphore_mem>>
      tpu.enqueue_dma source(%54 : memref<1x1024xf32, #tpu.memory_space<any>>) target(%55 : memref<1x1024xf32, #tpu.memory_space<vmem>>) target_semaphore(%57 : memref<!tpu.dma_semaphore, #tpu.memory_space<semaphore_mem>>)
    } else {
    }
    %c0 = arith.constant 0 : index
    %c0_3 = arith.constant 0 : index
    %c0_4 = arith.constant 0 : index
    %7 = vector.load %arg3[%c0, %c0_3, %c0_4] : memref<1x16x1024xf32, #tpu.memory_space<vmem>>, vector<1x16x1024xf32>
    %8 = vector.shape_cast %7 : vector<1x16x1024xf32> to vector<16x1024xf32>
    %c0_5 = arith.constant 0 : index
    %c0_6 = arith.constant 0 : index
    %9 = vector.load %arg4[%c0_5, %c0_6] : memref<1024x256xf32, #tpu.memory_space<vmem>>, vector<1024x256xf32>
    %cst = arith.constant dense<0.000000e+00> : vector<16x256xf32>
    %10 = tpu.matmul %8, %9, %cst {dimension_numbers = #tpu.dot_dimension_numbers<[1], [0], [0], [1], [0, 0, 1, 1], [], []>} : vector<16x1024xf32>, vector<1024x256xf32>, vector<16x256xf32> -> vector<16x256xf32>
    %c0_7 = arith.constant 0 : index
    %c0_8 = arith.constant 0 : index
    %11 = vector.load %arg5[%c0_7, %c0_8] : memref<1x256xf32, #tpu.memory_space<vmem>>, vector<1x256xf32>
    %12 = vector.broadcast %11 : vector<1x256xf32> to vector<16x256xf32>
    %13 = arith.addf %10, %12 : vector<16x256xf32>
    %cst_9 = arith.constant 0.000000e+00 : f32
    %14 = vector.broadcast %cst_9 : f32 to vector<16x256xf32>
    %15 = arith.maximumf %13, %14 : vector<16x256xf32>
    %c1 = arith.constant 1 : index
    %c0_10 = arith.constant 0 : index
    %16 = vector.load %arg12[%c1, %c0_10] : memref<18x256xf32, #tpu.memory_space<vmem>>, vector<16x256xf32>
    tpu.vector_store %arg12[%c1, %c0_10], %15 {strides = array<i32>} : memref<18x256xf32, #tpu.memory_space<vmem>>, vector<16x256xf32>,
    %c0_i32_11 = arith.constant 0 : i32
    %17 = arith.cmpi sgt, %arg1, %c0_i32_11 : i32
    %18 = arith.extui %17 : i1 to i32
    %c0_i32_12 = arith.constant 0 : i32
    %19 = arith.cmpi ne, %18, %c0_i32_12 : i32
    scf.if %19 {
      %c1_i32 = arith.constant 1 : i32
      %52 = arith.subi %0, %c1_i32 : i32
      %c0_i32_40 = arith.constant 0 : i32
      %c0_i32_41 = arith.constant 0 : i32
      %53 = tpu.memref_slice %arg2[%arg0, %52, %c0_i32_41] : memref<2x16x1024xf32, #tpu.memory_space<any>> -> memref<1x1x1024xf32, #tpu.memory_space<any>>
      %54 = tpu.memref_squeeze %53 : memref<1x1x1024xf32, #tpu.memory_space<any>> -> memref<1x1024xf32, #tpu.memory_space<any>>
      %c0_i32_42 = arith.constant 0 : i32
      %c0_i32_43 = arith.constant 0 : i32
      %55 = tpu.memref_slice %arg11[%c0_i32_42, %c0_i32_43] : memref<2x1024xf32, #tpu.memory_space<vmem>> -> memref<1x1024xf32, #tpu.memory_space<vmem>>
      %56 = tpu.memref_slice %arg13[%c0_i32_40] : memref<2x!tpu.dma_semaphore, #tpu.memory_space<semaphore_mem>> -> memref<1x!tpu.dma_semaphore, #tpu.memory_space<semaphore_mem>>
      %57 = tpu.memref_squeeze %56 : memref<1x!tpu.dma_semaphore, #tpu.memory_space<semaphore_mem>> -> memref<!tpu.dma_semaphore, #tpu.memory_space<semaphore_mem>>
      tpu.wait_dma2 semaphore(%57 : memref<!tpu.dma_semaphore, #tpu.memory_space<semaphore_mem>>) src(%54 : memref<1x1024xf32, #tpu.memory_space<any>>) dst(%55 : memref<1x1024xf32, #tpu.memory_space<vmem>>)
      %c0_44 = arith.constant 0 : index
      %c0_45 = arith.constant 0 : index
      %58 = vector.load %arg11[%c0_44, %c0_45] : memref<2x1024xf32, #tpu.memory_space<vmem>>, vector<1x1024xf32>
      %c0_46 = arith.constant 0 : index
      %c0_47 = arith.constant 0 : index
      %59 = vector.load %arg4[%c0_46, %c0_47] : memref<1024x256xf32, #tpu.memory_space<vmem>>, vector<1024x256xf32>
      %cst_48 = arith.constant dense<0.000000e+00> : vector<1x256xf32>
      %60 = tpu.matmul %58, %59, %cst_48 {dimension_numbers = #tpu.dot_dimension_numbers<[1], [0], [0], [1], [0, 0, 1, 1], [], []>} : vector<1x1024xf32>, vector<1024x256xf32>, vector<1x256xf32> -> vector<1x256xf32>
      %c0_49 = arith.constant 0 : index
      %c0_50 = arith.constant 0 : index
      %61 = vector.load %arg5[%c0_49, %c0_50] : memref<1x256xf32, #tpu.memory_space<vmem>>, vector<1x256xf32>
      %62 = arith.addf %60, %61 : vector<1x256xf32>
      %cst_51 = arith.constant 0.000000e+00 : f32
      %63 = vector.broadcast %cst_51 : f32 to vector<1x256xf32>
      %64 = arith.maximumf %62, %63 : vector<1x256xf32>
      %c0_52 = arith.constant 0 : index
      %c0_53 = arith.constant 0 : index
      %65 = vector.load %arg12[%c0_52, %c0_53] : memref<18x256xf32, #tpu.memory_space<vmem>>, vector<1x256xf32>
      tpu.vector_store %arg12[%c0_52, %c0_53], %64 {strides = array<i32>} : memref<18x256xf32, #tpu.memory_space<vmem>>, vector<1x256xf32>,
    } else {
    }
    %c0_i32_13 = arith.constant 0 : i32
    %20 = arith.cmpi eq, %arg1, %c0_i32_13 : i32
    %21 = arith.extui %20 : i1 to i32
    %c0_i32_14 = arith.constant 0 : i32
    %22 = arith.cmpi ne, %21, %c0_i32_14 : i32
    scf.if %22 {
      %cst_40 = arith.constant 0.000000e+00 : f32
      %52 = vector.broadcast %cst_40 : f32 to vector<1x256xf32>
      %c0_41 = arith.constant 0 : index
      %c0_42 = arith.constant 0 : index
      %53 = vector.load %arg12[%c0_41, %c0_42] : memref<18x256xf32, #tpu.memory_space<vmem>>, vector<1x256xf32>
      tpu.vector_store %arg12[%c0_41, %c0_42], %52 {strides = array<i32>} : memref<18x256xf32, #tpu.memory_space<vmem>>, vector<1x256xf32>,
    } else {
    }
    %c0_i32_15 = arith.constant 0 : i32
    %23 = arith.cmpi slt, %arg1, %c0_i32_15 : i32
    %24 = arith.extui %23 : i1 to i32
    %c0_i32_16 = arith.constant 0 : i32
    %25 = arith.cmpi ne, %24, %c0_i32_16 : i32
    scf.if %25 {
      %c16_i32_40 = arith.constant 16 : i32
      %52 = arith.addi %0, %c16_i32_40 : i32
      %c1_i32 = arith.constant 1 : i32
      %c0_i32_41 = arith.constant 0 : i32
      %53 = tpu.memref_slice %arg2[%arg0, %52, %c0_i32_41] : memref<2x16x1024xf32, #tpu.memory_space<any>> -> memref<1x1x1024xf32, #tpu.memory_space<any>>
      %54 = tpu.memref_squeeze %53 : memref<1x1x1024xf32, #tpu.memory_space<any>> -> memref<1x1024xf32, #tpu.memory_space<any>>
      %c1_i32_42 = arith.constant 1 : i32
      %c0_i32_43 = arith.constant 0 : i32
      %55 = tpu.memref_slice %arg11[%c1_i32_42, %c0_i32_43] : memref<2x1024xf32, #tpu.memory_space<vmem>> -> memref<1x1024xf32, #tpu.memory_space<vmem>>
      %56 = tpu.memref_slice %arg13[%c1_i32] : memref<2x!tpu.dma_semaphore, #tpu.memory_space<semaphore_mem>> -> memref<1x!tpu.dma_semaphore, #tpu.memory_space<semaphore_mem>>
      %57 = tpu.memref_squeeze %56 : memref<1x!tpu.dma_semaphore, #tpu.memory_space<semaphore_mem>> -> memref<!tpu.dma_semaphore, #tpu.memory_space<semaphore_mem>>
      tpu.wait_dma2 semaphore(%57 : memref<!tpu.dma_semaphore, #tpu.memory_space<semaphore_mem>>) src(%54 : memref<1x1024xf32, #tpu.memory_space<any>>) dst(%55 : memref<1x1024xf32, #tpu.memory_space<vmem>>)
      %c1_44 = arith.constant 1 : index
      %c0_45 = arith.constant 0 : index
      %58 = vector.load %arg11[%c1_44, %c0_45] : memref<2x1024xf32, #tpu.memory_space<vmem>>, vector<1x1024xf32>
      %c0_46 = arith.constant 0 : index
      %c0_47 = arith.constant 0 : index
      %59 = vector.load %arg4[%c0_46, %c0_47] : memref<1024x256xf32, #tpu.memory_space<vmem>>, vector<1024x256xf32>
      %cst_48 = arith.constant dense<0.000000e+00> : vector<1x256xf32>
      %60 = tpu.matmul %58, %59, %cst_48 {dimension_numbers = #tpu.dot_dimension_numbers<[1], [0], [0], [1], [0, 0, 1, 1], [], []>} : vector<1x1024xf32>, vector<1024x256xf32>, vector<1x256xf32> -> vector<1x256xf32>
      %c0_49 = arith.constant 0 : index
      %c0_50 = arith.constant 0 : index
      %61 = vector.load %arg5[%c0_49, %c0_50] : memref<1x256xf32, #tpu.memory_space<vmem>>, vector<1x256xf32>
      %62 = arith.addf %60, %61 : vector<1x256xf32>
      %cst_51 = arith.constant 0.000000e+00 : f32
      %63 = vector.broadcast %cst_51 : f32 to vector<1x256xf32>
      %64 = arith.maximumf %62, %63 : vector<1x256xf32>
      %c17 = arith.constant 17 : index
      %c0_52 = arith.constant 0 : index
      %65 = vector.load %arg12[%c17, %c0_52] : memref<18x256xf32, #tpu.memory_space<vmem>>, vector<1x256xf32>
      tpu.vector_store %arg12[%c17, %c0_52], %64 {strides = array<i32>} : memref<18x256xf32, #tpu.memory_space<vmem>>, vector<1x256xf32>,
    } else {
    }
    %c0_i32_17 = arith.constant 0 : i32
    %26 = arith.cmpi eq, %arg1, %c0_i32_17 : i32
    %27 = arith.extui %26 : i1 to i32
    %c0_i32_18 = arith.constant 0 : i32
    %28 = arith.cmpi ne, %27, %c0_i32_18 : i32
    scf.if %28 {
      %cst_40 = arith.constant 0.000000e+00 : f32
      %52 = vector.broadcast %cst_40 : f32 to vector<1x256xf32>
      %c17 = arith.constant 17 : index
      %c0_41 = arith.constant 0 : index
      %53 = vector.load %arg12[%c17, %c0_41] : memref<18x256xf32, #tpu.memory_space<vmem>>, vector<1x256xf32>
      tpu.vector_store %arg12[%c17, %c0_41], %52 {strides = array<i32>} : memref<18x256xf32, #tpu.memory_space<vmem>>, vector<1x256xf32>,
    } else {
    }
    %c0_19 = arith.constant 0 : index
    %c0_20 = arith.constant 0 : index
    %29 = vector.load %arg12[%c0_19, %c0_20] : memref<18x256xf32, #tpu.memory_space<vmem>>, vector<16x256xf32>
    %c1_21 = arith.constant 1 : index
    %c0_22 = arith.constant 0 : index
    %30 = vector.load %arg12[%c1_21, %c0_22] : memref<18x256xf32, #tpu.memory_space<vmem>>, vector<16x256xf32>
    %c2 = arith.constant 2 : index
    %c0_23 = arith.constant 0 : index
    %31 = vector.load %arg12[%c2, %c0_23] : memref<18x256xf32, #tpu.memory_space<vmem>>, vector<16x256xf32>
    %32 = tpu.concatenate %29, %30, %31 in 1 : vector<16x256xf32>, vector<16x256xf32>, vector<16x256xf32> -> vector<16x768xf32>
    %c0_24 = arith.constant 0 : index
    %c0_25 = arith.constant 0 : index
    %33 = vector.load %arg6[%c0_24, %c0_25] : memref<768x256xf32, #tpu.memory_space<vmem>>, vector<768x256xf32>
    %cst_26 = arith.constant dense<0.000000e+00> : vector<16x256xf32>
    %34 = tpu.matmul %32, %33, %cst_26 {dimension_numbers = #tpu.dot_dimension_numbers<[1], [0], [0], [1], [0, 0, 1, 1], [], []>} : vector<16x768xf32>, vector<768x256xf32>, vector<16x256xf32> -> vector<16x256xf32>
    %c0_27 = arith.constant 0 : index
    %c0_28 = arith.constant 0 : index
    %35 = vector.load %arg7[%c0_27, %c0_28] : memref<1x256xf32, #tpu.memory_space<vmem>>, vector<1x256xf32>
    %36 = vector.broadcast %35 : vector<1x256xf32> to vector<16x256xf32>
    %37 = arith.addf %34, %36 : vector<16x256xf32>
    %cst_29 = arith.constant 0.000000e+00 : f32
    %38 = vector.broadcast %cst_29 : f32 to vector<16x256xf32>
    %39 = arith.maximumf %37, %38 : vector<16x256xf32>
    %c0_30 = arith.constant 0 : index
    %c0_31 = arith.constant 0 : index
    %40 = vector.load %arg8[%c0_30, %c0_31] : memref<256x1024xf32, #tpu.memory_space<vmem>>, vector<256x1024xf32>
    %cst_32 = arith.constant dense<0.000000e+00> : vector<16x1024xf32>
    %41 = tpu.matmul %39, %40, %cst_32 {dimension_numbers = #tpu.dot_dimension_numbers<[1], [0], [0], [1], [0, 0, 1, 1], [], []>} : vector<16x256xf32>, vector<256x1024xf32>, vector<16x1024xf32> -> vector<16x1024xf32>
    %c0_33 = arith.constant 0 : index
    %c0_34 = arith.constant 0 : index
    %42 = vector.load %arg9[%c0_33, %c0_34] : memref<1x1024xf32, #tpu.memory_space<vmem>>, vector<1x1024xf32>
    %43 = vector.broadcast %42 : vector<1x1024xf32> to vector<16x1024xf32>
    %44 = arith.addf %41, %43 : vector<16x1024xf32>
    %cst_35 = arith.constant 0.000000e+00 : f32
    %45 = vector.broadcast %cst_35 : f32 to vector<16x1024xf32>
    %46 = arith.maximumf %44, %45 : vector<16x1024xf32>
    %47 = arith.addf %8, %46 : vector<16x1024xf32>
    %cst_36 = arith.constant 0.000000e+00 : f32
    %48 = vector.broadcast %cst_36 : f32 to vector<16x1024xf32>
    %49 = arith.maximumf %47, %48 : vector<16x1024xf32>
    %50 = vector.shape_cast %49 : vector<16x1024xf32> to vector<1x16x1024xf32>
    %c0_37 = arith.constant 0 : index
    %c0_38 = arith.constant 0 : index
    %c0_39 = arith.constant 0 : index
    %51 = vector.load %arg10[%c0_37, %c0_38, %c0_39] : memref<1x16x1024xf32, #tpu.memory_space<vmem>>, vector<1x16x1024xf32>
    tpu.vector_store %arg10[%c0_37, %c0_38, %c0_39], %50 {strides = array<i32>} : memref<1x16x1024xf32, #tpu.memory_space<vmem>>, vector<1x16x1024xf32>,
    return
  }
  func.func @transform_1(%arg0: i32, %arg1: i32) -> (i32, i32, i32) {
    %c0_i32 = arith.constant 0 : i32
    %c0_i32_0 = arith.constant 0 : i32
    return %arg0, %arg1, %c0_i32 : i32, i32, i32
  }
  func.func @transform_2(%arg0: i32, %arg1: i32) -> (i32, i32) {
    %c0_i32 = arith.constant 0 : i32
    %c0_i32_0 = arith.constant 0 : i32
    %c0_i32_1 = arith.constant 0 : i32
    return %c0_i32, %c0_i32_0 : i32, i32
  }
  func.func @transform_3(%arg0: i32, %arg1: i32) -> (i32, i32) {
    %c0_i32 = arith.constant 0 : i32
    %c0_i32_0 = arith.constant 0 : i32
    %c0_i32_1 = arith.constant 0 : i32
    return %c0_i32, %c0_i32_0 : i32, i32
  }
  func.func @transform_4(%arg0: i32, %arg1: i32) -> (i32, i32) {
    %c0_i32 = arith.constant 0 : i32
    %c0_i32_0 = arith.constant 0 : i32
    %c0_i32_1 = arith.constant 0 : i32
    return %c0_i32, %c0_i32_0 : i32, i32
  }
  func.func @transform_5(%arg0: i32, %arg1: i32) -> (i32, i32) {
    %c0_i32 = arith.constant 0 : i32
    %c0_i32_0 = arith.constant 0 : i32
    %c0_i32_1 = arith.constant 0 : i32
    return %c0_i32, %c0_i32_0 : i32, i32
  }
  func.func @transform_6(%arg0: i32, %arg1: i32) -> (i32, i32) {
    %c0_i32 = arith.constant 0 : i32
    %c0_i32_0 = arith.constant 0 : i32
    %c0_i32_1 = arith.constant 0 : i32
    return %c0_i32, %c0_i32_0 : i32, i32
  }
  func.func @transform_7(%arg0: i32, %arg1: i32) -> (i32, i32) {
    %c0_i32 = arith.constant 0 : i32
    %c0_i32_0 = arith.constant 0 : i32
    %c0_i32_1 = arith.constant 0 : i32
    return %c0_i32, %c0_i32_0 : i32, i32
  }
  func.func @transform_8(%arg0: i32, %arg1: i32) -> (i32, i32, i32) {
    %c0_i32 = arith.constant 0 : i32
    %c0_i32_0 = arith.constant 0 : i32
    return %arg0, %arg1, %c0_i32 : i32, i32, i32
  }
}

</mosaic_0001>

<llo_original>
// kernel: tpu_custom_call.1
$region0: #{tpu_custom_call.1}
  #allocation0 [shape = 'u32[]', space=smem, size = 0x4, offset = 0x4, fixed_abs, tag = 'smem constant byte address 0x4 - core index']
  #allocation1 [shape = 'u32[144,128]{1,0:T(1,128)}', space=vmem, size = 0x12000, scoped, tag = 'internal scratch']
  #allocation2 [shape = 'f32[2,1024]{1,0:T(2,128)}', space=vmem, size = 0x2000, scoped, tag = 'scratch operand']
  #allocation3 [shape = 'f32[18,256]{1,0:T(8,128)}', space=vmem, size = 0x6000, scoped, tag = 'scratch operand']
  #allocation4 [shape = 's32[2]{0}', space=sflag, size = 0x8, scoped, tag = 'scratch operand']
  #allocation14 [shape = 's32[]', space=sflag, size = 0x4, offset = 0, fixed_abs, tag = 'sflag constant byte address 0x0 - dummy sync flag']
  #allocation15 [shape = 's32[]', space=sflag, size = 0x4, offset = 0, fixed_abs, tag = 'sflag constant byte address 0x0 - dummy sync flag']
  %s0 = inlined_call_operand.hbm [shape: f32[2,16,1024], index: 0, kind: input, shape index: {}]
  %s1 = inlined_call_operand.hbm [shape: f32[2,16,1024], index: 1, kind: input, shape index: {}]
  %s2 = inlined_call_operand.hbm [shape: f32[1024,256], index: 2, kind: input, shape index: {}]
  %s3 = inlined_call_operand.vmem [shape: f32[1,256], index: 3, kind: input, shape index: {}]
  %s4 = inlined_call_operand.hbm [shape: f32[768,256], index: 4, kind: input, shape index: {}]
  %s5 = inlined_call_operand.vmem [shape: f32[1,256], index: 5, kind: input, shape index: {}]
  %s6 = inlined_call_operand.hbm [shape: f32[256,1024], index: 6, kind: input, shape index: {}]
  %s7 = inlined_call_operand.vmem [shape: f32[1,1024], index: 7, kind: input, shape index: {}]
  %s8 = inlined_call_operand.hbm [shape: f32[2,16,1024], index: 8, kind: output, shape index: {}]
  %s9 = sld [smem:[#allocation0]]
  $region101: #{tpu_custom_call.1} parent=0
    _
  %s11 = ssub.s32 1, %s9
  %s12 = scalar_select 0, %s11, %s9
  $region1: #{tpu_custom_call.1} parent=0
    #allocation5 [shape = 'u8[131072]{0}', space=vmem, size = 0x20000, scoped, tag = 'input window, operand 1']
    #allocation6 [shape = 's32[2]{0}', space=sflag, size = 0x8, scoped, tag = 'scoped memory for tpu_custom_call.1']
    #allocation7 [shape = 's32[2]{0}', space=sflag, size = 0x8, scoped, tag = 'scoped memory for tpu_custom_call.1']
    #allocation8 [shape = 'u8[1048576]{0}', space=vmem, size = 0x100000, scoped, tag = 'input window, operand 2, single buffered']
    #allocation9 [shape = 's32[1]{0}', space=sflag, size = 0x4, scoped, tag = 'scoped memory for tpu_custom_call.1']
    #allocation10 [shape = 'u8[786432]{0}', space=vmem, size = 0xc0000, scoped, tag = 'input window, operand 4, single buffered']
    #allocation11 [shape = 'u8[1048576]{0}', space=vmem, size = 0x100000, scoped, tag = 'input window, operand 6, single buffered']
    #allocation12 [shape = 's32[1]{0}', space=sflag, size = 0x4, scoped, tag = 'scoped memory for tpu_custom_call.1']
    #allocation13 [shape = 'u8[131072]{0}', space=vmem, size = 0x20000, scoped, tag = 'output window, operand 0']
    %13 = vsyncpa [#allocation6], 0
    %s14 = scalar_lea.sflag [#allocation6], 1
    %15 = vsyncpa %s14, 0
    %16 = vsyncpa [#allocation9], 0
    %17 = vsyncpa [#allocation12], 0
    %18 = vsyncpa [#allocation7], 0
    %s19 = scalar_lea.sflag [#allocation7], 1
    %20 = vsyncpa %s19, 0
    loop: start=0, step=1, limit=4
    $region2: #{tpu_custom_call.1} parent=1 // loop_pre_header
      _
    $region3: #{tpu_custom_call.1} parent=1 // loop_header
      %s22 = sphi 0, %s26
      %p23 = scmp.ge.s32.totalorder %s22, 4
      %s29 = sphi 0, %s41
      %s30 = sphi 0, %s37
      %s31 = sphi 0, %s29
      %s32 = sphi 0, %s30
      %s33 = sphi 0, %s31
      %s34 = sphi 0, %s32
      %s46 = sphi 0, %s48
      %s49 = sphi 0, %s46
      %s50 = sphi 0, %s49
      %s66 = sphi 0, %s50
      %s70 = sphi 0, %s70
      %s72 = sphi 0, %s70
      %s73 = sphi 0, %s72
      %s87 = sphi 0, %s73
      %s91 = sphi 0, %s91
      %s93 = sphi 0, %s91
      %s94 = sphi 0, %s93
      %s108 = sphi 0, %s94
      %s112 = sphi 0, %s112
      %s114 = sphi 0, %s112
      %s115 = sphi 0, %s114
      %s129 = sphi 0, %s115
      %s133 = sphi 0, %s133
      %s135 = sphi 0, %s133
      %s136 = sphi 0, %s135
      %s150 = sphi 0, %s136
      %s154 = sphi 0, %s154
      %s156 = sphi 0, %s154
      %s157 = sphi 0, %s156
      %s171 = sphi 0, %s157
      %s175 = sphi 0, %s175
      %s177 = sphi 0, %s175
      %s178 = sphi 0, %s177
      %s192 = sphi 0, %s178
      %s200 = sphi 0, %s202
      %s203 = sphi 0, %s200
      %s204 = sphi 0, %s203
      %s220 = sphi 0, %s204
    $region4: #{tpu_custom_call.1} parent=1 // loop_header_branch
      %25 = sbr.rel (%p23) target = $region8
    $region5: #{tpu_custom_call.1} parent=1 // loop_body
      %s27 = ssub.s32 %s22, 1
      %s28 = ssub.s32 %s22, 2
      %s35 = sadd.s32 1, %s30
      %p36 = scmp.ge.s32.totalorder %s35, 1
      %s37 = scalar_select %p36, 0, %s35
      %s38 = sadd.s32 1, %s29
      %s39 = scalar_select %p36, %s38, %s29
      %p40 = scmp.ge.s32.totalorder %s39, 2
      %s41 = scalar_select %p40, 0, %s39
      %s42 = ssub.s32 %s29, %s41
      %s43 = ssub.s32 %s30, %s37
      %s44 = sor.u32 %s42, %s43
      %p45 = scmp.eq.s32.totalorder %s44, 0
      %s47 = sadd.s32 %s46, 1
      %s48 = scalar_select %p45, %s46, %s47
      %p51 = pneg %p45
      %p52 = scmp.eq.s32.totalorder %s22, 1
      %p53 = por %p51, %p52
      %p54 = scmp.ne.s32.totalorder %s46, %s49
      %p55 = scmp.eq.s32.totalorder %s22, 0
      %p56 = por %p54, %p55
      %p57 = scmp.ne.s32.totalorder %s46, %s49
      %p58 = scmp.eq.s32.totalorder %s27, 1
      %p59 = por %p57, %p58
      %p60 = scmp.ne.s32.totalorder %s49, %s50
      %p61 = scmp.eq.s32.totalorder %s27, 0
      %p62 = por %p60, %p61
      %p63 = scmp.ne.s32.totalorder %s49, %s50
      %p64 = scmp.eq.s32.totalorder %s28, 1
      %p65 = por %p63, %p64
      %p67 = scmp.ne.s32.totalorder %s50, %s66
      %p68 = scmp.eq.s32.totalorder %s28, 0
      %p69 = por %p67, %p68
      %s71 = sadd.s32 %s70, 1
      %p74 = scmp.eq.s32.totalorder %s22, 1
      %p75 = scmp.ne.s32.totalorder %s70, %s72
      %p76 = scmp.eq.s32.totalorder %s22, 0
      %p77 = por %p75, %p76
      %p78 = scmp.ne.s32.totalorder %s70, %s72
      %p79 = scmp.eq.s32.totalorder %s27, 1
      %p80 = por %p78, %p79
      %p81 = scmp.ne.s32.totalorder %s72, %s73
      %p82 = scmp.eq.s32.totalorder %s27, 0
      %p83 = por %p81, %p82
      %p84 = scmp.ne.s32.totalorder %s72, %s73
      %p85 = scmp.eq.s32.totalorder %s28, 1
      %p86 = por %p84, %p85
      %p88 = scmp.ne.s32.totalorder %s73, %s87
      %p89 = scmp.eq.s32.totalorder %s28, 0
      %p90 = por %p88, %p89
      %s92 = sadd.s32 %s91, 1
      %p95 = scmp.eq.s32.totalorder %s22, 1
      %p96 = scmp.ne.s32.totalorder %s91, %s93
      %p97 = scmp.eq.s32.totalorder %s22, 0
      %p98 = por %p96, %p97
      %p99 = scmp.ne.s32.totalorder %s91, %s93
      %p100 = scmp.eq.s32.totalorder %s27, 1
      %p101 = por %p99, %p100
      %p102 = scmp.ne.s32.totalorder %s93, %s94
      %p103 = scmp.eq.s32.totalorder %s27, 0
      %p104 = por %p102, %p103
      %p105 = scmp.ne.s32.totalorder %s93, %s94
      %p106 = scmp.eq.s32.totalorder %s28, 1
      %p107 = por %p105, %p106
      %p109 = scmp.ne.s32.totalorder %s94, %s108
      %p110 = scmp.eq.s32.totalorder %s28, 0
      %p111 = por %p109, %p110
      %s113 = sadd.s32 %s112, 1
      %p116 = scmp.eq.s32.totalorder %s22, 1
      %p117 = scmp.ne.s32.totalorder %s112, %s114
      %p118 = scmp.eq.s32.totalorder %s22, 0
      %p119 = por %p117, %p118
      %p120 = scmp.ne.s32.totalorder %s112, %s114
      %p121 = scmp.eq.s32.totalorder %s27, 1
      %p122 = por %p120, %p121
      %p123 = scmp.ne.s32.totalorder %s114, %s115
      %p124 = scmp.eq.s32.totalorder %s27, 0
      %p125 = por %p123, %p124
      %p126 = scmp.ne.s32.totalorder %s114, %s115
      %p127 = scmp.eq.s32.totalorder %s28, 1
      %p128 = por %p126, %p127
      %p130 = scmp.ne.s32.totalorder %s115, %s129
      %p131 = scmp.eq.s32.totalorder %s28, 0
      %p132 = por %p130, %p131
      %s134 = sadd.s32 %s133, 1
      %p137 = scmp.eq.s32.totalorder %s22, 1
      %p138 = scmp.ne.s32.totalorder %s133, %s135
      %p139 = scmp.eq.s32.totalorder %s22, 0
      %p140 = por %p138, %p139
      %p141 = scmp.ne.s32.totalorder %s133, %s135
      %p142 = scmp.eq.s32.totalorder %s27, 1
      %p143 = por %p141, %p142
      %p144 = scmp.ne.s32.totalorder %s135, %s136
      %p145 = scmp.eq.s32.totalorder %s27, 0
      %p146 = por %p144, %p145
      %p147 = scmp.ne.s32.totalorder %s135, %s136
      %p148 = scmp.eq.s32.totalorder %s28, 1
      %p149 = por %p147, %p148
      %p151 = scmp.ne.s32.totalorder %s136, %s150
      %p152 = scmp.eq.s32.totalorder %s28, 0
      %p153 = por %p151, %p152
      %s155 = sadd.s32 %s154, 1
      %p158 = scmp.eq.s32.totalorder %s22, 1
      %p159 = scmp.ne.s32.totalorder %s154, %s156
      %p160 = scmp.eq.s32.totalorder %s22, 0
      %p161 = por %p159, %p160
      %p162 = scmp.ne.s32.totalorder %s154, %s156
      %p163 = scmp.eq.s32.totalorder %s27, 1
      %p164 = por %p162, %p163
      %p165 = scmp.ne.s32.totalorder %s156, %s157
      %p166 = scmp.eq.s32.totalorder %s27, 0
      %p167 = por %p165, %p166
      %p168 = scmp.ne.s32.totalorder %s156, %s157
      %p169 = scmp.eq.s32.totalorder %s28, 1
      %p170 = por %p168, %p169
      %p172 = scmp.ne.s32.totalorder %s157, %s171
      %p173 = scmp.eq.s32.totalorder %s28, 0
      %p174 = por %p172, %p173
      %s176 = sadd.s32 %s175, 1
      %p179 = scmp.eq.s32.totalorder %s22, 1
      %p180 = scmp.ne.s32.totalorder %s175, %s177
      %p181 = scmp.eq.s32.totalorder %s22, 0
      %p182 = por %p180, %p181
      %p183 = scmp.ne.s32.totalorder %s175, %s177
      %p184 = scmp.eq.s32.totalorder %s27, 1
      %p185 = por %p183, %p184
      %p186 = scmp.ne.s32.totalorder %s177, %s178
      %p187 = scmp.eq.s32.totalorder %s27, 0
      %p188 = por %p186, %p187
      %p189 = scmp.ne.s32.totalorder %s177, %s178
      %p190 = scmp.eq.s32.totalorder %s28, 1
      %p191 = por %p189, %p190
      %p193 = scmp.ne.s32.totalorder %s178, %s192
      %p194 = scmp.eq.s32.totalorder %s28, 0
      %p195 = por %p193, %p194
      %s196 = ssub.s32 %s29, %s41
      %s197 = ssub.s32 %s30, %s37
      %s198 = sor.u32 %s196, %s197
      %p199 = scmp.eq.s32.totalorder %s198, 0
      %s201 = sadd.s32 %s200, 1
      %s202 = scalar_select %p199, %s200, %s201
      %p205 = pneg %p199
      %p206 = scmp.eq.s32.totalorder %s22, 1
      %p207 = por %p205, %p206
      %p208 = scmp.ne.s32.totalorder %s200, %s203
      %p209 = scmp.eq.s32.totalorder %s22, 0
      %p210 = por %p208, %p209
      %p211 = scmp.ne.s32.totalorder %s200, %s203
      %p212 = scmp.eq.s32.totalorder %s27, 1
      %p213 = por %p211, %p212
      %p214 = scmp.ne.s32.totalorder %s203, %s204
      %p215 = scmp.eq.s32.totalorder %s27, 0
      %p216 = por %p214, %p215
      %p217 = scmp.ne.s32.totalorder %s203, %s204
      %p218 = scmp.eq.s32.totalorder %s28, 1
      %p219 = por %p217, %p218
      %p221 = scmp.ne.s32.totalorder %s204, %s220
      %p222 = scmp.eq.s32.totalorder %s28, 0
      %p223 = por %p221, %p222
      %p224 = scmp.le.s32.totalorder 1, %s22
      %p225 = scmp.lt.s32.totalorder %s22, 3
      %p226 = pnand %p224, %p225
      %p227 = pneg %p226
      // Predicated region
      $region9: #{tpu_custom_call.1} parent=5 // pred_check
        _
      $region10: #{tpu_custom_call.1} parent=5 // pred_check_branch
        %229 = sbr.rel (%p226) target = $region12
      $region11: #{tpu_custom_call.1} parent=5 // pred_region
        %s230 = ssub.s32 %s22, 1
        // Predicated region
        $region13: #{tpu_custom_call.1} parent=11 // pred_check
          %p231 = pneg %p83
        $region14: #{tpu_custom_call.1} parent=11 // pred_check_branch
          %233 = sbr.rel (%p231) target = $region16
        $region15: #{tpu_custom_call.1} parent=11 // pred_region
          %s235 = ssub.s32 32768, 32768
          %236 = vsyncadd [#allocation9], %s235
          %s237 = sshll.u32 [#allocation8], 4
          %s238 = int_to_ptr.vmem [resolvable:$true] %s237
          %243 = dma.hbm_to_vmem [thread:$0]  %s2, 32768, %s238, [#allocation9], 256, 256, 16
        $region16: #{tpu_custom_call.1} parent=11 // pred_fallthru
          _
        // Predicated region
        $region17: #{tpu_custom_call.1} parent=11 // pred_check
          %p244 = pneg %p104
        $region18: #{tpu_custom_call.1} parent=11 // pred_check_branch
          %246 = sbr.rel (%p244) target = $region20
        $region19: #{tpu_custom_call.1} parent=11 // pred_region
          _
        $region20: #{tpu_custom_call.1} parent=11 // pred_fallthru
          _
        // Predicated region
        $region21: #{tpu_custom_call.1} parent=11 // pred_check
          %p247 = pneg %p125
        $region22: #{tpu_custom_call.1} parent=11 // pred_check_branch
          %249 = sbr.rel (%p247) target = $region24
        $region23: #{tpu_custom_call.1} parent=11 // pred_region
          %s251 = ssub.s32 24576, 24576
          %252 = vsyncadd [#allocation9], %s251
          %s253 = sshll.u32 [#allocation10], 4
          %s254 = int_to_ptr.vmem [resolvable:$true] %s253
          %259 = dma.hbm_to_vmem [thread:$0]  %s4, 24576, %s254, [#allocation9], 256, 256, 16
        $region24: #{tpu_custom_call.1} parent=11 // pred_fallthru
          _
        // Predicated region
        $region25: #{tpu_custom_call.1} parent=11 // pred_check
          %p260 = pneg %p146
        $region26: #{tpu_custom_call.1} parent=11 // pred_check_branch
          %262 = sbr.rel (%p260) target = $region28
        $region27: #{tpu_custom_call.1} parent=11 // pred_region
          _
        $region28: #{tpu_custom_call.1} parent=11 // pred_fallthru
          _
        // Predicated region
        $region29: #{tpu_custom_call.1} parent=11 // pred_check
          %p263 = pneg %p167
        $region30: #{tpu_custom_call.1} parent=11 // pred_check_branch
          %265 = sbr.rel (%p263) target = $region32
        $region31: #{tpu_custom_call.1} parent=11 // pred_region
          %s267 = ssub.s32 32768, 32768
          %268 = vsyncadd [#allocation12], %s267
          %s269 = sshll.u32 [#allocation11], 4
          %s270 = int_to_ptr.vmem [resolvable:$true] %s269
          %275 = dma.hbm_to_vmem [thread:$0]  %s6, 32768, %s270, [#allocation12], 1024, 1024, 64
        $region32: #{tpu_custom_call.1} parent=11 // pred_fallthru
          _
        // Predicated region
        $region33: #{tpu_custom_call.1} parent=11 // pred_check
          %p276 = pneg %p188
        $region34: #{tpu_custom_call.1} parent=11 // pred_check_branch
          %278 = sbr.rel (%p276) target = $region36
        $region35: #{tpu_custom_call.1} parent=11 // pred_region
          _
        $region36: #{tpu_custom_call.1} parent=11 // pred_fallthru
          _
      $region12: #{tpu_custom_call.1} parent=5 // pred_fallthru
        _
      %p279 = scmp.lt.s32.totalorder %s22, 2
      // Predicated region
      $region37: #{tpu_custom_call.1} parent=5 // pred_check
        %p280 = pneg %p279
      $region38: #{tpu_custom_call.1} parent=5 // pred_check_branch
        %282 = sbr.rel (%p280) target = $region40
      $region39: #{tpu_custom_call.1} parent=5 // pred_region
        // Predicated region
        $region41: #{tpu_custom_call.1} parent=39 // pred_check
          %p283 = pneg %p56
        $region42: #{tpu_custom_call.1} parent=39 // pred_check_branch
          %285 = sbr.rel (%p283) target = $region44
        $region43: #{tpu_custom_call.1} parent=39 // pred_region
          %s286 = sand.u32 %s46, 1
          %s287 = scalar_lea.sflag [#allocation6], %s286
          %s288 = sand.u32 %s46, 1
          %s289 = smul.addr %s288, 128
          %s290 = scalar_lea.vmem [#allocation5], %s289
          %s291 = smul.u32 2, %s30
          %s293 = ssub.s32 2048, 2048
          %294 = vsyncadd %s287, %s293
          %s295 = smul.addr %s291, 8
          %s296 = smul.addr %s29, 16
          %s297 = sadd.s32 %s295, %s296
          %s298 = smul.addr %s297, 128
          %s299 = scalar_lea.hbm %s1, %s298
          %s300 = sshll.u32 %s290, 4
          %s301 = int_to_ptr.vmem [resolvable:$true] %s300
          %306 = dma.hbm_to_vmem [thread:$0]  %s299, 2048, %s301, %s287, 1024, 1024, 64
        $region44: #{tpu_custom_call.1} parent=39 // pred_fallthru
          _
      $region40: #{tpu_custom_call.1} parent=5 // pred_fallthru
        _
      %p307 = scmp.le.s32.totalorder 1, %s22
      %p308 = scmp.lt.s32.totalorder %s22, 3
      %p309 = pnand %p307, %p308
      %p310 = pneg %p309
      // Predicated region
      $region45: #{tpu_custom_call.1} parent=5 // pred_check
        _
      $region46: #{tpu_custom_call.1} parent=5 // pred_check_branch
        %312 = sbr.rel (%p309) target = $region48
      $region47: #{tpu_custom_call.1} parent=5 // pred_region
        %s313 = ssub.s32 %s22, 1
        %s314 = sand.u32 %s49, 1
        %s315 = scalar_lea.sflag [#allocation6], %s314
        %s316 = sand.u32 %s49, 1
        %s317 = smul.addr %s316, 128
        %s318 = scalar_lea.vmem [#allocation5], %s317
        // Predicated region
        $region49: #{tpu_custom_call.1} parent=47 // pred_check
          %p319 = pneg %p62
        $region50: #{tpu_custom_call.1} parent=47 // pred_check_branch
          %321 = sbr.rel (%p319) target = $region52
        $region51: #{tpu_custom_call.1} parent=47 // pred_region
          %322 = dma.done %s315, 2048
        $region52: #{tpu_custom_call.1} parent=47 // pred_fallthru
          _
        // Predicated region
        $region53: #{tpu_custom_call.1} parent=47 // pred_check
          %p323 = pneg %p83
        $region54: #{tpu_custom_call.1} parent=47 // pred_check_branch
          %325 = sbr.rel (%p323) target = $region56
        $region55: #{tpu_custom_call.1} parent=47 // pred_region
          %326 = dma.done [#allocation9], 32768
        $region56: #{tpu_custom_call.1} parent=47 // pred_fallthru
          _
        // Predicated region
        $region57: #{tpu_custom_call.1} parent=47 // pred_check
          %p327 = pneg %p125
        $region58: #{tpu_custom_call.1} parent=47 // pred_check_branch
          %329 = sbr.rel (%p327) target = $region60
        $region59: #{tpu_custom_call.1} parent=47 // pred_region
          %330 = dma.done [#allocation9], 24576
        $region60: #{tpu_custom_call.1} parent=47 // pred_fallthru
          _
        // Predicated region
        $region61: #{tpu_custom_call.1} parent=47 // pred_check
          %p331 = pneg %p167
        $region62: #{tpu_custom_call.1} parent=47 // pred_check_branch
          %333 = sbr.rel (%p331) target = $region64
        $region63: #{tpu_custom_call.1} parent=47 // pred_region
          %334 = dma.done [#allocation12], 32768
        $region64: #{tpu_custom_call.1} parent=47 // pred_fallthru
          _
        %s335 = sand.u32 %s49, 1
        %s336 = scalar_lea.sflag [#allocation6], %s335
        %s337 = sand.u32 %s49, 1
        %s338 = smul.addr %s337, 128
        %s339 = scalar_lea.vmem [#allocation5], %s338
        %p340 = pneg %p62
        %p341 = pneg %p59
        %p342 = pneg %p83
        %p343 = pneg %p80
        %p344 = pneg %p104
        %p345 = pneg %p101
        %p346 = pneg %p125
        %p347 = pneg %p122
        %p348 = pneg %p146
        %p349 = pneg %p143
        %p350 = pneg %p167
        %p351 = pneg %p164
        %p352 = pneg %p188
        %p353 = pneg %p185
        %p354 = pneg %p216
        %p355 = pneg %p213
        %s356 = sand.u32 %s203, 1
        %s357 = scalar_lea.sflag [#allocation7], %s356
        %s358 = sand.u32 %s203, 1
        %s359 = smul.addr %s358, 128
        %s360 = scalar_lea.vmem [#allocation13], %s359
        %s361 = smul.u32 2, %s32
        %s362 = smul.u32 2, %s32
        %s363 = smul.u32 %s32, 16
        %p364 = scmp.gt.s32.totalorder %s32, 0
        // Predicated region
        $region65: #{tpu_custom_call.1} parent=47 // pred_check
          %p365 = pneg %p364
        $region66: #{tpu_custom_call.1} parent=47 // pred_check_branch
          %367 = sbr.rel (%p365) target = $region68
        $region67: #{tpu_custom_call.1} parent=47 // pred_region
          %s368 = ssub.s32 %s363, 1
          %s369 = sshrl.u32 %s368, 3
          %s370 = sand.u32 %s368, 7
          %s371 = smul.u32 %s369, 64
          %s372 = sadd.s32 %s370, %s371
          %s373 = smul.u32 %s31, 128
          %s374 = sadd.s32 %s372, %s373
          %s375 = smul.addr %s374, 16
          %s376 = scalar_lea.hbm %s0, %s375
          %s378 = sshll.u32 [#allocation2], 4
          %s379 = int_to_ptr.vmem [resolvable:$true] %s378
          %381 = dma.hbm_to_vmem [thread:$0]  %s376, 128, %s379, [#allocation4], 128, 32, 1
        $region68: #{tpu_custom_call.1} parent=47 // pred_fallthru
          _
        %p382 = scmp.lt.s32.totalorder %s32, 0
        // Predicated region
        $region69: #{tpu_custom_call.1} parent=47 // pred_check
          %p383 = pneg %p382
        $region70: #{tpu_custom_call.1} parent=47 // pred_check_branch
          %385 = sbr.rel (%p383) target = $region72
        $region71: #{tpu_custom_call.1} parent=47 // pred_region
          %s386 = sadd.s32 %s363, 16
          %s387 = sshrl.u32 %s386, 3
          %s388 = sand.u32 %s386, 7
          %s389 = smul.u32 %s387, 64
          %s390 = sadd.s32 %s388, %s389
          %s391 = smul.u32 %s31, 128
          %s392 = sadd.s32 %s390, %s391
          %s393 = smul.addr %s392, 16
          %s394 = scalar_lea.hbm %s0, %s393
          %s395 = scalar_lea.vmem [#allocation2], 1
          %s396 = scalar_lea.sflag [#allocation4], 1
          %s398 = sshll.u32 %s395, 4
          %s399 = int_to_ptr.vmem [resolvable:$true] %s398
          %401 = dma.hbm_to_vmem [thread:$0]  %s394, 128, %s399, %s396, 128, 32, 1
        $region72: #{tpu_custom_call.1} parent=47 // pred_fallthru
          _
        %v402 = vld [vmem:[%s318] sm:$0xff]
        %v403 = vld [vmem:[%s318 + $0x8] sm:$0xff]
        %v404 = vld [vmem:[%s318 + $0x10] sm:$0xff]
        %v405 = vld [vmem:[%s318 + $0x18] sm:$0xff]
        %v406 = vld [vmem:[%s318 + $0x20] sm:$0xff]
        %v407 = vld [vmem:[%s318 + $0x28] sm:$0xff]
        %v408 = vld [vmem:[%s318 + $0x30] sm:$0xff]
        %v409 = vld [vmem:[%s318 + $0x38] sm:$0xff]
        %v410 = vld [vmem:[%s318 + $0x40] sm:$0xff]
        %v411 = vld [vmem:[%s318 + $0x48] sm:$0xff]
        %v412 = vld [vmem:[%s318 + $0x50] sm:$0xff]
        %v413 = vld [vmem:[%s318 + $0x58] sm:$0xff]
        %v414 = vld [vmem:[%s318 + $0x60] sm:$0xff]
        %v415 = vld [vmem:[%s318 + $0x68] sm:$0xff]
        %v416 = vld [vmem:[%s318 + $0x70] sm:$0xff]
        %v417 = vld [vmem:[%s318 + $0x78] sm:$0xff]
        %v418 = vld [vmem:[#allocation8] sm:$0xff]
        %v419 = vld [vmem:[#allocation8 + $0x8] sm:$0xff]
        %v420 = vld [vmem:[#allocation8 + $0x10] sm:$0xff]
        %v421 = vld [vmem:[#allocation8 + $0x18] sm:$0xff]
        %v422 = vld [vmem:[#allocation8 + $0x20] sm:$0xff]
        %v423 = vld [vmem:[#allocation8 + $0x28] sm:$0xff]
        %v424 = vld [vmem:[#allocation8 + $0x30] sm:$0xff]
        %v425 = vld [vmem:[#allocation8 + $0x38] sm:$0xff]
        %v426 = vld [vmem:[#allocation8 + $0x40] sm:$0xff]
        %v427 = vld [vmem:[#allocation8 + $0x48] sm:$0xff]
        %v428 = vld [vmem:[#allocation8 + $0x50] sm:$0xff]
        %v429 = vld [vmem:[#allocation8 + $0x58] sm:$0xff]
        %v430 = vld [vmem:[#allocation8 + $0x60] sm:$0xff]
        %v431 = vld [vmem:[#allocation8 + $0x68] sm:$0xff]
        %v432 = vld [vmem:[#allocation8 + $0x70] sm:$0xff]
        %v433 = vld [vmem:[#allocation8 + $0x78] sm:$0xff]
        %v434 = vld [vmem:[#allocation8 + $0x80] sm:$0xff]
        %v435 = vld [vmem:[#allocation8 + $0x88] sm:$0xff]
        %v436 = vld [vmem:[#allocation8 + $0x90] sm:$0xff]
        %v437 = vld [vmem:[#allocation8 + $0x98] sm:$0xff]
        %v438 = vld [vmem:[#allocation8 + $0xa0] sm:$0xff]
        %v439 = vld [vmem:[#allocation8 + $0xa8] sm:$0xff]
        %v440 = vld [vmem:[#allocation8 + $0xb0] sm:$0xff]
        %v441 = vld [vmem:[#allocation8 + $0xb8] sm:$0xff]
        %v442 = vld [vmem:[#allocation8 + $0xc0] sm:$0xff]
        %v443 = vld [vmem:[#allocation8 + $0xc8] sm:$0xff]
        %v444 = vld [vmem:[#allocation8 + $0xd0] sm:$0xff]
        %v445 = vld [vmem:[#allocation8 + $0xd8] sm:$0xff]
        %v446 = vld [vmem:[#allocation8 + $0xe0] sm:$0xff]
        %v447 = vld [vmem:[#allocation8 + $0xe8] sm:$0xff]
        %v448 = vld [vmem:[#allocation8 + $0xf0] sm:$0xff]
        %v449 = vld [vmem:[#allocation8 + $0xf8] sm:$0xff]
        %v450 = vld [vmem:[#allocation8 + $0x100] sm:$0xff]
        %v451 = vld [vmem:[#allocation8 + $0x108] sm:$0xff]
        %v452 = vld [vmem:[#allocation8 + $0x110] sm:$0xff]
        %v453 = vld [vmem:[#allocation8 + $0x118] sm:$0xff]
        %v454 = vld [vmem:[#allocation8 + $0x120] sm:$0xff]
        %v455 = vld [vmem:[#allocation8 + $0x128] sm:$0xff]
        %v456 = vld [vmem:[#allocation8 + $0x130] sm:$0xff]
        %v457 = vld [vmem:[#allocation8 + $0x138] sm:$0xff]
        %v458 = vld [vmem:[#allocation8 + $0x140] sm:$0xff]
        %v459 = vld [vmem:[#allocation8 + $0x148] sm:$0xff]
        %v460 = vld [vmem:[#allocation8 + $0x150] sm:$0xff]
        %v461 = vld [vmem:[#allocation8 + $0x158] sm:$0xff]
        %v462 = vld [vmem:[#allocation8 + $0x160] sm:$0xff]
        %v463 = vld [vmem:[#allocation8 + $0x168] sm:$0xff]
        %v464 = vld [vmem:[#allocation8 + $0x170] sm:$0xff]
        %v465 = vld [vmem:[#allocation8 + $0x178] sm:$0xff]
        %v466 = vld [vmem:[#allocation8 + $0x180] sm:$0xff]
        %v467 = vld [vmem:[#allocation8 + $0x188] sm:$0xff]
        %v468 = vld [vmem:[#allocation8 + $0x190] sm:$0xff]
        %v469 = vld [vmem:[#allocation8 + $0x198] sm:$0xff]
        %v470 = vld [vmem:[#allocation8 + $0x1a0] sm:$0xff]
        %v471 = vld [vmem:[#allocation8 + $0x1a8] sm:$0xff]
        %v472 = vld [vmem:[#allocation8 + $0x1b0] sm:$0xff]
        %v473 = vld [vmem:[#allocation8 + $0x1b8] sm:$0xff]
        %v474 = vld [vmem:[#allocation8 + $0x1c0] sm:$0xff]
        %v475 = vld [vmem:[#allocation8 + $0x1c8] sm:$0xff]
        %v476 = vld [vmem:[#allocation8 + $0x1d0] sm:$0xff]
        %v477 = vld [vmem:[#allocation8 + $0x1d8] sm:$0xff]
        %v478 = vld [vmem:[#allocation8 + $0x1e0] sm:$0xff]
        %v479 = vld [vmem:[#allocation8 + $0x1e8] sm:$0xff]
        %v480 = vld [vmem:[#allocation8 + $0x1f0] sm:$0xff]
        %v481 = vld [vmem:[#allocation8 + $0x1f8] sm:$0xff]
        %v482 = vld [vmem:[#allocation8 + $0x200] sm:$0xff]
        %v483 = vld [vmem:[#allocation8 + $0x208] sm:$0xff]
        %v484 = vld [vmem:[#allocation8 + $0x210] sm:$0xff]
        %v485 = vld [vmem:[#allocation8 + $0x218] sm:$0xff]
        %v486 = vld [vmem:[#allocation8 + $0x220] sm:$0xff]
        %v487 = vld [vmem:[#allocation8 + $0x228] sm:$0xff]
        %v488 = vld [vmem:[#allocation8 + $0x230] sm:$0xff]
        %v489 = vld [vmem:[#allocation8 + $0x238] sm:$0xff]
        %v490 = vld [vmem:[#allocation8 + $0x240] sm:$0xff]
        %v491 = vld [vmem:[#allocation8 + $0x248] sm:$0xff]
        %v492 = vld [vmem:[#allocation8 + $0x250] sm:$0xff]
        %v493 = vld [vmem:[#allocation8 + $0x258] sm:$0xff]
        %v494 = vld [vmem:[#allocation8 + $0x260] sm:$0xff]
        %v495 = vld [vmem:[#allocation8 + $0x268] sm:$0xff]
        %v496 = vld [vmem:[#allocation8 + $0x270] sm:$0xff]
        %v497 = vld [vmem:[#allocation8 + $0x278] sm:$0xff]
        %v498 = vld [vmem:[#allocation8 + $0x280] sm:$0xff]
        %v499 = vld [vmem:[#allocation8 + $0x288] sm:$0xff]
        %v500 = vld [vmem:[#allocation8 + $0x290] sm:$0xff]
        %v501 = vld [vmem:[#allocation8 + $0x298] sm:$0xff]
        %v502 = vld [vmem:[#allocation8 + $0x2a0] sm:$0xff]
        %v503 = vld [vmem:[#allocation8 + $0x2a8] sm:$0xff]
        %v504 = vld [vmem:[#allocation8 + $0x2b0] sm:$0xff]
        %v505 = vld [vmem:[#allocation8 + $0x2b8] sm:$0xff]
        %v506 = vld [vmem:[#allocation8 + $0x2c0] sm:$0xff]
        %v507 = vld [vmem:[#allocation8 + $0x2c8] sm:$0xff]
        %v508 = vld [vmem:[#allocation8 + $0x2d0] sm:$0xff]
        %v509 = vld [vmem:[#allocation8 + $0x2d8] sm:$0xff]
        %v510 = vld [vmem:[#allocation8 + $0x2e0] sm:$0xff]
        %v511 = vld [vmem:[#allocation8 + $0x2e8] sm:$0xff]
        %v512 = vld [vmem:[#allocation8 + $0x2f0] sm:$0xff]
        %v513 = vld [vmem:[#allocation8 + $0x2f8] sm:$0xff]
        %v514 = vld [vmem:[#allocation8 + $0x300] sm:$0xff]
        %v515 = vld [vmem:[#allocation8 + $0x308] sm:$0xff]
        %v516 = vld [vmem:[#allocation8 + $0x310] sm:$0xff]
        %v517 = vld [vmem:[#allocation8 + $0x318] sm:$0xff]
        %v518 = vld [vmem:[#allocation8 + $0x320] sm:$0xff]
        %v519 = vld [vmem:[#allocation8 + $0x328] sm:$0xff]
        %v520 = vld [vmem:[#allocation8 + $0x330] sm:$0xff]
        %v521 = vld [vmem:[#allocation8 + $0x338] sm:$0xff]
        %v522 = vld [vmem:[#allocation8 + $0x340] sm:$0xff]
        %v523 = vld [vmem:[#allocation8 + $0x348] sm:$0xff]
        %v524 = vld [vmem:[#allocation8 + $0x350] sm:$0xff]
        %v525 = vld [vmem:[#allocation8 + $0x358] sm:$0xff]
        %v526 = vld [vmem:[#allocation8 + $0x360] sm:$0xff]
        %v527 = vld [vmem:[#allocation8 + $0x368] sm:$0xff]
        %v528 = vld [vmem:[#allocation8 + $0x370] sm:$0xff]
        %v529 = vld [vmem:[#allocation8 + $0x378] sm:$0xff]
        %v530 = vld [vmem:[#allocation8 + $0x380] sm:$0xff]
        %v531 = vld [vmem:[#allocation8 + $0x388] sm:$0xff]
        %v532 = vld [vmem:[#allocation8 + $0x390] sm:$0xff]
        %v533 = vld [vmem:[#allocation8 + $0x398] sm:$0xff]
        %v534 = vld [vmem:[#allocation8 + $0x3a0] sm:$0xff]
        %v535 = vld [vmem:[#allocation8 + $0x3a8] sm:$0xff]
        %v536 = vld [vmem:[#allocation8 + $0x3b0] sm:$0xff]
        %v537 = vld [vmem:[#allocation8 + $0x3b8] sm:$0xff]
        %v538 = vld [vmem:[#allocation8 + $0x3c0] sm:$0xff]
        %v539 = vld [vmem:[#allocation8 + $0x3c8] sm:$0xff]
        %v540 = vld [vmem:[#allocation8 + $0x3d0] sm:$0xff]
        %v541 = vld [vmem:[#allocation8 + $0x3d8] sm:$0xff]
        %v542 = vld [vmem:[#allocation8 + $0x3e0] sm:$0xff]
        %v543 = vld [vmem:[#allocation8 + $0x3e8] sm:$0xff]
        %v544 = vld [vmem:[#allocation8 + $0x3f0] sm:$0xff]
        %v545 = vld [vmem:[#allocation8 + $0x3f8] sm:$0xff]
        %v546 = vld [vmem:[#allocation8 + $0x400] sm:$0xff]
        %v547 = vld [vmem:[#allocation8 + $0x408] sm:$0xff]
        %v548 = vld [vmem:[#allocation8 + $0x410] sm:$0xff]
        %v549 = vld [vmem:[#allocation8 + $0x418] sm:$0xff]
        %v550 = vld [vmem:[#allocation8 + $0x420] sm:$0xff]
        %v551 = vld [vmem:[#allocation8 + $0x428] sm:$0xff]
        %v552 = vld [vmem:[#allocation8 + $0x430] sm:$0xff]
        %v553 = vld [vmem:[#allocation8 + $0x438] sm:$0xff]
        %v554 = vld [vmem:[#allocation8 + $0x440] sm:$0xff]
        %v555 = vld [vmem:[#allocation8 + $0x448] sm:$0xff]
        %v556 = vld [vmem:[#allocation8 + $0x450] sm:$0xff]
        %v557 = vld [vmem:[#allocation8 + $0x458] sm:$0xff]
        %v558 = vld [vmem:[#allocation8 + $0x460] sm:$0xff]
        %v559 = vld [vmem:[#allocation8 + $0x468] sm:$0xff]
        %v560 = vld [vmem:[#allocation8 + $0x470] sm:$0xff]
        %v561 = vld [vmem:[#allocation8 + $0x478] sm:$0xff]
        %v562 = vld [vmem:[#allocation8 + $0x480] sm:$0xff]
        %v563 = vld [vmem:[#allocation8 + $0x488] sm:$0xff]
        %v564 = vld [vmem:[#allocation8 + $0x490] sm:$0xff]
        %v565 = vld [vmem:[#allocation8 + $0x498] sm:$0xff]
        %v566 = vld [vmem:[#allocation8 + $0x4a0] sm:$0xff]
        %v567 = vld [vmem:[#allocation8 + $0x4a8] sm:$0xff]
        %v568 = vld [vmem:[#allocation8 + $0x4b0] sm:$0xff]
        %v569 = vld [vmem:[#allocation8 + $0x4b8] sm:$0xff]
        %v570 = vld [vmem:[#allocation8 + $0x4c0] sm:$0xff]
        %v571 = vld [vmem:[#allocation8 + $0x4c8] sm:$0xff]
        %v572 = vld [vmem:[#allocation8 + $0x4d0] sm:$0xff]
        %v573 = vld [vmem:[#allocation8 + $0x4d8] sm:$0xff]
        %v574 = vld [vmem:[#allocation8 + $0x4e0] sm:$0xff]
        %v575 = vld [vmem:[#allocation8 + $0x4e8] sm:$0xff]
        %v576 = vld [vmem:[#allocation8 + $0x4f0] sm:$0xff]
        %v577 = vld [vmem:[#allocation8 + $0x4f8] sm:$0xff]
        %v578 = vld [vmem:[#allocation8 + $0x500] sm:$0xff]
        %v579 = vld [vmem:[#allocation8 + $0x508] sm:$0xff]
        %v580 = vld [vmem:[#allocation8 + $0x510] sm:$0xff]
        %v581 = vld [vmem:[#allocation8 + $0x518] sm:$0xff]
        %v582 = vld [vmem:[#allocation8 + $0x520] sm:$0xff]
        %v583 = vld [vmem:[#allocation8 + $0x528] sm:$0xff]
        %v584 = vld [vmem:[#allocation8 + $0x530] sm:$0xff]
        %v585 = vld [vmem:[#allocation8 + $0x538] sm:$0xff]
        %v586 = vld [vmem:[#allocation8 + $0x540] sm:$0xff]
        %v587 = vld [vmem:[#allocation8 + $0x548] sm:$0xff]
        %v588 = vld [vmem:[#allocation8 + $0x550] sm:$0xff]
        %v589 = vld [vmem:[#allocation8 + $0x558] sm:$0xff]
        %v590 = vld [vmem:[#allocation8 + $0x560] sm:$0xff]
        %v591 = vld [vmem:[#allocation8 + $0x568] sm:$0xff]
        %v592 = vld [vmem:[#allocation8 + $0x570] sm:$0xff]
        %v593 = vld [vmem:[#allocation8 + $0x578] sm:$0xff]
        %v594 = vld [vmem:[#allocation8 + $0x580] sm:$0xff]
        %v595 = vld [vmem:[#allocation8 + $0x588] sm:$0xff]
        %v596 = vld [vmem:[#allocation8 + $0x590] sm:$0xff]
        %v597 = vld [vmem:[#allocation8 + $0x598] sm:$0xff]
        %v598 = vld [vmem:[#allocation8 + $0x5a0] sm:$0xff]
        %v599 = vld [vmem:[#allocation8 + $0x5a8] sm:$0xff]
        %v600 = vld [vmem:[#allocation8 + $0x5b0] sm:$0xff]
        %v601 = vld [vmem:[#allocation8 + $0x5b8] sm:$0xff]
        %v602 = vld [vmem:[#allocation8 + $0x5c0] sm:$0xff]
        %v603 = vld [vmem:[#allocation8 + $0x5c8] sm:$0xff]
        %v604 = vld [vmem:[#allocation8 + $0x5d0] sm:$0xff]
        %v605 = vld [vmem:[#allocation8 + $0x5d8] sm:$0xff]
        %v606 = vld [vmem:[#allocation8 + $0x5e0] sm:$0xff]
        %v607 = vld [vmem:[#allocation8 + $0x5e8] sm:$0xff]
        %v608 = vld [vmem:[#allocation8 + $0x5f0] sm:$0xff]
        %v609 = vld [vmem:[#allocation8 + $0x5f8] sm:$0xff]
        %v610 = vld [vmem:[#allocation8 + $0x600] sm:$0xff]
        %v611 = vld [vmem:[#allocation8 + $0x608] sm:$0xff]
        %v612 = vld [vmem:[#allocation8 + $0x610] sm:$0xff]
        %v613 = vld [vmem:[#allocation8 + $0x618] sm:$0xff]
        %v614 = vld [vmem:[#allocation8 + $0x620] sm:$0xff]
        %v615 = vld [vmem:[#allocation8 + $0x628] sm:$0xff]
        %v616 = vld [vmem:[#allocation8 + $0x630] sm:$0xff]
        %v617 = vld [vmem:[#allocation8 + $0x638] sm:$0xff]
        %v618 = vld [vmem:[#allocation8 + $0x640] sm:$0xff]
        %v619 = vld [vmem:[#allocation8 + $0x648] sm:$0xff]
        %v620 = vld [vmem:[#allocation8 + $0x650] sm:$0xff]
        %v621 = vld [vmem:[#allocation8 + $0x658] sm:$0xff]
        %v622 = vld [vmem:[#allocation8 + $0x660] sm:$0xff]
        %v623 = vld [vmem:[#allocation8 + $0x668] sm:$0xff]
        %v624 = vld [vmem:[#allocation8 + $0x670] sm:$0xff]
        %v625 = vld [vmem:[#allocation8 + $0x678] sm:$0xff]
        %v626 = vld [vmem:[#allocation8 + $0x680] sm:$0xff]
        %v627 = vld [vmem:[#allocation8 + $0x688] sm:$0xff]
        %v628 = vld [vmem:[#allocation8 + $0x690] sm:$0xff]
        %v629 = vld [vmem:[#allocation8 + $0x698] sm:$0xff]
        %v630 = vld [vmem:[#allocation8 + $0x6a0] sm:$0xff]
        %v631 = vld [vmem:[#allocation8 + $0x6a8] sm:$0xff]
        %v632 = vld [vmem:[#allocation8 + $0x6b0] sm:$0xff]
        %v633 = vld [vmem:[#allocation8 + $0x6b8] sm:$0xff]
        %v634 = vld [vmem:[#allocation8 + $0x6c0] sm:$0xff]
        %v635 = vld [vmem:[#allocation8 + $0x6c8] sm:$0xff]
        %v636 = vld [vmem:[#allocation8 + $0x6d0] sm:$0xff]
        %v637 = vld [vmem:[#allocation8 + $0x6d8] sm:$0xff]
        %v638 = vld [vmem:[#allocation8 + $0x6e0] sm:$0xff]
        %v639 = vld [vmem:[#allocation8 + $0x6e8] sm:$0xff]
        %v640 = vld [vmem:[#allocation8 + $0x6f0] sm:$0xff]
        %v641 = vld [vmem:[#allocation8 + $0x6f8] sm:$0xff]
        %v642 = vld [vmem:[#allocation8 + $0x700] sm:$0xff]
        %v643 = vld [vmem:[#allocation8 + $0x708] sm:$0xff]
        %v644 = vld [vmem:[#allocation8 + $0x710] sm:$0xff]
        %v645 = vld [vmem:[#allocation8 + $0x718] sm:$0xff]
        %v646 = vld [vmem:[#allocation8 + $0x720] sm:$0xff]
        %v647 = vld [vmem:[#allocation8 + $0x728] sm:$0xff]
        %v648 = vld [vmem:[#allocation8 + $0x730] sm:$0xff]
        %v649 = vld [vmem:[#allocation8 + $0x738] sm:$0xff]
        %v650 = vld [vmem:[#allocation8 + $0x740] sm:$0xff]
        %v651 = vld [vmem:[#allocation8 + $0x748] sm:$0xff]
        %v652 = vld [vmem:[#allocation8 + $0x750] sm:$0xff]
        %v653 = vld [vmem:[#allocation8 + $0x758] sm:$0xff]
        %v654 = vld [vmem:[#allocation8 + $0x760] sm:$0xff]
        %v655 = vld [vmem:[#allocation8 + $0x768] sm:$0xff]
        %v656 = vld [vmem:[#allocation8 + $0x770] sm:$0xff]
        %v657 = vld [vmem:[#allocation8 + $0x778] sm:$0xff]
        %v658 = vld [vmem:[#allocation8 + $0x780] sm:$0xff]
        %v659 = vld [vmem:[#allocation8 + $0x788] sm:$0xff]
        %v660 = vld [vmem:[#allocation8 + $0x790] sm:$0xff]
        %v661 = vld [vmem:[#allocation8 + $0x798] sm:$0xff]
        %v662 = vld [vmem:[#allocation8 + $0x7a0] sm:$0xff]
        %v663 = vld [vmem:[#allocation8 + $0x7a8] sm:$0xff]
        %v664 = vld [vmem:[#allocation8 + $0x7b0] sm:$0xff]
        %v665 = vld [vmem:[#allocation8 + $0x7b8] sm:$0xff]
        %v666 = vld [vmem:[#allocation8 + $0x7c0] sm:$0xff]
        %v667 = vld [vmem:[#allocation8 + $0x7c8] sm:$0xff]
        %v668 = vld [vmem:[#allocation8 + $0x7d0] sm:$0xff]
        %v669 = vld [vmem:[#allocation8 + $0x7d8] sm:$0xff]
        %v670 = vld [vmem:[#allocation8 + $0x7e0] sm:$0xff]
        %v671 = vld [vmem:[#allocation8 + $0x7e8] sm:$0xff]
        %v672 = vld [vmem:[#allocation8 + $0x7f0] sm:$0xff]
        %v673 = vld [vmem:[#allocation8 + $0x7f8] sm:$0xff]
        %v674 = vld [vmem:[%s3] sm:$0x3]
        %v676 = vlaneseq
        %v677 = vshrl.u32 %v676, 7
        %v678 = vsub.s32 0, %v677
        %v679 = vrot.slane %v674, %v678
        %v680 = vlaneseq
        %v681 = vshrl.u32 %v680, 7
        %v682 = vsub.s32 1, %v681
        %v683 = vrot.slane %v674, %v682
        %686 = vmatprep.subr.mxu0 %v449
        %687 = vmatpush1.msra.mxu0 %v448
        %688 = vmatprep.subr.mxu0 %v447
        %689 = vmatpush1.msra.mxu0 %v446
        %690 = vmatprep.subr.mxu0 %v445
        %691 = vmatpush1.msra.mxu0 %v444
        %692 = vmatprep.subr.mxu0 %v443
        %693 = vmatpush1.msra.mxu0 %v442
        %694 = vmatprep.subr.mxu0 %v441
        %695 = vmatpush1.msra.mxu0 %v440
        %696 = vmatprep.subr.mxu0 %v439
        %697 = vmatpush1.msra.mxu0 %v438
        %698 = vmatprep.subr.mxu0 %v437
        %699 = vmatpush1.msra.mxu0 %v436
        %700 = vmatprep.subr.mxu0 %v435
        %701 = vmatpush1.msra.mxu0 %v434
        %702 = vmatprep.subr.mxu0 %v433
        %703 = vmatpush1.msra.mxu0 %v432
        %704 = vmatprep.subr.mxu0 %v431
        %705 = vmatpush1.msra.mxu0 %v430
        %706 = vmatprep.subr.mxu0 %v429
        %707 = vmatpush1.msra.mxu0 %v428
        %708 = vmatprep.subr.mxu0 %v427
        %709 = vmatpush1.msra.mxu0 %v426
        %710 = vmatprep.subr.mxu0 %v425
        %711 = vmatpush1.msra.mxu0 %v424
        %712 = vmatprep.subr.mxu0 %v423
        %713 = vmatpush1.msra.mxu0 %v422
        %714 = vmatprep.subr.mxu0 %v421
        %715 = vmatpush1.msra.mxu0 %v420
        %716 = vmatprep.subr.mxu0 %v419
        %717 = vmatpush1.msra.mxu0 %v418
        %718 = vmatprep.subr.mxu0 %v481
        %719 = vmatpush2.msra.mxu0 %v480
        %720 = vmatprep.subr.mxu0 %v479
        %721 = vmatpush2.msra.mxu0 %v478
        %722 = vmatprep.subr.mxu0 %v477
        %723 = vmatpush2.msra.mxu0 %v476
        %724 = vmatprep.subr.mxu0 %v475
        %725 = vmatpush2.msra.mxu0 %v474
        %726 = vmatprep.subr.mxu0 %v473
        %727 = vmatpush2.msra.mxu0 %v472
        %728 = vmatprep.subr.mxu0 %v471
        %729 = vmatpush2.msra.mxu0 %v470
        %730 = vmatprep.subr.mxu0 %v469
        %731 = vmatpush2.msra.mxu0 %v468
        %732 = vmatprep.subr.mxu0 %v467
        %733 = vmatpush2.msra.mxu0 %v466
        %734 = vmatprep.subr.mxu0 %v465
        %735 = vmatpush2.msra.mxu0 %v464
        %736 = vmatprep.subr.mxu0 %v463
        %737 = vmatpush2.msra.mxu0 %v462
        %738 = vmatprep.subr.mxu0 %v461
        %739 = vmatpush2.msra.mxu0 %v460
        %740 = vmatprep.subr.mxu0 %v459
        %741 = vmatpush2.msra.mxu0 %v458
        %742 = vmatprep.subr.mxu0 %v457
        %743 = vmatpush2.msra.mxu0 %v456
        %744 = vmatprep.subr.mxu0 %v455
        %745 = vmatpush2.msra.mxu0 %v454
        %746 = vmatprep.subr.mxu0 %v453
        %747 = vmatpush2.msra.mxu0 %v452
        %748 = vmatprep.subr.mxu0 %v451
        %749 = vmatpush2.msra.mxu0 %v450
        %750 = vmatprep.mubr.f32.mxu0 %v403
        %751 = vmatmul.mubr.f32.gmra.mxu0 %v402
        %v752 = vpop.f32.mrf.mxu0
        %v753 = vadd.f32 %v679, %v752
        %v754 = vpop.f32.mrf.mxu0
        %v755 = vadd.f32 %v683, %v754
        %756 = vmatprep.mubr.f32.mxu0 %v411
        %757 = vmatmul.mubr.f32.gmra.mxu0 %v410
        %v758 = vpop.f32.mrf.mxu0
        %v759 = vadd.f32 %v679, %v758
        %v760 = vpop.f32.mrf.mxu0
        %v761 = vadd.f32 %v683, %v760
        %762 = vdwg.mxu0
        %763 = vmatprep.subr.mxu0 %v513
        %764 = vmatpush1.msra.mxu0 %v512
        %765 = vmatprep.subr.mxu0 %v511
        %766 = vmatpush1.msra.mxu0 %v510
        %767 = vmatprep.subr.mxu0 %v509
        %768 = vmatpush1.msra.mxu0 %v508
        %769 = vmatprep.subr.mxu0 %v507
        %770 = vmatpush1.msra.mxu0 %v506
        %771 = vmatprep.subr.mxu0 %v505
        %772 = vmatpush1.msra.mxu0 %v504
        %773 = vmatprep.subr.mxu0 %v503
        %774 = vmatpush1.msra.mxu0 %v502
        %775 = vmatprep.subr.mxu0 %v501
        %776 = vmatpush1.msra.mxu0 %v500
        %777 = vmatprep.subr.mxu0 %v499
        %778 = vmatpush1.msra.mxu0 %v498
        %779 = vmatprep.subr.mxu0 %v497
        %780 = vmatpush1.msra.mxu0 %v496
        %781 = vmatprep.subr.mxu0 %v495
        %782 = vmatpush1.msra.mxu0 %v494
        %783 = vmatprep.subr.mxu0 %v493
        %784 = vmatpush1.msra.mxu0 %v492
        %785 = vmatprep.subr.mxu0 %v491
        %786 = vmatpush1.msra.mxu0 %v490
        %787 = vmatprep.subr.mxu0 %v489
        %788 = vmatpush1.msra.mxu0 %v488
        %789 = vmatprep.subr.mxu0 %v487
        %790 = vmatpush1.msra.mxu0 %v486
        %791 = vmatprep.subr.mxu0 %v485
        %792 = vmatpush1.msra.mxu0 %v484
        %793 = vmatprep.subr.mxu0 %v483
        %794 = vmatpush1.msra.mxu0 %v482
        %795 = vmatprep.subr.mxu0 %v545
        %796 = vmatpush2.msra.mxu0 %v544
        %797 = vmatprep.subr.mxu0 %v543
        %798 = vmatpush2.msra.mxu0 %v542
        %799 = vmatprep.subr.mxu0 %v541
        %800 = vmatpush2.msra.mxu0 %v540
        %801 = vmatprep.subr.mxu0 %v539
        %802 = vmatpush2.msra.mxu0 %v538
        %803 = vmatprep.subr.mxu0 %v537
        %804 = vmatpush2.msra.mxu0 %v536
        %805 = vmatprep.subr.mxu0 %v535
        %806 = vmatpush2.msra.mxu0 %v534
        %807 = vmatprep.subr.mxu0 %v533
        %808 = vmatpush2.msra.mxu0 %v532
        %809 = vmatprep.subr.mxu0 %v531
        %810 = vmatpush2.msra.mxu0 %v530
        %811 = vmatprep.subr.mxu0 %v529
        %812 = vmatpush2.msra.mxu0 %v528
        %813 = vmatprep.subr.mxu0 %v527
        %814 = vmatpush2.msra.mxu0 %v526
        %815 = vmatprep.subr.mxu0 %v525
        %816 = vmatpush2.msra.mxu0 %v524
        %817 = vmatprep.subr.mxu0 %v523
        %818 = vmatpush2.msra.mxu0 %v522
        %819 = vmatprep.subr.mxu0 %v521
        %820 = vmatpush2.msra.mxu0 %v520
        %821 = vmatprep.subr.mxu0 %v519
        %822 = vmatpush2.msra.mxu0 %v518
        %823 = vmatprep.subr.mxu0 %v517
        %824 = vmatpush2.msra.mxu0 %v516
        %825 = vmatprep.subr.mxu0 %v515
        %826 = vmatpush2.msra.mxu0 %v514
        %827 = vmatprep.mubr.f32.mxu0 %v405
        %828 = vmatmul.mubr.f32.gmra.mxu0 %v404
        %v829 = vpop.f32.mrf.mxu0
        %v830 = vadd.f32 %v753, %v829
        %v831 = vpop.f32.mrf.mxu0
        %v832 = vadd.f32 %v755, %v831
        %833 = vmatprep.mubr.f32.mxu0 %v413
        %834 = vmatmul.mubr.f32.gmra.mxu0 %v412
        %v835 = vpop.f32.mrf.mxu0
        %v836 = vadd.f32 %v759, %v835
        %v837 = vpop.f32.mrf.mxu0
        %v838 = vadd.f32 %v761, %v837
        %839 = vdwg.mxu0
        %840 = vmatprep.subr.mxu0 %v577
        %841 = vmatpush1.msra.mxu0 %v576
        %842 = vmatprep.subr.mxu0 %v575
        %843 = vmatpush1.msra.mxu0 %v574
        %844 = vmatprep.subr.mxu0 %v573
        %845 = vmatpush1.msra.mxu0 %v572
        %846 = vmatprep.subr.mxu0 %v571
        %847 = vmatpush1.msra.mxu0 %v570
        %848 = vmatprep.subr.mxu0 %v569
        %849 = vmatpush1.msra.mxu0 %v568
        %850 = vmatprep.subr.mxu0 %v567
        %851 = vmatpush1.msra.mxu0 %v566
        %852 = vmatprep.subr.mxu0 %v565
        %853 = vmatpush1.msra.mxu0 %v564
        %854 = vmatprep.subr.mxu0 %v563
        %855 = vmatpush1.msra.mxu0 %v562
        %856 = vmatprep.subr.mxu0 %v561
        %857 = vmatpush1.msra.mxu0 %v560
        %858 = vmatprep.subr.mxu0 %v559
        %859 = vmatpush1.msra.mxu0 %v558
        %860 = vmatprep.subr.mxu0 %v557
        %861 = vmatpush1.msra.mxu0 %v556
        %862 = vmatprep.subr.mxu0 %v555
        %863 = vmatpush1.msra.mxu0 %v554
        %864 = vmatprep.subr.mxu0 %v553
        %865 = vmatpush1.msra.mxu0 %v552
        %866 = vmatprep.subr.mxu0 %v551
        %867 = vmatpush1.msra.mxu0 %v550
        %868 = vmatprep.subr.mxu0 %v549
        %869 = vmatpush1.msra.mxu0 %v548
        %870 = vmatprep.subr.mxu0 %v547
        %871 = vmatpush1.msra.mxu0 %v546
        %872 = vmatprep.subr.mxu0 %v609
        %873 = vmatpush2.msra.mxu0 %v608
        %874 = vmatprep.subr.mxu0 %v607
        %875 = vmatpush2.msra.mxu0 %v606
        %876 = vmatprep.subr.mxu0 %v605
        %877 = vmatpush2.msra.mxu0 %v604
        %878 = vmatprep.subr.mxu0 %v603
        %879 = vmatpush2.msra.mxu0 %v602
        %880 = vmatprep.subr.mxu0 %v601
        %881 = vmatpush2.msra.mxu0 %v600
        %882 = vmatprep.subr.mxu0 %v599
        %883 = vmatpush2.msra.mxu0 %v598
        %884 = vmatprep.subr.mxu0 %v597
        %885 = vmatpush2.msra.mxu0 %v596
        %886 = vmatprep.subr.mxu0 %v595
        %887 = vmatpush2.msra.mxu0 %v594
        %888 = vmatprep.subr.mxu0 %v593
        %889 = vmatpush2.msra.mxu0 %v592
        %890 = vmatprep.subr.mxu0 %v591
        %891 = vmatpush2.msra.mxu0 %v590
        %892 = vmatprep.subr.mxu0 %v589
        %893 = vmatpush2.msra.mxu0 %v588
        %894 = vmatprep.subr.mxu0 %v587
        %895 = vmatpush2.msra.mxu0 %v586
        %896 = vmatprep.subr.mxu0 %v585
        %897 = vmatpush2.msra.mxu0 %v584
        %898 = vmatprep.subr.mxu0 %v583
        %899 = vmatpush2.msra.mxu0 %v582
        %900 = vmatprep.subr.mxu0 %v581
        %901 = vmatpush2.msra.mxu0 %v580
        %902 = vmatprep.subr.mxu0 %v579
        %903 = vmatpush2.msra.mxu0 %v578
        %904 = vmatprep.mubr.f32.mxu0 %v407
        %905 = vmatmul.mubr.f32.gmra.mxu0 %v406
        %v906 = vpop.f32.mrf.mxu0
        %v907 = vadd.f32 %v830, %v906
        %v908 = vpop.f32.mrf.mxu0
        %v909 = vadd.f32 %v832, %v908
        %910 = vmatprep.mubr.f32.mxu0 %v415
        %911 = vmatmul.mubr.f32.gmra.mxu0 %v414
        %v912 = vpop.f32.mrf.mxu0
        %v913 = vadd.f32 %v836, %v912
        %v914 = vpop.f32.mrf.mxu0
        %v915 = vadd.f32 %v838, %v914
        %916 = vdwg.mxu0
        %917 = vmatprep.subr.mxu0 %v641
        %918 = vmatpush1.msra.mxu0 %v640
        %919 = vmatprep.subr.mxu0 %v639
        %920 = vmatpush1.msra.mxu0 %v638
        %921 = vmatprep.subr.mxu0 %v637
        %922 = vmatpush1.msra.mxu0 %v636
        %923 = vmatprep.subr.mxu0 %v635
        %924 = vmatpush1.msra.mxu0 %v634
        %925 = vmatprep.subr.mxu0 %v633
        %926 = vmatpush1.msra.mxu0 %v632
        %927 = vmatprep.subr.mxu0 %v631
        %928 = vmatpush1.msra.mxu0 %v630
        %929 = vmatprep.subr.mxu0 %v629
        %930 = vmatpush1.msra.mxu0 %v628
        %931 = vmatprep.subr.mxu0 %v627
        %932 = vmatpush1.msra.mxu0 %v626
        %933 = vmatprep.subr.mxu0 %v625
        %934 = vmatpush1.msra.mxu0 %v624
        %935 = vmatprep.subr.mxu0 %v623
        %936 = vmatpush1.msra.mxu0 %v622
        %937 = vmatprep.subr.mxu0 %v621
        %938 = vmatpush1.msra.mxu0 %v620
        %939 = vmatprep.subr.mxu0 %v619
        %940 = vmatpush1.msra.mxu0 %v618
        %941 = vmatprep.subr.mxu0 %v617
        %942 = vmatpush1.msra.mxu0 %v616
        %943 = vmatprep.subr.mxu0 %v615
        %944 = vmatpush1.msra.mxu0 %v614
        %945 = vmatprep.subr.mxu0 %v613
        %946 = vmatpush1.msra.mxu0 %v612
        %947 = vmatprep.subr.mxu0 %v611
        %948 = vmatpush1.msra.mxu0 %v610
        %949 = vmatprep.subr.mxu0 %v673
        %950 = vmatpush2.msra.mxu0 %v672
        %951 = vmatprep.subr.mxu0 %v671
        %952 = vmatpush2.msra.mxu0 %v670
        %953 = vmatprep.subr.mxu0 %v669
        %954 = vmatpush2.msra.mxu0 %v668
        %955 = vmatprep.subr.mxu0 %v667
        %956 = vmatpush2.msra.mxu0 %v666
        %957 = vmatprep.subr.mxu0 %v665
        %958 = vmatpush2.msra.mxu0 %v664
        %959 = vmatprep.subr.mxu0 %v663
        %960 = vmatpush2.msra.mxu0 %v662
        %961 = vmatprep.subr.mxu0 %v661
        %962 = vmatpush2.msra.mxu0 %v660
        %963 = vmatprep.subr.mxu0 %v659
        %964 = vmatpush2.msra.mxu0 %v658
        %965 = vmatprep.subr.mxu0 %v657
        %966 = vmatpush2.msra.mxu0 %v656
        %967 = vmatprep.subr.mxu0 %v655
        %968 = vmatpush2.msra.mxu0 %v654
        %969 = vmatprep.subr.mxu0 %v653
        %970 = vmatpush2.msra.mxu0 %v652
        %971 = vmatprep.subr.mxu0 %v651
        %972 = vmatpush2.msra.mxu0 %v650
        %973 = vmatprep.subr.mxu0 %v649
        %974 = vmatpush2.msra.mxu0 %v648
        %975 = vmatprep.subr.mxu0 %v647
        %976 = vmatpush2.msra.mxu0 %v646
        %977 = vmatprep.subr.mxu0 %v645
        %978 = vmatpush2.msra.mxu0 %v644
        %979 = vmatprep.subr.mxu0 %v643
        %980 = vmatpush2.msra.mxu0 %v642
        %981 = vmatprep.mubr.f32.mxu0 %v409
        %982 = vmatmul.mubr.f32.gmra.mxu0 %v408
        %v983 = vpop.f32.mrf.mxu0
        %v984 = vadd.f32 %v907, %v983
        %v985 = vpop.f32.mrf.mxu0
        %v986 = vadd.f32 %v909, %v985
        %987 = vmatprep.mubr.f32.mxu0 %v417
        %988 = vmatmul.mubr.f32.gmra.mxu0 %v416
        %v989 = vpop.f32.mrf.mxu0
        %v990 = vadd.f32 %v913, %v989
        %v991 = vpop.f32.mrf.mxu0
        %v992 = vadd.f32 %v915, %v991
        %993 = vdwg.mxu0
        %v994 = vmax.f32 %v984, 0.0
        %v995 = vmax.f32 %v986, 0.0
        %v996 = vmax.f32 %v990, 0.0
        %v997 = vmax.f32 %v992, 0.0
        %vm1002 = vcmask 1040384
        %v1003 = vrot.slane %v994, 7
        %v1004 = vrot.slane %v995, 7
        %v1005 = vrot.slane %v996, 7
        %v1006 = vsel %vm1002, %v1003, %v1005
        %v1007 = vrot.slane %v997, 7
        %v1008 = vsel %vm1002, %v1004, %v1007
        %1015 = vst [vmem:[#allocation3] sm:$0xfe] %v1003
        %1016 = vst [vmem:[#allocation3 + $0x8] sm:$0xfe] %v1004
        %1017 = vst [vmem:[#allocation3 + $0x10] sm:$0xff] %v1006
        %1018 = vst [vmem:[#allocation3 + $0x18] sm:$0xff] %v1008
        %1019 = vst [vmem:[#allocation3 + $0x20] sm:$0x1] %v1005
        %1020 = vst [vmem:[#allocation3 + $0x28] sm:$0x1] %v1007
        // Predicated region
        $region73: #{tpu_custom_call.1} parent=47 // pred_check
          %p1021 = pneg %p364
        $region74: #{tpu_custom_call.1} parent=47 // pred_check_branch
          %1023 = sbr.rel (%p1021) target = $region76
        $region75: #{tpu_custom_call.1} parent=47 // pred_region
          %s1024 = smul.u32 1, 8
          %s1025 = sshll.u32 %s1024, 4
          %1026 = dma.done [#allocation4], %s1025
          %v1027 = vld [vmem:[#allocation2] ss:$2 sm:$0xff]
          %v1028 = vld [vmem:[#allocation8] sm:$0xff]
          %v1029 = vld [vmem:[#allocation8 + $0x8] sm:$0xff]
          %v1030 = vld [vmem:[#allocation8 + $0x10] sm:$0xff]
          %v1031 = vld [vmem:[#allocation8 + $0x18] sm:$0xff]
          %v1032 = vld [vmem:[#allocation8 + $0x20] sm:$0xff]
          %v1033 = vld [vmem:[#allocation8 + $0x28] sm:$0xff]
          %v1034 = vld [vmem:[#allocation8 + $0x30] sm:$0xff]
          %v1035 = vld [vmem:[#allocation8 + $0x38] sm:$0xff]
          %v1036 = vld [vmem:[#allocation8 + $0x40] sm:$0xff]
          %v1037 = vld [vmem:[#allocation8 + $0x48] sm:$0xff]
          %v1038 = vld [vmem:[#allocation8 + $0x50] sm:$0xff]
          %v1039 = vld [vmem:[#allocation8 + $0x58] sm:$0xff]
          %v1040 = vld [vmem:[#allocation8 + $0x60] sm:$0xff]
          %v1041 = vld [vmem:[#allocation8 + $0x68] sm:$0xff]
          %v1042 = vld [vmem:[#allocation8 + $0x70] sm:$0xff]
          %v1043 = vld [vmem:[#allocation8 + $0x78] sm:$0xff]
          %v1044 = vld [vmem:[#allocation8 + $0x80] sm:$0xff]
          %v1045 = vld [vmem:[#allocation8 + $0x88] sm:$0xff]
          %v1046 = vld [vmem:[#allocation8 + $0x90] sm:$0xff]
          %v1047 = vld [vmem:[#allocation8 + $0x98] sm:$0xff]
          %v1048 = vld [vmem:[#allocation8 + $0xa0] sm:$0xff]
          %v1049 = vld [vmem:[#allocation8 + $0xa8] sm:$0xff]
          %v1050 = vld [vmem:[#allocation8 + $0xb0] sm:$0xff]
          %v1051 = vld [vmem:[#allocation8 + $0xb8] sm:$0xff]
          %v1052 = vld [vmem:[#allocation8 + $0xc0] sm:$0xff]
          %v1053 = vld [vmem:[#allocation8 + $0xc8] sm:$0xff]
          %v1054 = vld [vmem:[#allocation8 + $0xd0] sm:$0xff]
          %v1055 = vld [vmem:[#allocation8 + $0xd8] sm:$0xff]
          %v1056 = vld [vmem:[#allocation8 + $0xe0] sm:$0xff]
          %v1057 = vld [vmem:[#allocation8 + $0xe8] sm:$0xff]
          %v1058 = vld [vmem:[#allocation8 + $0xf0] sm:$0xff]
          %v1059 = vld [vmem:[#allocation8 + $0xf8] sm:$0xff]
          %v1060 = vld [vmem:[#allocation8 + $0x100] sm:$0xff]
          %v1061 = vld [vmem:[#allocation8 + $0x108] sm:$0xff]
          %v1062 = vld [vmem:[#allocation8 + $0x110] sm:$0xff]
          %v1063 = vld [vmem:[#allocation8 + $0x118] sm:$0xff]
          %v1064 = vld [vmem:[#allocation8 + $0x120] sm:$0xff]
          %v1065 = vld [vmem:[#allocation8 + $0x128] sm:$0xff]
          %v1066 = vld [vmem:[#allocation8 + $0x130] sm:$0xff]
          %v1067 = vld [vmem:[#allocation8 + $0x138] sm:$0xff]
          %v1068 = vld [vmem:[#allocation8 + $0x140] sm:$0xff]
          %v1069 = vld [vmem:[#allocation8 + $0x148] sm:$0xff]
          %v1070 = vld [vmem:[#allocation8 + $0x150] sm:$0xff]
          %v1071 = vld [vmem:[#allocation8 + $0x158] sm:$0xff]
          %v1072 = vld [vmem:[#allocation8 + $0x160] sm:$0xff]
          %v1073 = vld [vmem:[#allocation8 + $0x168] sm:$0xff]
          %v1074 = vld [vmem:[#allocation8 + $0x170] sm:$0xff]
          %v1075 = vld [vmem:[#allocation8 + $0x178] sm:$0xff]
          %v1076 = vld [vmem:[#allocation8 + $0x180] sm:$0xff]
          %v1077 = vld [vmem:[#allocation8 + $0x188] sm:$0xff]
          %v1078 = vld [vmem:[#allocation8 + $0x190] sm:$0xff]
          %v1079 = vld [vmem:[#allocation8 + $0x198] sm:$0xff]
          %v1080 = vld [vmem:[#allocation8 + $0x1a0] sm:$0xff]
          %v1081 = vld [vmem:[#allocation8 + $0x1a8] sm:$0xff]
          %v1082 = vld [vmem:[#allocation8 + $0x1b0] sm:$0xff]
          %v1083 = vld [vmem:[#allocation8 + $0x1b8] sm:$0xff]
          %v1084 = vld [vmem:[#allocation8 + $0x1c0] sm:$0xff]
          %v1085 = vld [vmem:[#allocation8 + $0x1c8] sm:$0xff]
          %v1086 = vld [vmem:[#allocation8 + $0x1d0] sm:$0xff]
          %v1087 = vld [vmem:[#allocation8 + $0x1d8] sm:$0xff]
          %v1088 = vld [vmem:[#allocation8 + $0x1e0] sm:$0xff]
          %v1089 = vld [vmem:[#allocation8 + $0x1e8] sm:$0xff]
          %v1090 = vld [vmem:[#allocation8 + $0x1f0] sm:$0xff]
          %v1091 = vld [vmem:[#allocation8 + $0x1f8] sm:$0xff]
          %v1092 = vld [vmem:[#allocation8 + $0x200] sm:$0xff]
          %v1093 = vld [vmem:[#allocation8 + $0x208] sm:$0xff]
          %v1094 = vld [vmem:[#allocation8 + $0x210] sm:$0xff]
          %v1095 = vld [vmem:[#allocation8 + $0x218] sm:$0xff]
          %v1096 = vld [vmem:[#allocation8 + $0x220] sm:$0xff]
          %v1097 = vld [vmem:[#allocation8 + $0x228] sm:$0xff]
          %v1098 = vld [vmem:[#allocation8 + $0x230] sm:$0xff]
          %v1099 = vld [vmem:[#allocation8 + $0x238] sm:$0xff]
          %v1100 = vld [vmem:[#allocation8 + $0x240] sm:$0xff]
          %v1101 = vld [vmem:[#allocation8 + $0x248] sm:$0xff]
          %v1102 = vld [vmem:[#allocation8 + $0x250] sm:$0xff]
          %v1103 = vld [vmem:[#allocation8 + $0x258] sm:$0xff]
          %v1104 = vld [vmem:[#allocation8 + $0x260] sm:$0xff]
          %v1105 = vld [vmem:[#allocation8 + $0x268] sm:$0xff]
          %v1106 = vld [vmem:[#allocation8 + $0x270] sm:$0xff]
          %v1107 = vld [vmem:[#allocation8 + $0x278] sm:$0xff]
          %v1108 = vld [vmem:[#allocation8 + $0x280] sm:$0xff]
          %v1109 = vld [vmem:[#allocation8 + $0x288] sm:$0xff]
          %v1110 = vld [vmem:[#allocation8 + $0x290] sm:$0xff]
          %v1111 = vld [vmem:[#allocation8 + $0x298] sm:$0xff]
          %v1112 = vld [vmem:[#allocation8 + $0x2a0] sm:$0xff]
          %v1113 = vld [vmem:[#allocation8 + $0x2a8] sm:$0xff]
          %v1114 = vld [vmem:[#allocation8 + $0x2b0] sm:$0xff]
          %v1115 = vld [vmem:[#allocation8 + $0x2b8] sm:$0xff]
          %v1116 = vld [vmem:[#allocation8 + $0x2c0] sm:$0xff]
          %v1117 = vld [vmem:[#allocation8 + $0x2c8] sm:$0xff]
          %v1118 = vld [vmem:[#allocation8 + $0x2d0] sm:$0xff]
          %v1119 = vld [vmem:[#allocation8 + $0x2d8] sm:$0xff]
          %v1120 = vld [vmem:[#allocation8 + $0x2e0] sm:$0xff]
          %v1121 = vld [vmem:[#allocation8 + $0x2e8] sm:$0xff]
          %v1122 = vld [vmem:[#allocation8 + $0x2f0] sm:$0xff]
          %v1123 = vld [vmem:[#allocation8 + $0x2f8] sm:$0xff]
          %v1124 = vld [vmem:[#allocation8 + $0x300] sm:$0xff]
          %v1125 = vld [vmem:[#allocation8 + $0x308] sm:$0xff]
          %v1126 = vld [vmem:[#allocation8 + $0x310] sm:$0xff]
          %v1127 = vld [vmem:[#allocation8 + $0x318] sm:$0xff]
          %v1128 = vld [vmem:[#allocation8 + $0x320] sm:$0xff]
          %v1129 = vld [vmem:[#allocation8 + $0x328] sm:$0xff]
          %v1130 = vld [vmem:[#allocation8 + $0x330] sm:$0xff]
          %v1131 = vld [vmem:[#allocation8 + $0x338] sm:$0xff]
          %v1132 = vld [vmem:[#allocation8 + $0x340] sm:$0xff]
          %v1133 = vld [vmem:[#allocation8 + $0x348] sm:$0xff]
          %v1134 = vld [vmem:[#allocation8 + $0x350] sm:$0xff]
          %v1135 = vld [vmem:[#allocation8 + $0x358] sm:$0xff]
          %v1136 = vld [vmem:[#allocation8 + $0x360] sm:$0xff]
          %v1137 = vld [vmem:[#allocation8 + $0x368] sm:$0xff]
          %v1138 = vld [vmem:[#allocation8 + $0x370] sm:$0xff]
          %v1139 = vld [vmem:[#allocation8 + $0x378] sm:$0xff]
          %v1140 = vld [vmem:[#allocation8 + $0x380] sm:$0xff]
          %v1141 = vld [vmem:[#allocation8 + $0x388] sm:$0xff]
          %v1142 = vld [vmem:[#allocation8 + $0x390] sm:$0xff]
          %v1143 = vld [vmem:[#allocation8 + $0x398] sm:$0xff]
          %v1144 = vld [vmem:[#allocation8 + $0x3a0] sm:$0xff]
          %v1145 = vld [vmem:[#allocation8 + $0x3a8] sm:$0xff]
          %v1146 = vld [vmem:[#allocation8 + $0x3b0] sm:$0xff]
          %v1147 = vld [vmem:[#allocation8 + $0x3b8] sm:$0xff]
          %v1148 = vld [vmem:[#allocation8 + $0x3c0] sm:$0xff]
          %v1149 = vld [vmem:[#allocation8 + $0x3c8] sm:$0xff]
          %v1150 = vld [vmem:[#allocation8 + $0x3d0] sm:$0xff]
          %v1151 = vld [vmem:[#allocation8 + $0x3d8] sm:$0xff]
          %v1152 = vld [vmem:[#allocation8 + $0x3e0] sm:$0xff]
          %v1153 = vld [vmem:[#allocation8 + $0x3e8] sm:$0xff]
          %v1154 = vld [vmem:[#allocation8 + $0x3f0] sm:$0xff]
          %v1155 = vld [vmem:[#allocation8 + $0x3f8] sm:$0xff]
          %v1156 = vld [vmem:[#allocation8 + $0x400] sm:$0xff]
          %v1157 = vld [vmem:[#allocation8 + $0x408] sm:$0xff]
          %v1158 = vld [vmem:[#allocation8 + $0x410] sm:$0xff]
          %v1159 = vld [vmem:[#allocation8 + $0x418] sm:$0xff]
          %v1160 = vld [vmem:[#allocation8 + $0x420] sm:$0xff]
          %v1161 = vld [vmem:[#allocation8 + $0x428] sm:$0xff]
          %v1162 = vld [vmem:[#allocation8 + $0x430] sm:$0xff]
          %v1163 = vld [vmem:[#allocation8 + $0x438] sm:$0xff]
          %v1164 = vld [vmem:[#allocation8 + $0x440] sm:$0xff]
          %v1165 = vld [vmem:[#allocation8 + $0x448] sm:$0xff]
          %v1166 = vld [vmem:[#allocation8 + $0x450] sm:$0xff]
          %v1167 = vld [vmem:[#allocation8 + $0x458] sm:$0xff]
          %v1168 = vld [vmem:[#allocation8 + $0x460] sm:$0xff]
          %v1169 = vld [vmem:[#allocation8 + $0x468] sm:$0xff]
          %v1170 = vld [vmem:[#allocation8 + $0x470] sm:$0xff]
          %v1171 = vld [vmem:[#allocation8 + $0x478] sm:$0xff]
          %v1172 = vld [vmem:[#allocation8 + $0x480] sm:$0xff]
          %v1173 = vld [vmem:[#allocation8 + $0x488] sm:$0xff]
          %v1174 = vld [vmem:[#allocation8 + $0x490] sm:$0xff]
          %v1175 = vld [vmem:[#allocation8 + $0x498] sm:$0xff]
          %v1176 = vld [vmem:[#allocation8 + $0x4a0] sm:$0xff]
          %v1177 = vld [vmem:[#allocation8 + $0x4a8] sm:$0xff]
          %v1178 = vld [vmem:[#allocation8 + $0x4b0] sm:$0xff]
          %v1179 = vld [vmem:[#allocation8 + $0x4b8] sm:$0xff]
          %v1180 = vld [vmem:[#allocation8 + $0x4c0] sm:$0xff]
          %v1181 = vld [vmem:[#allocation8 + $0x4c8] sm:$0xff]
          %v1182 = vld [vmem:[#allocation8 + $0x4d0] sm:$0xff]
          %v1183 = vld [vmem:[#allocation8 + $0x4d8] sm:$0xff]
          %v1184 = vld [vmem:[#allocation8 + $0x4e0] sm:$0xff]
          %v1185 = vld [vmem:[#allocation8 + $0x4e8] sm:$0xff]
          %v1186 = vld [vmem:[#allocation8 + $0x4f0] sm:$0xff]
          %v1187 = vld [vmem:[#allocation8 + $0x4f8] sm:$0xff]
          %v1188 = vld [vmem:[#allocation8 + $0x500] sm:$0xff]
          %v1189 = vld [vmem:[#allocation8 + $0x508] sm:$0xff]
          %v1190 = vld [vmem:[#allocation8 + $0x510] sm:$0xff]
          %v1191 = vld [vmem:[#allocation8 + $0x518] sm:$0xff]
          %v1192 = vld [vmem:[#allocation8 + $0x520] sm:$0xff]
          %v1193 = vld [vmem:[#allocation8 + $0x528] sm:$0xff]
          %v1194 = vld [vmem:[#allocation8 + $0x530] sm:$0xff]
          %v1195 = vld [vmem:[#allocation8 + $0x538] sm:$0xff]
          %v1196 = vld [vmem:[#allocation8 + $0x540] sm:$0xff]
          %v1197 = vld [vmem:[#allocation8 + $0x548] sm:$0xff]
          %v1198 = vld [vmem:[#allocation8 + $0x550] sm:$0xff]
          %v1199 = vld [vmem:[#allocation8 + $0x558] sm:$0xff]
          %v1200 = vld [vmem:[#allocation8 + $0x560] sm:$0xff]
          %v1201 = vld [vmem:[#allocation8 + $0x568] sm:$0xff]
          %v1202 = vld [vmem:[#allocation8 + $0x570] sm:$0xff]
          %v1203 = vld [vmem:[#allocation8 + $0x578] sm:$0xff]
          %v1204 = vld [vmem:[#allocation8 + $0x580] sm:$0xff]
          %v1205 = vld [vmem:[#allocation8 + $0x588] sm:$0xff]
          %v1206 = vld [vmem:[#allocation8 + $0x590] sm:$0xff]
          %v1207 = vld [vmem:[#allocation8 + $0x598] sm:$0xff]
          %v1208 = vld [vmem:[#allocation8 + $0x5a0] sm:$0xff]
          %v1209 = vld [vmem:[#allocation8 + $0x5a8] sm:$0xff]
          %v1210 = vld [vmem:[#allocation8 + $0x5b0] sm:$0xff]
          %v1211 = vld [vmem:[#allocation8 + $0x5b8] sm:$0xff]
          %v1212 = vld [vmem:[#allocation8 + $0x5c0] sm:$0xff]
          %v1213 = vld [vmem:[#allocation8 + $0x5c8] sm:$0xff]
          %v1214 = vld [vmem:[#allocation8 + $0x5d0] sm:$0xff]
          %v1215 = vld [vmem:[#allocation8 + $0x5d8] sm:$0xff]
          %v1216 = vld [vmem:[#allocation8 + $0x5e0] sm:$0xff]
          %v1217 = vld [vmem:[#allocation8 + $0x5e8] sm:$0xff]
          %v1218 = vld [vmem:[#allocation8 + $0x5f0] sm:$0xff]
          %v1219 = vld [vmem:[#allocation8 + $0x5f8] sm:$0xff]
          %v1220 = vld [vmem:[#allocation8 + $0x600] sm:$0xff]
          %v1221 = vld [vmem:[#allocation8 + $0x608] sm:$0xff]
          %v1222 = vld [vmem:[#allocation8 + $0x610] sm:$0xff]
          %v1223 = vld [vmem:[#allocation8 + $0x618] sm:$0xff]
          %v1224 = vld [vmem:[#allocation8 + $0x620] sm:$0xff]
          %v1225 = vld [vmem:[#allocation8 + $0x628] sm:$0xff]
          %v1226 = vld [vmem:[#allocation8 + $0x630] sm:$0xff]
          %v1227 = vld [vmem:[#allocation8 + $0x638] sm:$0xff]
          %v1228 = vld [vmem:[#allocation8 + $0x640] sm:$0xff]
          %v1229 = vld [vmem:[#allocation8 + $0x648] sm:$0xff]
          %v1230 = vld [vmem:[#allocation8 + $0x650] sm:$0xff]
          %v1231 = vld [vmem:[#allocation8 + $0x658] sm:$0xff]
          %v1232 = vld [vmem:[#allocation8 + $0x660] sm:$0xff]
          %v1233 = vld [vmem:[#allocation8 + $0x668] sm:$0xff]
          %v1234 = vld [vmem:[#allocation8 + $0x670] sm:$0xff]
          %v1235 = vld [vmem:[#allocation8 + $0x678] sm:$0xff]
          %v1236 = vld [vmem:[#allocation8 + $0x680] sm:$0xff]
          %v1237 = vld [vmem:[#allocation8 + $0x688] sm:$0xff]
          %v1238 = vld [vmem:[#allocation8 + $0x690] sm:$0xff]
          %v1239 = vld [vmem:[#allocation8 + $0x698] sm:$0xff]
          %v1240 = vld [vmem:[#allocation8 + $0x6a0] sm:$0xff]
          %v1241 = vld [vmem:[#allocation8 + $0x6a8] sm:$0xff]
          %v1242 = vld [vmem:[#allocation8 + $0x6b0] sm:$0xff]
          %v1243 = vld [vmem:[#allocation8 + $0x6b8] sm:$0xff]
          %v1244 = vld [vmem:[#allocation8 + $0x6c0] sm:$0xff]
          %v1245 = vld [vmem:[#allocation8 + $0x6c8] sm:$0xff]
          %v1246 = vld [vmem:[#allocation8 + $0x6d0] sm:$0xff]
          %v1247 = vld [vmem:[#allocation8 + $0x6d8] sm:$0xff]
          %v1248 = vld [vmem:[#allocation8 + $0x6e0] sm:$0xff]
          %v1249 = vld [vmem:[#allocation8 + $0x6e8] sm:$0xff]
          %v1250 = vld [vmem:[#allocation8 + $0x6f0] sm:$0xff]
          %v1251 = vld [vmem:[#allocation8 + $0x6f8] sm:$0xff]
          %v1252 = vld [vmem:[#allocation8 + $0x700] sm:$0xff]
          %v1253 = vld [vmem:[#allocation8 + $0x708] sm:$0xff]
          %v1254 = vld [vmem:[#allocation8 + $0x710] sm:$0xff]
          %v1255 = vld [vmem:[#allocation8 + $0x718] sm:$0xff]
          %v1256 = vld [vmem:[#allocation8 + $0x720] sm:$0xff]
          %v1257 = vld [vmem:[#allocation8 + $0x728] sm:$0xff]
          %v1258 = vld [vmem:[#allocation8 + $0x730] sm:$0xff]
          %v1259 = vld [vmem:[#allocation8 + $0x738] sm:$0xff]
          %v1260 = vld [vmem:[#allocation8 + $0x740] sm:$0xff]
          %v1261 = vld [vmem:[#allocation8 + $0x748] sm:$0xff]
          %v1262 = vld [vmem:[#allocation8 + $0x750] sm:$0xff]
          %v1263 = vld [vmem:[#allocation8 + $0x758] sm:$0xff]
          %v1264 = vld [vmem:[#allocation8 + $0x760] sm:$0xff]
          %v1265 = vld [vmem:[#allocation8 + $0x768] sm:$0xff]
          %v1266 = vld [vmem:[#allocation8 + $0x770] sm:$0xff]
          %v1267 = vld [vmem:[#allocation8 + $0x778] sm:$0xff]
          %v1268 = vld [vmem:[#allocation8 + $0x780] sm:$0xff]
          %v1269 = vld [vmem:[#allocation8 + $0x788] sm:$0xff]
          %v1270 = vld [vmem:[#allocation8 + $0x790] sm:$0xff]
          %v1271 = vld [vmem:[#allocation8 + $0x798] sm:$0xff]
          %v1272 = vld [vmem:[#allocation8 + $0x7a0] sm:$0xff]
          %v1273 = vld [vmem:[#allocation8 + $0x7a8] sm:$0xff]
          %v1274 = vld [vmem:[#allocation8 + $0x7b0] sm:$0xff]
          %v1275 = vld [vmem:[#allocation8 + $0x7b8] sm:$0xff]
          %v1276 = vld [vmem:[#allocation8 + $0x7c0] sm:$0xff]
          %v1277 = vld [vmem:[#allocation8 + $0x7c8] sm:$0xff]
          %v1278 = vld [vmem:[#allocation8 + $0x7d0] sm:$0xff]
          %v1279 = vld [vmem:[#allocation8 + $0x7d8] sm:$0xff]
          %v1280 = vld [vmem:[#allocation8 + $0x7e0] sm:$0xff]
          %v1281 = vld [vmem:[#allocation8 + $0x7e8] sm:$0xff]
          %v1282 = vld [vmem:[#allocation8 + $0x7f0] sm:$0xff]
          %v1283 = vld [vmem:[#allocation8 + $0x7f8] sm:$0xff]
          %v1284 = vld [vmem:[%s3] sm:$0x3]
          %v1286 = vlaneseq
          %v1287 = vshrl.u32 %v1286, 7
          %v1288 = vsub.s32 0, %v1287
          %v1289 = vrot.slane %v1027, %v1288
          %v1290 = vlaneseq
          %v1291 = vshrl.u32 %v1290, 7
          %v1292 = vsub.s32 1, %v1291
          %v1293 = vrot.slane %v1027, %v1292
          %v1294 = vlaneseq
          %v1295 = vshrl.u32 %v1294, 7
          %v1296 = vsub.s32 2, %v1295
          %v1297 = vrot.slane %v1027, %v1296
          %v1298 = vlaneseq
          %v1299 = vshrl.u32 %v1298, 7
          %v1300 = vsub.s32 3, %v1299
          %v1301 = vrot.slane %v1027, %v1300
          %v1302 = vlaneseq
          %v1303 = vshrl.u32 %v1302, 7
          %v1304 = vsub.s32 4, %v1303
          %v1305 = vrot.slane %v1027, %v1304
          %v1306 = vlaneseq
          %v1307 = vshrl.u32 %v1306, 7
          %v1308 = vsub.s32 5, %v1307
          %v1309 = vrot.slane %v1027, %v1308
          %v1310 = vlaneseq
          %v1311 = vshrl.u32 %v1310, 7
          %v1312 = vsub.s32 6, %v1311
          %v1313 = vrot.slane %v1027, %v1312
          %v1314 = vlaneseq
          %v1315 = vshrl.u32 %v1314, 7
          %v1316 = vsub.s32 7, %v1315
          %v1317 = vrot.slane %v1027, %v1316
          %v1327 = vlaneseq
          %v1328 = vshrl.u32 %v1327, 7
          %v1329 = vsub.s32 0, %v1328
          %v1330 = vrot.slane %v1284, %v1329
          %v1331 = vlaneseq
          %v1332 = vshrl.u32 %v1331, 7
          %v1333 = vsub.s32 1, %v1332
          %v1334 = vrot.slane %v1284, %v1333
          %1337 = vmatprep.subr.mxu0 %v1059
          %1338 = vmatpush1.msra.mxu0 %v1058
          %1339 = vmatprep.subr.mxu0 %v1057
          %1340 = vmatpush1.msra.mxu0 %v1056
          %1341 = vmatprep.subr.mxu0 %v1055
          %1342 = vmatpush1.msra.mxu0 %v1054
          %1343 = vmatprep.subr.mxu0 %v1053
          %1344 = vmatpush1.msra.mxu0 %v1052
          %1345 = vmatprep.subr.mxu0 %v1051
          %1346 = vmatpush1.msra.mxu0 %v1050
          %1347 = vmatprep.subr.mxu0 %v1049
          %1348 = vmatpush1.msra.mxu0 %v1048
          %1349 = vmatprep.subr.mxu0 %v1047
          %1350 = vmatpush1.msra.mxu0 %v1046
          %1351 = vmatprep.subr.mxu0 %v1045
          %1352 = vmatpush1.msra.mxu0 %v1044
          %1353 = vmatprep.subr.mxu0 %v1043
          %1354 = vmatpush1.msra.mxu0 %v1042
          %1355 = vmatprep.subr.mxu0 %v1041
          %1356 = vmatpush1.msra.mxu0 %v1040
          %1357 = vmatprep.subr.mxu0 %v1039
          %1358 = vmatpush1.msra.mxu0 %v1038
          %1359 = vmatprep.subr.mxu0 %v1037
          %1360 = vmatpush1.msra.mxu0 %v1036
          %1361 = vmatprep.subr.mxu0 %v1035
          %1362 = vmatpush1.msra.mxu0 %v1034
          %1363 = vmatprep.subr.mxu0 %v1033
          %1364 = vmatpush1.msra.mxu0 %v1032
          %1365 = vmatprep.subr.mxu0 %v1031
          %1366 = vmatpush1.msra.mxu0 %v1030
          %1367 = vmatprep.subr.mxu0 %v1029
          %1368 = vmatpush1.msra.mxu0 %v1028
          %1369 = vmatprep.subr.mxu0 %v1091
          %1370 = vmatpush2.msra.mxu0 %v1090
          %1371 = vmatprep.subr.mxu0 %v1089
          %1372 = vmatpush2.msra.mxu0 %v1088
          %1373 = vmatprep.subr.mxu0 %v1087
          %1374 = vmatpush2.msra.mxu0 %v1086
          %1375 = vmatprep.subr.mxu0 %v1085
          %1376 = vmatpush2.msra.mxu0 %v1084
          %1377 = vmatprep.subr.mxu0 %v1083
          %1378 = vmatpush2.msra.mxu0 %v1082
          %1379 = vmatprep.subr.mxu0 %v1081
          %1380 = vmatpush2.msra.mxu0 %v1080
          %1381 = vmatprep.subr.mxu0 %v1079
          %1382 = vmatpush2.msra.mxu0 %v1078
          %1383 = vmatprep.subr.mxu0 %v1077
          %1384 = vmatpush2.msra.mxu0 %v1076
          %1385 = vmatprep.subr.mxu0 %v1075
          %1386 = vmatpush2.msra.mxu0 %v1074
          %1387 = vmatprep.subr.mxu0 %v1073
          %1388 = vmatpush2.msra.mxu0 %v1072
          %1389 = vmatprep.subr.mxu0 %v1071
          %1390 = vmatpush2.msra.mxu0 %v1070
          %1391 = vmatprep.subr.mxu0 %v1069
          %1392 = vmatpush2.msra.mxu0 %v1068
          %1393 = vmatprep.subr.mxu0 %v1067
          %1394 = vmatpush2.msra.mxu0 %v1066
          %1395 = vmatprep.subr.mxu0 %v1065
          %1396 = vmatpush2.msra.mxu0 %v1064
          %1397 = vmatprep.subr.mxu0 %v1063
          %1398 = vmatpush2.msra.mxu0 %v1062
          %1399 = vmatprep.subr.mxu0 %v1061
          %1400 = vmatpush2.msra.mxu0 %v1060
          %1401 = vmatprep.mubr.f32.mxu0 %v1293
          %1402 = vmatmul.mubr.f32.gmra.mxu0 %v1289
          %v1403 = vpop.f32.mrf.mxu0
          %v1404 = vadd.f32 %v1330, %v1403
          %v1405 = vpop.f32.mrf.mxu0
          %v1406 = vadd.f32 %v1334, %v1405
          %1407 = vdwg.mxu0
          %1408 = vmatprep.subr.mxu0 %v1123
          %1409 = vmatpush1.msra.mxu0 %v1122
          %1410 = vmatprep.subr.mxu0 %v1121
          %1411 = vmatpush1.msra.mxu0 %v1120
          %1412 = vmatprep.subr.mxu0 %v1119
          %1413 = vmatpush1.msra.mxu0 %v1118
          %1414 = vmatprep.subr.mxu0 %v1117
          %1415 = vmatpush1.msra.mxu0 %v1116
          %1416 = vmatprep.subr.mxu0 %v1115
          %1417 = vmatpush1.msra.mxu0 %v1114
          %1418 = vmatprep.subr.mxu0 %v1113
          %1419 = vmatpush1.msra.mxu0 %v1112
          %1420 = vmatprep.subr.mxu0 %v1111
          %1421 = vmatpush1.msra.mxu0 %v1110
          %1422 = vmatprep.subr.mxu0 %v1109
          %1423 = vmatpush1.msra.mxu0 %v1108
          %1424 = vmatprep.subr.mxu0 %v1107
          %1425 = vmatpush1.msra.mxu0 %v1106
          %1426 = vmatprep.subr.mxu0 %v1105
          %1427 = vmatpush1.msra.mxu0 %v1104
          %1428 = vmatprep.subr.mxu0 %v1103
          %1429 = vmatpush1.msra.mxu0 %v1102
          %1430 = vmatprep.subr.mxu0 %v1101
          %1431 = vmatpush1.msra.mxu0 %v1100
          %1432 = vmatprep.subr.mxu0 %v1099
          %1433 = vmatpush1.msra.mxu0 %v1098
          %1434 = vmatprep.subr.mxu0 %v1097
          %1435 = vmatpush1.msra.mxu0 %v1096
          %1436 = vmatprep.subr.mxu0 %v1095
          %1437 = vmatpush1.msra.mxu0 %v1094
          %1438 = vmatprep.subr.mxu0 %v1093
          %1439 = vmatpush1.msra.mxu0 %v1092
          %1440 = vmatprep.subr.mxu0 %v1155
          %1441 = vmatpush2.msra.mxu0 %v1154
          %1442 = vmatprep.subr.mxu0 %v1153
          %1443 = vmatpush2.msra.mxu0 %v1152
          %1444 = vmatprep.subr.mxu0 %v1151
          %1445 = vmatpush2.msra.mxu0 %v1150
          %1446 = vmatprep.subr.mxu0 %v1149
          %1447 = vmatpush2.msra.mxu0 %v1148
          %1448 = vmatprep.subr.mxu0 %v1147
          %1449 = vmatpush2.msra.mxu0 %v1146
          %1450 = vmatprep.subr.mxu0 %v1145
          %1451 = vmatpush2.msra.mxu0 %v1144
          %1452 = vmatprep.subr.mxu0 %v1143
          %1453 = vmatpush2.msra.mxu0 %v1142
          %1454 = vmatprep.subr.mxu0 %v1141
          %1455 = vmatpush2.msra.mxu0 %v1140
          %1456 = vmatprep.subr.mxu0 %v1139
          %1457 = vmatpush2.msra.mxu0 %v1138
          %1458 = vmatprep.subr.mxu0 %v1137
          %1459 = vmatpush2.msra.mxu0 %v1136
          %1460 = vmatprep.subr.mxu0 %v1135
          %1461 = vmatpush2.msra.mxu0 %v1134
          %1462 = vmatprep.subr.mxu0 %v1133
          %1463 = vmatpush2.msra.mxu0 %v1132
          %1464 = vmatprep.subr.mxu0 %v1131
          %1465 = vmatpush2.msra.mxu0 %v1130
          %1466 = vmatprep.subr.mxu0 %v1129
          %1467 = vmatpush2.msra.mxu0 %v1128
          %1468 = vmatprep.subr.mxu0 %v1127
          %1469 = vmatpush2.msra.mxu0 %v1126
          %1470 = vmatprep.subr.mxu0 %v1125
          %1471 = vmatpush2.msra.mxu0 %v1124
          %1472 = vmatprep.mubr.f32.mxu0 %v1301
          %1473 = vmatmul.mubr.f32.gmra.mxu0 %v1297
          %v1474 = vpop.f32.mrf.mxu0
          %v1475 = vadd.f32 %v1404, %v1474
          %v1476 = vpop.f32.mrf.mxu0
          %v1477 = vadd.f32 %v1406, %v1476
          %1478 = vdwg.mxu0
          %1479 = vmatprep.subr.mxu0 %v1187
          %1480 = vmatpush1.msra.mxu0 %v1186
          %1481 = vmatprep.subr.mxu0 %v1185
          %1482 = vmatpush1.msra.mxu0 %v1184
          %1483 = vmatprep.subr.mxu0 %v1183
          %1484 = vmatpush1.msra.mxu0 %v1182
          %1485 = vmatprep.subr.mxu0 %v1181
          %1486 = vmatpush1.msra.mxu0 %v1180
          %1487 = vmatprep.subr.mxu0 %v1179
          %1488 = vmatpush1.msra.mxu0 %v1178
          %1489 = vmatprep.subr.mxu0 %v1177
          %1490 = vmatpush1.msra.mxu0 %v1176
          %1491 = vmatprep.subr.mxu0 %v1175
          %1492 = vmatpush1.msra.mxu0 %v1174
          %1493 = vmatprep.subr.mxu0 %v1173
          %1494 = vmatpush1.msra.mxu0 %v1172
          %1495 = vmatprep.subr.mxu0 %v1171
          %1496 = vmatpush1.msra.mxu0 %v1170
          %1497 = vmatprep.subr.mxu0 %v1169
          %1498 = vmatpush1.msra.mxu0 %v1168
          %1499 = vmatprep.subr.mxu0 %v1167
          %1500 = vmatpush1.msra.mxu0 %v1166
          %1501 = vmatprep.subr.mxu0 %v1165
          %1502 = vmatpush1.msra.mxu0 %v1164
          %1503 = vmatprep.subr.mxu0 %v1163
          %1504 = vmatpush1.msra.mxu0 %v1162
          %1505 = vmatprep.subr.mxu0 %v1161
          %1506 = vmatpush1.msra.mxu0 %v1160
          %1507 = vmatprep.subr.mxu0 %v1159
          %1508 = vmatpush1.msra.mxu0 %v1158
          %1509 = vmatprep.subr.mxu0 %v1157
          %1510 = vmatpush1.msra.mxu0 %v1156
          %1511 = vmatprep.subr.mxu0 %v1219
          %1512 = vmatpush2.msra.mxu0 %v1218
          %1513 = vmatprep.subr.mxu0 %v1217
          %1514 = vmatpush2.msra.mxu0 %v1216
          %1515 = vmatprep.subr.mxu0 %v1215
          %1516 = vmatpush2.msra.mxu0 %v1214
          %1517 = vmatprep.subr.mxu0 %v1213
          %1518 = vmatpush2.msra.mxu0 %v1212
          %1519 = vmatprep.subr.mxu0 %v1211
          %1520 = vmatpush2.msra.mxu0 %v1210
          %1521 = vmatprep.subr.mxu0 %v1209
          %1522 = vmatpush2.msra.mxu0 %v1208
          %1523 = vmatprep.subr.mxu0 %v1207
          %1524 = vmatpush2.msra.mxu0 %v1206
          %1525 = vmatprep.subr.mxu0 %v1205
          %1526 = vmatpush2.msra.mxu0 %v1204
          %1527 = vmatprep.subr.mxu0 %v1203
          %1528 = vmatpush2.msra.mxu0 %v1202
          %1529 = vmatprep.subr.mxu0 %v1201
          %1530 = vmatpush2.msra.mxu0 %v1200
          %1531 = vmatprep.subr.mxu0 %v1199
          %1532 = vmatpush2.msra.mxu0 %v1198
          %1533 = vmatprep.subr.mxu0 %v1197
          %1534 = vmatpush2.msra.mxu0 %v1196
          %1535 = vmatprep.subr.mxu0 %v1195
          %1536 = vmatpush2.msra.mxu0 %v1194
          %1537 = vmatprep.subr.mxu0 %v1193
          %1538 = vmatpush2.msra.mxu0 %v1192
          %1539 = vmatprep.subr.mxu0 %v1191
          %1540 = vmatpush2.msra.mxu0 %v1190
          %1541 = vmatprep.subr.mxu0 %v1189
          %1542 = vmatpush2.msra.mxu0 %v1188
          %1543 = vmatprep.mubr.f32.mxu0 %v1309
          %1544 = vmatmul.mubr.f32.gmra.mxu0 %v1305
          %v1545 = vpop.f32.mrf.mxu0
          %v1546 = vadd.f32 %v1475, %v1545
          %v1547 = vpop.f32.mrf.mxu0
          %v1548 = vadd.f32 %v1477, %v1547
          %1549 = vdwg.mxu0
          %1550 = vmatprep.subr.mxu0 %v1251
          %1551 = vmatpush1.msra.mxu0 %v1250
          %1552 = vmatprep.subr.mxu0 %v1249
          %1553 = vmatpush1.msra.mxu0 %v1248
          %1554 = vmatprep.subr.mxu0 %v1247
          %1555 = vmatpush1.msra.mxu0 %v1246
          %1556 = vmatprep.subr.mxu0 %v1245
          %1557 = vmatpush1.msra.mxu0 %v1244
          %1558 = vmatprep.subr.mxu0 %v1243
          %1559 = vmatpush1.msra.mxu0 %v1242
          %1560 = vmatprep.subr.mxu0 %v1241
          %1561 = vmatpush1.msra.mxu0 %v1240
          %1562 = vmatprep.subr.mxu0 %v1239
          %1563 = vmatpush1.msra.mxu0 %v1238
          %1564 = vmatprep.subr.mxu0 %v1237
          %1565 = vmatpush1.msra.mxu0 %v1236
          %1566 = vmatprep.subr.mxu0 %v1235
          %1567 = vmatpush1.msra.mxu0 %v1234
          %1568 = vmatprep.subr.mxu0 %v1233
          %1569 = vmatpush1.msra.mxu0 %v1232
          %1570 = vmatprep.subr.mxu0 %v1231
          %1571 = vmatpush1.msra.mxu0 %v1230
          %1572 = vmatprep.subr.mxu0 %v1229
          %1573 = vmatpush1.msra.mxu0 %v1228
          %1574 = vmatprep.subr.mxu0 %v1227
          %1575 = vmatpush1.msra.mxu0 %v1226
          %1576 = vmatprep.subr.mxu0 %v1225
          %1577 = vmatpush1.msra.mxu0 %v1224
          %1578 = vmatprep.subr.mxu0 %v1223
          %1579 = vmatpush1.msra.mxu0 %v1222
          %1580 = vmatprep.subr.mxu0 %v1221
          %1581 = vmatpush1.msra.mxu0 %v1220
          %1582 = vmatprep.subr.mxu0 %v1283
          %1583 = vmatpush2.msra.mxu0 %v1282
          %1584 = vmatprep.subr.mxu0 %v1281
          %1585 = vmatpush2.msra.mxu0 %v1280
          %1586 = vmatprep.subr.mxu0 %v1279
          %1587 = vmatpush2.msra.mxu0 %v1278
          %1588 = vmatprep.subr.mxu0 %v1277
          %1589 = vmatpush2.msra.mxu0 %v1276
          %1590 = vmatprep.subr.mxu0 %v1275
          %1591 = vmatpush2.msra.mxu0 %v1274
          %1592 = vmatprep.subr.mxu0 %v1273
          %1593 = vmatpush2.msra.mxu0 %v1272
          %1594 = vmatprep.subr.mxu0 %v1271
          %1595 = vmatpush2.msra.mxu0 %v1270
          %1596 = vmatprep.subr.mxu0 %v1269
          %1597 = vmatpush2.msra.mxu0 %v1268
          %1598 = vmatprep.subr.mxu0 %v1267
          %1599 = vmatpush2.msra.mxu0 %v1266
          %1600 = vmatprep.subr.mxu0 %v1265
          %1601 = vmatpush2.msra.mxu0 %v1264
          %1602 = vmatprep.subr.mxu0 %v1263
          %1603 = vmatpush2.msra.mxu0 %v1262
          %1604 = vmatprep.subr.mxu0 %v1261
          %1605 = vmatpush2.msra.mxu0 %v1260
          %1606 = vmatprep.subr.mxu0 %v1259
          %1607 = vmatpush2.msra.mxu0 %v1258
          %1608 = vmatprep.subr.mxu0 %v1257
          %1609 = vmatpush2.msra.mxu0 %v1256
          %1610 = vmatprep.subr.mxu0 %v1255
          %1611 = vmatpush2.msra.mxu0 %v1254
          %1612 = vmatprep.subr.mxu0 %v1253
          %1613 = vmatpush2.msra.mxu0 %v1252
          %1614 = vmatprep.mubr.f32.mxu0 %v1317
          %1615 = vmatmul.mubr.f32.gmra.mxu0 %v1313
          %v1616 = vpop.f32.mrf.mxu0
          %v1617 = vadd.f32 %v1546, %v1616
          %v1618 = vpop.f32.mrf.mxu0
          %v1619 = vadd.f32 %v1548, %v1618
          %1620 = vdwg.mxu0
          %v1621 = vmax.f32 %v1617, 0.0
          %v1622 = vmax.f32 %v1619, 0.0
          %v1625 = vcombine.low %v1621, %v1622
          %v1627 = vunpack.c.l.s4 1966171168
          %v1628 = vunpack.c.0.s8 %v1627
          %v1629 = vlaneseq
          %v1630 = vshrl.u32 %v1629, 7
          %v1631 = vsub.s32 %v1628, %v1630
          %v1632 = vrot.slane %v1625, %v1631
          %v1634 = vunpack.c.l.s4 1966171168
          %v1635 = vunpack.c.0.s8 %v1634
          %v1636 = vlaneseq
          %v1637 = vshrl.u32 %v1636, 7
          %v1638 = vsub.s32 %v1635, %v1637
          %v1639 = vrot.slane %v1632, %v1638
          %v1641 = vlaneseq
          %vm1642 = vcmp.ge.s32.totalorder %v1641, 0
          %vm1643 = vcmp.lt.s32.totalorder %v1641, 256
          %vm1644 = vmand %vm1642, %vm1643
          %1645 = vst.msk [vmem:[#allocation3] ss:$8 sm:$0x3] %vm1644, %v1639
          %1646 = vst.msk [vmem:[#allocation3] ss:$8 sm:$0x0] %vm1644, %v1639
        $region76: #{tpu_custom_call.1} parent=47 // pred_fallthru
          _
        %p1647 = scmp.eq.s32.totalorder %s32, 0
        // Predicated region
        $region77: #{tpu_custom_call.1} parent=47 // pred_check
          %p1648 = pneg %p1647
        $region78: #{tpu_custom_call.1} parent=47 // pred_check_branch
          %1650 = sbr.rel (%p1648) target = $region80
        $region79: #{tpu_custom_call.1} parent=47 // pred_region
          %v1651 = vlaneseq
          %vm1652 = vcmp.ge.s32.totalorder %v1651, 0
          %vm1653 = vcmp.lt.s32.totalorder %v1651, 256
          %vm1654 = vmand %vm1652, %vm1653
          %1655 = vst.msk [vmem:[#allocation3] ss:$8 sm:$0x3] %vm1654, 0.0
          %1656 = vst.msk [vmem:[#allocation3] ss:$8 sm:$0x0] %vm1654, 0.0
        $region80: #{tpu_custom_call.1} parent=47 // pred_fallthru
          _
        // Predicated region
        $region81: #{tpu_custom_call.1} parent=47 // pred_check
          %p1657 = pneg %p382
        $region82: #{tpu_custom_call.1} parent=47 // pred_check_branch
          %1659 = sbr.rel (%p1657) target = $region84
        $region83: #{tpu_custom_call.1} parent=47 // pred_region
          %s1660 = scalar_lea.sflag [#allocation4], 1
          %s1661 = smul.u32 1, 8
          %s1662 = sshll.u32 %s1661, 4
          %1663 = dma.done %s1660, %s1662
          %s1664 = scalar_lea.vmem [#allocation2], 1
          %v1665 = vld [vmem:[%s1664] ss:$2 sm:$0xff]
          %v1666 = vld [vmem:[#allocation8] sm:$0xff]
          %v1667 = vld [vmem:[#allocation8 + $0x8] sm:$0xff]
          %v1668 = vld [vmem:[#allocation8 + $0x10] sm:$0xff]
          %v1669 = vld [vmem:[#allocation8 + $0x18] sm:$0xff]
          %v1670 = vld [vmem:[#allocation8 + $0x20] sm:$0xff]
          %v1671 = vld [vmem:[#allocation8 + $0x28] sm:$0xff]
          %v1672 = vld [vmem:[#allocation8 + $0x30] sm:$0xff]
          %v1673 = vld [vmem:[#allocation8 + $0x38] sm:$0xff]
          %v1674 = vld [vmem:[#allocation8 + $0x40] sm:$0xff]
          %v1675 = vld [vmem:[#allocation8 + $0x48] sm:$0xff]
          %v1676 = vld [vmem:[#allocation8 + $0x50] sm:$0xff]
          %v1677 = vld [vmem:[#allocation8 + $0x58] sm:$0xff]
          %v1678 = vld [vmem:[#allocation8 + $0x60] sm:$0xff]
          %v1679 = vld [vmem:[#allocation8 + $0x68] sm:$0xff]
          %v1680 = vld [vmem:[#allocation8 + $0x70] sm:$0xff]
          %v1681 = vld [vmem:[#allocation8 + $0x78] sm:$0xff]
          %v1682 = vld [vmem:[#allocation8 + $0x80] sm:$0xff]
          %v1683 = vld [vmem:[#allocation8 + $0x88] sm:$0xff]
          %v1684 = vld [vmem:[#allocation8 + $0x90] sm:$0xff]
          %v1685 = vld [vmem:[#allocation8 + $0x98] sm:$0xff]
          %v1686 = vld [vmem:[#allocation8 + $0xa0] sm:$0xff]
          %v1687 = vld [vmem:[#allocation8 + $0xa8] sm:$0xff]
          %v1688 = vld [vmem:[#allocation8 + $0xb0] sm:$0xff]
          %v1689 = vld [vmem:[#allocation8 + $0xb8] sm:$0xff]
          %v1690 = vld [vmem:[#allocation8 + $0xc0] sm:$0xff]
          %v1691 = vld [vmem:[#allocation8 + $0xc8] sm:$0xff]
          %v1692 = vld [vmem:[#allocation8 + $0xd0] sm:$0xff]
          %v1693 = vld [vmem:[#allocation8 + $0xd8] sm:$0xff]
          %v1694 = vld [vmem:[#allocation8 + $0xe0] sm:$0xff]
          %v1695 = vld [vmem:[#allocation8 + $0xe8] sm:$0xff]
          %v1696 = vld [vmem:[#allocation8 + $0xf0] sm:$0xff]
          %v1697 = vld [vmem:[#allocation8 + $0xf8] sm:$0xff]
          %v1698 = vld [vmem:[#allocation8 + $0x100] sm:$0xff]
          %v1699 = vld [vmem:[#allocation8 + $0x108] sm:$0xff]
          %v1700 = vld [vmem:[#allocation8 + $0x110] sm:$0xff]
          %v1701 = vld [vmem:[#allocation8 + $0x118] sm:$0xff]
          %v1702 = vld [vmem:[#allocation8 + $0x120] sm:$0xff]
          %v1703 = vld [vmem:[#allocation8 + $0x128] sm:$0xff]
          %v1704 = vld [vmem:[#allocation8 + $0x130] sm:$0xff]
          %v1705 = vld [vmem:[#allocation8 + $0x138] sm:$0xff]
          %v1706 = vld [vmem:[#allocation8 + $0x140] sm:$0xff]
          %v1707 = vld [vmem:[#allocation8 + $0x148] sm:$0xff]
          %v1708 = vld [vmem:[#allocation8 + $0x150] sm:$0xff]
          %v1709 = vld [vmem:[#allocation8 + $0x158] sm:$0xff]
          %v1710 = vld [vmem:[#allocation8 + $0x160] sm:$0xff]
          %v1711 = vld [vmem:[#allocation8 + $0x168] sm:$0xff]
          %v1712 = vld [vmem:[#allocation8 + $0x170] sm:$0xff]
          %v1713 = vld [vmem:[#allocation8 + $0x178] sm:$0xff]
          %v1714 = vld [vmem:[#allocation8 + $0x180] sm:$0xff]
          %v1715 = vld [vmem:[#allocation8 + $0x188] sm:$0xff]
          %v1716 = vld [vmem:[#allocation8 + $0x190] sm:$0xff]
          %v1717 = vld [vmem:[#allocation8 + $0x198] sm:$0xff]
          %v1718 = vld [vmem:[#allocation8 + $0x1a0] sm:$0xff]
          %v1719 = vld [vmem:[#allocation8 + $0x1a8] sm:$0xff]
          %v1720 = vld [vmem:[#allocation8 + $0x1b0] sm:$0xff]
          %v1721 = vld [vmem:[#allocation8 + $0x1b8] sm:$0xff]
          %v1722 = vld [vmem:[#allocation8 + $0x1c0] sm:$0xff]
          %v1723 = vld [vmem:[#allocation8 + $0x1c8] sm:$0xff]
          %v1724 = vld [vmem:[#allocation8 + $0x1d0] sm:$0xff]
          %v1725 = vld [vmem:[#allocation8 + $0x1d8] sm:$0xff]
          %v1726 = vld [vmem:[#allocation8 + $0x1e0] sm:$0xff]
          %v1727 = vld [vmem:[#allocation8 + $0x1e8] sm:$0xff]
          %v1728 = vld [vmem:[#allocation8 + $0x1f0] sm:$0xff]
          %v1729 = vld [vmem:[#allocation8 + $0x1f8] sm:$0xff]
          %v1730 = vld [vmem:[#allocation8 + $0x200] sm:$0xff]
          %v1731 = vld [vmem:[#allocation8 + $0x208] sm:$0xff]
          %v1732 = vld [vmem:[#allocation8 + $0x210] sm:$0xff]
          %v1733 = vld [vmem:[#allocation8 + $0x218] sm:$0xff]
          %v1734 = vld [vmem:[#allocation8 + $0x220] sm:$0xff]
          %v1735 = vld [vmem:[#allocation8 + $0x228] sm:$0xff]
          %v1736 = vld [vmem:[#allocation8 + $0x230] sm:$0xff]
          %v1737 = vld [vmem:[#allocation8 + $0x238] sm:$0xff]
          %v1738 = vld [vmem:[#allocation8 + $0x240] sm:$0xff]
          %v1739 = vld [vmem:[#allocation8 + $0x248] sm:$0xff]
          %v1740 = vld [vmem:[#allocation8 + $0x250] sm:$0xff]
          %v1741 = vld [vmem:[#allocation8 + $0x258] sm:$0xff]
          %v1742 = vld [vmem:[#allocation8 + $0x260] sm:$0xff]
          %v1743 = vld [vmem:[#allocation8 + $0x268] sm:$0xff]
          %v1744 = vld [vmem:[#allocation8 + $0x270] sm:$0xff]
          %v1745 = vld [vmem:[#allocation8 + $0x278] sm:$0xff]
          %v1746 = vld [vmem:[#allocation8 + $0x280] sm:$0xff]
          %v1747 = vld [vmem:[#allocation8 + $0x288] sm:$0xff]
          %v1748 = vld [vmem:[#allocation8 + $0x290] sm:$0xff]
          %v1749 = vld [vmem:[#allocation8 + $0x298] sm:$0xff]
          %v1750 = vld [vmem:[#allocation8 + $0x2a0] sm:$0xff]
          %v1751 = vld [vmem:[#allocation8 + $0x2a8] sm:$0xff]
          %v1752 = vld [vmem:[#allocation8 + $0x2b0] sm:$0xff]
          %v1753 = vld [vmem:[#allocation8 + $0x2b8] sm:$0xff]
          %v1754 = vld [vmem:[#allocation8 + $0x2c0] sm:$0xff]
          %v1755 = vld [vmem:[#allocation8 + $0x2c8] sm:$0xff]
          %v1756 = vld [vmem:[#allocation8 + $0x2d0] sm:$0xff]
          %v1757 = vld [vmem:[#allocation8 + $0x2d8] sm:$0xff]
          %v1758 = vld [vmem:[#allocation8 + $0x2e0] sm:$0xff]
          %v1759 = vld [vmem:[#allocation8 + $0x2e8] sm:$0xff]
          %v1760 = vld [vmem:[#allocation8 + $0x2f0] sm:$0xff]
          %v1761 = vld [vmem:[#allocation8 + $0x2f8] sm:$0xff]
          %v1762 = vld [vmem:[#allocation8 + $0x300] sm:$0xff]
          %v1763 = vld [vmem:[#allocation8 + $0x308] sm:$0xff]
          %v1764 = vld [vmem:[#allocation8 + $0x310] sm:$0xff]
          %v1765 = vld [vmem:[#allocation8 + $0x318] sm:$0xff]
          %v1766 = vld [vmem:[#allocation8 + $0x320] sm:$0xff]
          %v1767 = vld [vmem:[#allocation8 + $0x328] sm:$0xff]
          %v1768 = vld [vmem:[#allocation8 + $0x330] sm:$0xff]
          %v1769 = vld [vmem:[#allocation8 + $0x338] sm:$0xff]
          %v1770 = vld [vmem:[#allocation8 + $0x340] sm:$0xff]
          %v1771 = vld [vmem:[#allocation8 + $0x348] sm:$0xff]
          %v1772 = vld [vmem:[#allocation8 + $0x350] sm:$0xff]
          %v1773 = vld [vmem:[#allocation8 + $0x358] sm:$0xff]
          %v1774 = vld [vmem:[#allocation8 + $0x360] sm:$0xff]
          %v1775 = vld [vmem:[#allocation8 + $0x368] sm:$0xff]
          %v1776 = vld [vmem:[#allocation8 + $0x370] sm:$0xff]
          %v1777 = vld [vmem:[#allocation8 + $0x378] sm:$0xff]
          %v1778 = vld [vmem:[#allocation8 + $0x380] sm:$0xff]
          %v1779 = vld [vmem:[#allocation8 + $0x388] sm:$0xff]
          %v1780 = vld [vmem:[#allocation8 + $0x390] sm:$0xff]
          %v1781 = vld [vmem:[#allocation8 + $0x398] sm:$0xff]
          %v1782 = vld [vmem:[#allocation8 + $0x3a0] sm:$0xff]
          %v1783 = vld [vmem:[#allocation8 + $0x3a8] sm:$0xff]
          %v1784 = vld [vmem:[#allocation8 + $0x3b0] sm:$0xff]
          %v1785 = vld [vmem:[#allocation8 + $0x3b8] sm:$0xff]
          %v1786 = vld [vmem:[#allocation8 + $0x3c0] sm:$0xff]
          %v1787 = vld [vmem:[#allocation8 + $0x3c8] sm:$0xff]
          %v1788 = vld [vmem:[#allocation8 + $0x3d0] sm:$0xff]
          %v1789 = vld [vmem:[#allocation8 + $0x3d8] sm:$0xff]
          %v1790 = vld [vmem:[#allocation8 + $0x3e0] sm:$0xff]
          %v1791 = vld [vmem:[#allocation8 + $0x3e8] sm:$0xff]
          %v1792 = vld [vmem:[#allocation8 + $0x3f0] sm:$0xff]
          %v1793 = vld [vmem:[#allocation8 + $0x3f8] sm:$0xff]
          %v1794 = vld [vmem:[#allocation8 + $0x400] sm:$0xff]
          %v1795 = vld [vmem:[#allocation8 + $0x408] sm:$0xff]
          %v1796 = vld [vmem:[#allocation8 + $0x410] sm:$0xff]
          %v1797 = vld [vmem:[#allocation8 + $0x418] sm:$0xff]
          %v1798 = vld [vmem:[#allocation8 + $0x420] sm:$0xff]
          %v1799 = vld [vmem:[#allocation8 + $0x428] sm:$0xff]
          %v1800 = vld [vmem:[#allocation8 + $0x430] sm:$0xff]
          %v1801 = vld [vmem:[#allocation8 + $0x438] sm:$0xff]
          %v1802 = vld [vmem:[#allocation8 + $0x440] sm:$0xff]
          %v1803 = vld [vmem:[#allocation8 + $0x448] sm:$0xff]
          %v1804 = vld [vmem:[#allocation8 + $0x450] sm:$0xff]
          %v1805 = vld [vmem:[#allocation8 + $0x458] sm:$0xff]
          %v1806 = vld [vmem:[#allocation8 + $0x460] sm:$0xff]
          %v1807 = vld [vmem:[#allocation8 + $0x468] sm:$0xff]
          %v1808 = vld [vmem:[#allocation8 + $0x470] sm:$0xff]
          %v1809 = vld [vmem:[#allocation8 + $0x478] sm:$0xff]
          %v1810 = vld [vmem:[#allocation8 + $0x480] sm:$0xff]
          %v1811 = vld [vmem:[#allocation8 + $0x488] sm:$0xff]
          %v1812 = vld [vmem:[#allocation8 + $0x490] sm:$0xff]
          %v1813 = vld [vmem:[#allocation8 + $0x498] sm:$0xff]
          %v1814 = vld [vmem:[#allocation8 + $0x4a0] sm:$0xff]
          %v1815 = vld [vmem:[#allocation8 + $0x4a8] sm:$0xff]
          %v1816 = vld [vmem:[#allocation8 + $0x4b0] sm:$0xff]
          %v1817 = vld [vmem:[#allocation8 + $0x4b8] sm:$0xff]
          %v1818 = vld [vmem:[#allocation8 + $0x4c0] sm:$0xff]
          %v1819 = vld [vmem:[#allocation8 + $0x4c8] sm:$0xff]
          %v1820 = vld [vmem:[#allocation8 + $0x4d0] sm:$0xff]
          %v1821 = vld [vmem:[#allocation8 + $0x4d8] sm:$0xff]
          %v1822 = vld [vmem:[#allocation8 + $0x4e0] sm:$0xff]
          %v1823 = vld [vmem:[#allocation8 + $0x4e8] sm:$0xff]
          %v1824 = vld [vmem:[#allocation8 + $0x4f0] sm:$0xff]
          %v1825 = vld [vmem:[#allocation8 + $0x4f8] sm:$0xff]
          %v1826 = vld [vmem:[#allocation8 + $0x500] sm:$0xff]
          %v1827 = vld [vmem:[#allocation8 + $0x508] sm:$0xff]
          %v1828 = vld [vmem:[#allocation8 + $0x510] sm:$0xff]
          %v1829 = vld [vmem:[#allocation8 + $0x518] sm:$0xff]
          %v1830 = vld [vmem:[#allocation8 + $0x520] sm:$0xff]
          %v1831 = vld [vmem:[#allocation8 + $0x528] sm:$0xff]
          %v1832 = vld [vmem:[#allocation8 + $0x530] sm:$0xff]
          %v1833 = vld [vmem:[#allocation8 + $0x538] sm:$0xff]
          %v1834 = vld [vmem:[#allocation8 + $0x540] sm:$0xff]
          %v1835 = vld [vmem:[#allocation8 + $0x548] sm:$0xff]
          %v1836 = vld [vmem:[#allocation8 + $0x550] sm:$0xff]
          %v1837 = vld [vmem:[#allocation8 + $0x558] sm:$0xff]
          %v1838 = vld [vmem:[#allocation8 + $0x560] sm:$0xff]
          %v1839 = vld [vmem:[#allocation8 + $0x568] sm:$0xff]
          %v1840 = vld [vmem:[#allocation8 + $0x570] sm:$0xff]
          %v1841 = vld [vmem:[#allocation8 + $0x578] sm:$0xff]
          %v1842 = vld [vmem:[#allocation8 + $0x580] sm:$0xff]
          %v1843 = vld [vmem:[#allocation8 + $0x588] sm:$0xff]
          %v1844 = vld [vmem:[#allocation8 + $0x590] sm:$0xff]
          %v1845 = vld [vmem:[#allocation8 + $0x598] sm:$0xff]
          %v1846 = vld [vmem:[#allocation8 + $0x5a0] sm:$0xff]
          %v1847 = vld [vmem:[#allocation8 + $0x5a8] sm:$0xff]
          %v1848 = vld [vmem:[#allocation8 + $0x5b0] sm:$0xff]
          %v1849 = vld [vmem:[#allocation8 + $0x5b8] sm:$0xff]
          %v1850 = vld [vmem:[#allocation8 + $0x5c0] sm:$0xff]
          %v1851 = vld [vmem:[#allocation8 + $0x5c8] sm:$0xff]
          %v1852 = vld [vmem:[#allocation8 + $0x5d0] sm:$0xff]
          %v1853 = vld [vmem:[#allocation8 + $0x5d8] sm:$0xff]
          %v1854 = vld [vmem:[#allocation8 + $0x5e0] sm:$0xff]
          %v1855 = vld [vmem:[#allocation8 + $0x5e8] sm:$0xff]
          %v1856 = vld [vmem:[#allocation8 + $0x5f0] sm:$0xff]
          %v1857 = vld [vmem:[#allocation8 + $0x5f8] sm:$0xff]
          %v1858 = vld [vmem:[#allocation8 + $0x600] sm:$0xff]
          %v1859 = vld [vmem:[#allocation8 + $0x608] sm:$0xff]
          %v1860 = vld [vmem:[#allocation8 + $0x610] sm:$0xff]
          %v1861 = vld [vmem:[#allocation8 + $0x618] sm:$0xff]
          %v1862 = vld [vmem:[#allocation8 + $0x620] sm:$0xff]
          %v1863 = vld [vmem:[#allocation8 + $0x628] sm:$0xff]
          %v1864 = vld [vmem:[#allocation8 + $0x630] sm:$0xff]
          %v1865 = vld [vmem:[#allocation8 + $0x638] sm:$0xff]
          %v1866 = vld [vmem:[#allocation8 + $0x640] sm:$0xff]
          %v1867 = vld [vmem:[#allocation8 + $0x648] sm:$0xff]
          %v1868 = vld [vmem:[#allocation8 + $0x650] sm:$0xff]
          %v1869 = vld [vmem:[#allocation8 + $0x658] sm:$0xff]
          %v1870 = vld [vmem:[#allocation8 + $0x660] sm:$0xff]
          %v1871 = vld [vmem:[#allocation8 + $0x668] sm:$0xff]
          %v1872 = vld [vmem:[#allocation8 + $0x670] sm:$0xff]
          %v1873 = vld [vmem:[#allocation8 + $0x678] sm:$0xff]
          %v1874 = vld [vmem:[#allocation8 + $0x680] sm:$0xff]
          %v1875 = vld [vmem:[#allocation8 + $0x688] sm:$0xff]
          %v1876 = vld [vmem:[#allocation8 + $0x690] sm:$0xff]
          %v1877 = vld [vmem:[#allocation8 + $0x698] sm:$0xff]
          %v1878 = vld [vmem:[#allocation8 + $0x6a0] sm:$0xff]
          %v1879 = vld [vmem:[#allocation8 + $0x6a8] sm:$0xff]
          %v1880 = vld [vmem:[#allocation8 + $0x6b0] sm:$0xff]
          %v1881 = vld [vmem:[#allocation8 + $0x6b8] sm:$0xff]
          %v1882 = vld [vmem:[#allocation8 + $0x6c0] sm:$0xff]
          %v1883 = vld [vmem:[#allocation8 + $0x6c8] sm:$0xff]
          %v1884 = vld [vmem:[#allocation8 + $0x6d0] sm:$0xff]
          %v1885 = vld [vmem:[#allocation8 + $0x6d8] sm:$0xff]
          %v1886 = vld [vmem:[#allocation8 + $0x6e0] sm:$0xff]
          %v1887 = vld [vmem:[#allocation8 + $0x6e8] sm:$0xff]
          %v1888 = vld [vmem:[#allocation8 + $0x6f0] sm:$0xff]
          %v1889 = vld [vmem:[#allocation8 + $0x6f8] sm:$0xff]
          %v1890 = vld [vmem:[#allocation8 + $0x700] sm:$0xff]
          %v1891 = vld [vmem:[#allocation8 + $0x708] sm:$0xff]
          %v1892 = vld [vmem:[#allocation8 + $0x710] sm:$0xff]
          %v1893 = vld [vmem:[#allocation8 + $0x718] sm:$0xff]
          %v1894 = vld [vmem:[#allocation8 + $0x720] sm:$0xff]
          %v1895 = vld [vmem:[#allocation8 + $0x728] sm:$0xff]
          %v1896 = vld [vmem:[#allocation8 + $0x730] sm:$0xff]
          %v1897 = vld [vmem:[#allocation8 + $0x738] sm:$0xff]
          %v1898 = vld [vmem:[#allocation8 + $0x740] sm:$0xff]
          %v1899 = vld [vmem:[#allocation8 + $0x748] sm:$0xff]
          %v1900 = vld [vmem:[#allocation8 + $0x750] sm:$0xff]
          %v1901 = vld [vmem:[#allocation8 + $0x758] sm:$0xff]
          %v1902 = vld [vmem:[#allocation8 + $0x760] sm:$0xff]
          %v1903 = vld [vmem:[#allocation8 + $0x768] sm:$0xff]
          %v1904 = vld [vmem:[#allocation8 + $0x770] sm:$0xff]
          %v1905 = vld [vmem:[#allocation8 + $0x778] sm:$0xff]
          %v1906 = vld [vmem:[#allocation8 + $0x780] sm:$0xff]
          %v1907 = vld [vmem:[#allocation8 + $0x788] sm:$0xff]
          %v1908 = vld [vmem:[#allocation8 + $0x790] sm:$0xff]
          %v1909 = vld [vmem:[#allocation8 + $0x798] sm:$0xff]
          %v1910 = vld [vmem:[#allocation8 + $0x7a0] sm:$0xff]
          %v1911 = vld [vmem:[#allocation8 + $0x7a8] sm:$0xff]
          %v1912 = vld [vmem:[#allocation8 + $0x7b0] sm:$0xff]
          %v1913 = vld [vmem:[#allocation8 + $0x7b8] sm:$0xff]
          %v1914 = vld [vmem:[#allocation8 + $0x7c0] sm:$0xff]
          %v1915 = vld [vmem:[#allocation8 + $0x7c8] sm:$0xff]
          %v1916 = vld [vmem:[#allocation8 + $0x7d0] sm:$0xff]
          %v1917 = vld [vmem:[#allocation8 + $0x7d8] sm:$0xff]
          %v1918 = vld [vmem:[#allocation8 + $0x7e0] sm:$0xff]
          %v1919 = vld [vmem:[#allocation8 + $0x7e8] sm:$0xff]
          %v1920 = vld [vmem:[#allocation8 + $0x7f0] sm:$0xff]
          %v1921 = vld [vmem:[#allocation8 + $0x7f8] sm:$0xff]
          %v1922 = vld [vmem:[%s3] sm:$0x3]
          %v1924 = vlaneseq
          %v1925 = vshrl.u32 %v1924, 7
          %v1926 = vsub.s32 0, %v1925
          %v1927 = vrot.slane %v1665, %v1926
          %v1928 = vlaneseq
          %v1929 = vshrl.u32 %v1928, 7
          %v1930 = vsub.s32 1, %v1929
          %v1931 = vrot.slane %v1665, %v1930
          %v1932 = vlaneseq
          %v1933 = vshrl.u32 %v1932, 7
          %v1934 = vsub.s32 2, %v1933
          %v1935 = vrot.slane %v1665, %v1934
          %v1936 = vlaneseq
          %v1937 = vshrl.u32 %v1936, 7
          %v1938 = vsub.s32 3, %v1937
          %v1939 = vrot.slane %v1665, %v1938
          %v1940 = vlaneseq
          %v1941 = vshrl.u32 %v1940, 7
          %v1942 = vsub.s32 4, %v1941
          %v1943 = vrot.slane %v1665, %v1942
          %v1944 = vlaneseq
          %v1945 = vshrl.u32 %v1944, 7
          %v1946 = vsub.s32 5, %v1945
          %v1947 = vrot.slane %v1665, %v1946
          %v1948 = vlaneseq
          %v1949 = vshrl.u32 %v1948, 7
          %v1950 = vsub.s32 6, %v1949
          %v1951 = vrot.slane %v1665, %v1950
          %v1952 = vlaneseq
          %v1953 = vshrl.u32 %v1952, 7
          %v1954 = vsub.s32 7, %v1953
          %v1955 = vrot.slane %v1665, %v1954
          %v1965 = vlaneseq
          %v1966 = vshrl.u32 %v1965, 7
          %v1967 = vsub.s32 0, %v1966
          %v1968 = vrot.slane %v1922, %v1967
          %v1969 = vlaneseq
          %v1970 = vshrl.u32 %v1969, 7
          %v1971 = vsub.s32 1, %v1970
          %v1972 = vrot.slane %v1922, %v1971
          %1975 = vmatprep.subr.mxu0 %v1697
          %1976 = vmatpush1.msra.mxu0 %v1696
          %1977 = vmatprep.subr.mxu0 %v1695
          %1978 = vmatpush1.msra.mxu0 %v1694
          %1979 = vmatprep.subr.mxu0 %v1693
          %1980 = vmatpush1.msra.mxu0 %v1692
          %1981 = vmatprep.subr.mxu0 %v1691
          %1982 = vmatpush1.msra.mxu0 %v1690
          %1983 = vmatprep.subr.mxu0 %v1689
          %1984 = vmatpush1.msra.mxu0 %v1688
          %1985 = vmatprep.subr.mxu0 %v1687
          %1986 = vmatpush1.msra.mxu0 %v1686
          %1987 = vmatprep.subr.mxu0 %v1685
          %1988 = vmatpush1.msra.mxu0 %v1684
          %1989 = vmatprep.subr.mxu0 %v1683
          %1990 = vmatpush1.msra.mxu0 %v1682
          %1991 = vmatprep.subr.mxu0 %v1681
          %1992 = vmatpush1.msra.mxu0 %v1680
          %1993 = vmatprep.subr.mxu0 %v1679
          %1994 = vmatpush1.msra.mxu0 %v1678
          %1995 = vmatprep.subr.mxu0 %v1677
          %1996 = vmatpush1.msra.mxu0 %v1676
          %1997 = vmatprep.subr.mxu0 %v1675
          %1998 = vmatpush1.msra.mxu0 %v1674
          %1999 = vmatprep.subr.mxu0 %v1673
          %2000 = vmatpush1.msra.mxu0 %v1672
          %2001 = vmatprep.subr.mxu0 %v1671
          %2002 = vmatpush1.msra.mxu0 %v1670
          %2003 = vmatprep.subr.mxu0 %v1669
          %2004 = vmatpush1.msra.mxu0 %v1668
          %2005 = vmatprep.subr.mxu0 %v1667
          %2006 = vmatpush1.msra.mxu0 %v1666
          %2007 = vmatprep.subr.mxu0 %v1729
          %2008 = vmatpush2.msra.mxu0 %v1728
          %2009 = vmatprep.subr.mxu0 %v1727
          %2010 = vmatpush2.msra.mxu0 %v1726
          %2011 = vmatprep.subr.mxu0 %v1725
          %2012 = vmatpush2.msra.mxu0 %v1724
          %2013 = vmatprep.subr.mxu0 %v1723
          %2014 = vmatpush2.msra.mxu0 %v1722
          %2015 = vmatprep.subr.mxu0 %v1721
          %2016 = vmatpush2.msra.mxu0 %v1720
          %2017 = vmatprep.subr.mxu0 %v1719
          %2018 = vmatpush2.msra.mxu0 %v1718
          %2019 = vmatprep.subr.mxu0 %v1717
          %2020 = vmatpush2.msra.mxu0 %v1716
          %2021 = vmatprep.subr.mxu0 %v1715
          %2022 = vmatpush2.msra.mxu0 %v1714
          %2023 = vmatprep.subr.mxu0 %v1713
          %2024 = vmatpush2.msra.mxu0 %v1712
          %2025 = vmatprep.subr.mxu0 %v1711
          %2026 = vmatpush2.msra.mxu0 %v1710
          %2027 = vmatprep.subr.mxu0 %v1709
          %2028 = vmatpush2.msra.mxu0 %v1708
          %2029 = vmatprep.subr.mxu0 %v1707
          %2030 = vmatpush2.msra.mxu0 %v1706
          %2031 = vmatprep.subr.mxu0 %v1705
          %2032 = vmatpush2.msra.mxu0 %v1704
          %2033 = vmatprep.subr.mxu0 %v1703
          %2034 = vmatpush2.msra.mxu0 %v1702
          %2035 = vmatprep.subr.mxu0 %v1701
          %2036 = vmatpush2.msra.mxu0 %v1700
          %2037 = vmatprep.subr.mxu0 %v1699
          %2038 = vmatpush2.msra.mxu0 %v1698
          %2039 = vmatprep.mubr.f32.mxu0 %v1931
          %2040 = vmatmul.mubr.f32.gmra.mxu0 %v1927
          %v2041 = vpop.f32.mrf.mxu0
          %v2042 = vadd.f32 %v1968, %v2041
          %v2043 = vpop.f32.mrf.mxu0
          %v2044 = vadd.f32 %v1972, %v2043
          %2045 = vdwg.mxu0
          %2046 = vmatprep.subr.mxu0 %v1761
          %2047 = vmatpush1.msra.mxu0 %v1760
          %2048 = vmatprep.subr.mxu0 %v1759
          %2049 = vmatpush1.msra.mxu0 %v1758
          %2050 = vmatprep.subr.mxu0 %v1757
          %2051 = vmatpush1.msra.mxu0 %v1756
          %2052 = vmatprep.subr.mxu0 %v1755
          %2053 = vmatpush1.msra.mxu0 %v1754
          %2054 = vmatprep.subr.mxu0 %v1753
          %2055 = vmatpush1.msra.mxu0 %v1752
          %2056 = vmatprep.subr.mxu0 %v1751
          %2057 = vmatpush1.msra.mxu0 %v1750
          %2058 = vmatprep.subr.mxu0 %v1749
          %2059 = vmatpush1.msra.mxu0 %v1748
          %2060 = vmatprep.subr.mxu0 %v1747
          %2061 = vmatpush1.msra.mxu0 %v1746
          %2062 = vmatprep.subr.mxu0 %v1745
          %2063 = vmatpush1.msra.mxu0 %v1744
          %2064 = vmatprep.subr.mxu0 %v1743
          %2065 = vmatpush1.msra.mxu0 %v1742
          %2066 = vmatprep.subr.mxu0 %v1741
          %2067 = vmatpush1.msra.mxu0 %v1740
          %2068 = vmatprep.subr.mxu0 %v1739
          %2069 = vmatpush1.msra.mxu0 %v1738
          %2070 = vmatprep.subr.mxu0 %v1737
          %2071 = vmatpush1.msra.mxu0 %v1736
          %2072 = vmatprep.subr.mxu0 %v1735
          %2073 = vmatpush1.msra.mxu0 %v1734
          %2074 = vmatprep.subr.mxu0 %v1733
          %2075 = vmatpush1.msra.mxu0 %v1732
          %2076 = vmatprep.subr.mxu0 %v1731
          %2077 = vmatpush1.msra.mxu0 %v1730
          %2078 = vmatprep.subr.mxu0 %v1793
          %2079 = vmatpush2.msra.mxu0 %v1792
          %2080 = vmatprep.subr.mxu0 %v1791
          %2081 = vmatpush2.msra.mxu0 %v1790
          %2082 = vmatprep.subr.mxu0 %v1789
          %2083 = vmatpush2.msra.mxu0 %v1788
          %2084 = vmatprep.subr.mxu0 %v1787
          %2085 = vmatpush2.msra.mxu0 %v1786
          %2086 = vmatprep.subr.mxu0 %v1785
          %2087 = vmatpush2.msra.mxu0 %v1784
          %2088 = vmatprep.subr.mxu0 %v1783
          %2089 = vmatpush2.msra.mxu0 %v1782
          %2090 = vmatprep.subr.mxu0 %v1781
          %2091 = vmatpush2.msra.mxu0 %v1780
          %2092 = vmatprep.subr.mxu0 %v1779
          %2093 = vmatpush2.msra.mxu0 %v1778
          %2094 = vmatprep.subr.mxu0 %v1777
          %2095 = vmatpush2.msra.mxu0 %v1776
          %2096 = vmatprep.subr.mxu0 %v1775
          %2097 = vmatpush2.msra.mxu0 %v1774
          %2098 = vmatprep.subr.mxu0 %v1773
          %2099 = vmatpush2.msra.mxu0 %v1772
          %2100 = vmatprep.subr.mxu0 %v1771
          %2101 = vmatpush2.msra.mxu0 %v1770
          %2102 = vmatprep.subr.mxu0 %v1769
          %2103 = vmatpush2.msra.mxu0 %v1768
          %2104 = vmatprep.subr.mxu0 %v1767
          %2105 = vmatpush2.msra.mxu0 %v1766
          %2106 = vmatprep.subr.mxu0 %v1765
          %2107 = vmatpush2.msra.mxu0 %v1764
          %2108 = vmatprep.subr.mxu0 %v1763
          %2109 = vmatpush2.msra.mxu0 %v1762
          %2110 = vmatprep.mubr.f32.mxu0 %v1939
          %2111 = vmatmul.mubr.f32.gmra.mxu0 %v1935
          %v2112 = vpop.f32.mrf.mxu0
          %v2113 = vadd.f32 %v2042, %v2112
          %v2114 = vpop.f32.mrf.mxu0
          %v2115 = vadd.f32 %v2044, %v2114
          %2116 = vdwg.mxu0
          %2117 = vmatprep.subr.mxu0 %v1825
          %2118 = vmatpush1.msra.mxu0 %v1824
          %2119 = vmatprep.subr.mxu0 %v1823
          %2120 = vmatpush1.msra.mxu0 %v1822
          %2121 = vmatprep.subr.mxu0 %v1821
          %2122 = vmatpush1.msra.mxu0 %v1820
          %2123 = vmatprep.subr.mxu0 %v1819
          %2124 = vmatpush1.msra.mxu0 %v1818
          %2125 = vmatprep.subr.mxu0 %v1817
          %2126 = vmatpush1.msra.mxu0 %v1816
          %2127 = vmatprep.subr.mxu0 %v1815
          %2128 = vmatpush1.msra.mxu0 %v1814
          %2129 = vmatprep.subr.mxu0 %v1813
          %2130 = vmatpush1.msra.mxu0 %v1812
          %2131 = vmatprep.subr.mxu0 %v1811
          %2132 = vmatpush1.msra.mxu0 %v1810
          %2133 = vmatprep.subr.mxu0 %v1809
          %2134 = vmatpush1.msra.mxu0 %v1808
          %2135 = vmatprep.subr.mxu0 %v1807
          %2136 = vmatpush1.msra.mxu0 %v1806
          %2137 = vmatprep.subr.mxu0 %v1805
          %2138 = vmatpush1.msra.mxu0 %v1804
          %2139 = vmatprep.subr.mxu0 %v1803
          %2140 = vmatpush1.msra.mxu0 %v1802
          %2141 = vmatprep.subr.mxu0 %v1801
          %2142 = vmatpush1.msra.mxu0 %v1800
          %2143 = vmatprep.subr.mxu0 %v1799
          %2144 = vmatpush1.msra.mxu0 %v1798
          %2145 = vmatprep.subr.mxu0 %v1797
          %2146 = vmatpush1.msra.mxu0 %v1796
          %2147 = vmatprep.subr.mxu0 %v1795
          %2148 = vmatpush1.msra.mxu0 %v1794
          %2149 = vmatprep.subr.mxu0 %v1857
          %2150 = vmatpush2.msra.mxu0 %v1856
          %2151 = vmatprep.subr.mxu0 %v1855
          %2152 = vmatpush2.msra.mxu0 %v1854
          %2153 = vmatprep.subr.mxu0 %v1853
          %2154 = vmatpush2.msra.mxu0 %v1852
          %2155 = vmatprep.subr.mxu0 %v1851
          %2156 = vmatpush2.msra.mxu0 %v1850
          %2157 = vmatprep.subr.mxu0 %v1849
          %2158 = vmatpush2.msra.mxu0 %v1848
          %2159 = vmatprep.subr.mxu0 %v1847
          %2160 = vmatpush2.msra.mxu0 %v1846
          %2161 = vmatprep.subr.mxu0 %v1845
          %2162 = vmatpush2.msra.mxu0 %v1844
          %2163 = vmatprep.subr.mxu0 %v1843
          %2164 = vmatpush2.msra.mxu0 %v1842
          %2165 = vmatprep.subr.mxu0 %v1841
          %2166 = vmatpush2.msra.mxu0 %v1840
          %2167 = vmatprep.subr.mxu0 %v1839
          %2168 = vmatpush2.msra.mxu0 %v1838
          %2169 = vmatprep.subr.mxu0 %v1837
          %2170 = vmatpush2.msra.mxu0 %v1836
          %2171 = vmatprep.subr.mxu0 %v1835
          %2172 = vmatpush2.msra.mxu0 %v1834
          %2173 = vmatprep.subr.mxu0 %v1833
          %2174 = vmatpush2.msra.mxu0 %v1832
          %2175 = vmatprep.subr.mxu0 %v1831
          %2176 = vmatpush2.msra.mxu0 %v1830
          %2177 = vmatprep.subr.mxu0 %v1829
          %2178 = vmatpush2.msra.mxu0 %v1828
          %2179 = vmatprep.subr.mxu0 %v1827
          %2180 = vmatpush2.msra.mxu0 %v1826
          %2181 = vmatprep.mubr.f32.mxu0 %v1947
          %2182 = vmatmul.mubr.f32.gmra.mxu0 %v1943
          %v2183 = vpop.f32.mrf.mxu0
          %v2184 = vadd.f32 %v2113, %v2183
          %v2185 = vpop.f32.mrf.mxu0
          %v2186 = vadd.f32 %v2115, %v2185
          %2187 = vdwg.mxu0
          %2188 = vmatprep.subr.mxu0 %v1889
          %2189 = vmatpush1.msra.mxu0 %v1888
          %2190 = vmatprep.subr.mxu0 %v1887
          %2191 = vmatpush1.msra.mxu0 %v1886
          %2192 = vmatprep.subr.mxu0 %v1885
          %2193 = vmatpush1.msra.mxu0 %v1884
          %2194 = vmatprep.subr.mxu0 %v1883
          %2195 = vmatpush1.msra.mxu0 %v1882
          %2196 = vmatprep.subr.mxu0 %v1881
          %2197 = vmatpush1.msra.mxu0 %v1880
          %2198 = vmatprep.subr.mxu0 %v1879
          %2199 = vmatpush1.msra.mxu0 %v1878
          %2200 = vmatprep.subr.mxu0 %v1877
          %2201 = vmatpush1.msra.mxu0 %v1876
          %2202 = vmatprep.subr.mxu0 %v1875
          %2203 = vmatpush1.msra.mxu0 %v1874
          %2204 = vmatprep.subr.mxu0 %v1873
          %2205 = vmatpush1.msra.mxu0 %v1872
          %2206 = vmatprep.subr.mxu0 %v1871
          %2207 = vmatpush1.msra.mxu0 %v1870
          %2208 = vmatprep.subr.mxu0 %v1869
          %2209 = vmatpush1.msra.mxu0 %v1868
          %2210 = vmatprep.subr.mxu0 %v1867
          %2211 = vmatpush1.msra.mxu0 %v1866
          %2212 = vmatprep.subr.mxu0 %v1865
          %2213 = vmatpush1.msra.mxu0 %v1864
          %2214 = vmatprep.subr.mxu0 %v1863
          %2215 = vmatpush1.msra.mxu0 %v1862
          %2216 = vmatprep.subr.mxu0 %v1861
          %2217 = vmatpush1.msra.mxu0 %v1860
          %2218 = vmatprep.subr.mxu0 %v1859
          %2219 = vmatpush1.msra.mxu0 %v1858
          %2220 = vmatprep.subr.mxu0 %v1921
          %2221 = vmatpush2.msra.mxu0 %v1920
          %2222 = vmatprep.subr.mxu0 %v1919
          %2223 = vmatpush2.msra.mxu0 %v1918
          %2224 = vmatprep.subr.mxu0 %v1917
          %2225 = vmatpush2.msra.mxu0 %v1916
          %2226 = vmatprep.subr.mxu0 %v1915
          %2227 = vmatpush2.msra.mxu0 %v1914
          %2228 = vmatprep.subr.mxu0 %v1913
          %2229 = vmatpush2.msra.mxu0 %v1912
          %2230 = vmatprep.subr.mxu0 %v1911
          %2231 = vmatpush2.msra.mxu0 %v1910
          %2232 = vmatprep.subr.mxu0 %v1909
          %2233 = vmatpush2.msra.mxu0 %v1908
          %2234 = vmatprep.subr.mxu0 %v1907
          %2235 = vmatpush2.msra.mxu0 %v1906
          %2236 = vmatprep.subr.mxu0 %v1905
          %2237 = vmatpush2.msra.mxu0 %v1904
          %2238 = vmatprep.subr.mxu0 %v1903
          %2239 = vmatpush2.msra.mxu0 %v1902
          %2240 = vmatprep.subr.mxu0 %v1901
          %2241 = vmatpush2.msra.mxu0 %v1900
          %2242 = vmatprep.subr.mxu0 %v1899
          %2243 = vmatpush2.msra.mxu0 %v1898
          %2244 = vmatprep.subr.mxu0 %v1897
          %2245 = vmatpush2.msra.mxu0 %v1896
          %2246 = vmatprep.subr.mxu0 %v1895
          %2247 = vmatpush2.msra.mxu0 %v1894
          %2248 = vmatprep.subr.mxu0 %v1893
          %2249 = vmatpush2.msra.mxu0 %v1892
          %2250 = vmatprep.subr.mxu0 %v1891
          %2251 = vmatpush2.msra.mxu0 %v1890
          %2252 = vmatprep.mubr.f32.mxu0 %v1955
          %2253 = vmatmul.mubr.f32.gmra.mxu0 %v1951
          %v2254 = vpop.f32.mrf.mxu0
          %v2255 = vadd.f32 %v2184, %v2254
          %v2256 = vpop.f32.mrf.mxu0
          %v2257 = vadd.f32 %v2186, %v2256
          %2258 = vdwg.mxu0
          %v2259 = vmax.f32 %v2255, 0.0
          %v2260 = vmax.f32 %v2257, 0.0
          %v2263 = vcombine.low %v2259, %v2260
          %v2265 = vunpack.c.l.s4 1966171168
          %v2266 = vunpack.c.0.s8 %v2265
          %v2267 = vlaneseq
          %v2268 = vshrl.u32 %v2267, 7
          %v2269 = vsub.s32 %v2266, %v2268
          %v2270 = vrot.slane %v2263, %v2269
          %v2272 = vunpack.c.l.s4 1966171168
          %v2273 = vunpack.c.0.s8 %v2272
          %v2274 = vlaneseq
          %v2275 = vshrl.u32 %v2274, 7
          %v2276 = vsub.s32 %v2273, %v2275
          %v2277 = vrot.slane %v2270, %v2276
          %v2279 = vlaneseq
          %vm2280 = vcmp.ge.s32.totalorder %v2279, 0
          %vm2281 = vcmp.lt.s32.totalorder %v2279, 256
          %vm2282 = vmand %vm2280, %vm2281
          %s2283 = scalar_lea.vmem [#allocation3], 33
          %2284 = vst.msk [vmem:[%s2283] ss:$8 sm:$0x3] %vm2282, %v2277
          %2285 = vst.msk [vmem:[%s2283] ss:$8 sm:$0x0] %vm2282, %v2277
        $region84: #{tpu_custom_call.1} parent=47 // pred_fallthru
          _
        // Predicated region
        $region85: #{tpu_custom_call.1} parent=47 // pred_check
          %p2286 = pneg %p1647
        $region86: #{tpu_custom_call.1} parent=47 // pred_check_branch
          %2288 = sbr.rel (%p2286) target = $region88
        $region87: #{tpu_custom_call.1} parent=47 // pred_region
          %v2289 = vlaneseq
          %vm2290 = vcmp.ge.s32.totalorder %v2289, 0
          %vm2291 = vcmp.lt.s32.totalorder %v2289, 256
          %vm2292 = vmand %vm2290, %vm2291
          %s2293 = scalar_lea.vmem [#allocation3], 33
          %2294 = vst.msk [vmem:[%s2293] ss:$8 sm:$0x3] %vm2292, 0.0
          %2295 = vst.msk [vmem:[%s2293] ss:$8 sm:$0x0] %vm2292, 0.0
        $region88: #{tpu_custom_call.1} parent=47 // pred_fallthru
          _
        %v2296 = vld [vmem:[#allocation3] sm:$0xff]
        %v2297 = vld [vmem:[#allocation3 + $0x8] sm:$0xff]
        %v2298 = vld [vmem:[#allocation3 + $0x10] sm:$0xff]
        %v2299 = vld [vmem:[#allocation3 + $0x18] sm:$0xff]
        %v2300 = vld [vmem:[#allocation3] sm:$0xfe]
        %v2301 = vld [vmem:[#allocation3 + $0x8] sm:$0xfe]
        %v2302 = vld [vmem:[#allocation3 + $0x20] sm:$0x1]
        %v2303 = vld [vmem:[#allocation3 + $0x28] sm:$0x1]
        %v2304 = vld [vmem:[#allocation3] sm:$0xfc]
        %v2305 = vld [vmem:[#allocation3 + $0x8] sm:$0xfc]
        %v2306 = vld [vmem:[#allocation3 + $0x20] sm:$0x3]
        %v2307 = vld [vmem:[#allocation3 + $0x28] sm:$0x3]
        %vm2314 = vcmask 1046528
        %v2315 = vrot.slane %v2300, 1
        %v2316 = vrot.slane %v2298, 1
        %v2317 = vsel %vm2314, %v2315, %v2316
        %v2318 = vrot.slane %v2301, 1
        %v2319 = vrot.slane %v2299, 1
        %v2320 = vsel %vm2314, %v2318, %v2319
        %v2321 = vrot.slane %v2302, 1
        %v2322 = vsel %vm2314, %v2316, %v2321
        %v2323 = vrot.slane %v2303, 1
        %v2324 = vsel %vm2314, %v2319, %v2323
        %vm2333 = vcmask 1045504
        %v2334 = vrot.slane %v2304, 2
        %v2335 = vrot.slane %v2298, 2
        %v2336 = vsel %vm2333, %v2334, %v2335
        %v2337 = vrot.slane %v2305, 2
        %v2338 = vrot.slane %v2299, 2
        %v2339 = vsel %vm2333, %v2337, %v2338
        %v2340 = vrot.slane %v2306, 2
        %v2341 = vsel %vm2333, %v2335, %v2340
        %v2342 = vrot.slane %v2307, 2
        %v2343 = vsel %vm2333, %v2338, %v2342
        %v2348 = vld [vmem:[#allocation10] sm:$0xff]
        %v2349 = vld [vmem:[#allocation10 + $0x8] sm:$0xff]
        %v2350 = vld [vmem:[#allocation10 + $0x10] sm:$0xff]
        %v2351 = vld [vmem:[#allocation10 + $0x18] sm:$0xff]
        %v2352 = vld [vmem:[#allocation10 + $0x20] sm:$0xff]
        %v2353 = vld [vmem:[#allocation10 + $0x28] sm:$0xff]
        %v2354 = vld [vmem:[#allocation10 + $0x30] sm:$0xff]
        %v2355 = vld [vmem:[#allocation10 + $0x38] sm:$0xff]
        %v2356 = vld [vmem:[#allocation10 + $0x40] sm:$0xff]
        %v2357 = vld [vmem:[#allocation10 + $0x48] sm:$0xff]
        %v2358 = vld [vmem:[#allocation10 + $0x50] sm:$0xff]
        %v2359 = vld [vmem:[#allocation10 + $0x58] sm:$0xff]
        %v2360 = vld [vmem:[#allocation10 + $0x60] sm:$0xff]
        %v2361 = vld [vmem:[#allocation10 + $0x68] sm:$0xff]
        %v2362 = vld [vmem:[#allocation10 + $0x70] sm:$0xff]
        %v2363 = vld [vmem:[#allocation10 + $0x78] sm:$0xff]
        %v2364 = vld [vmem:[#allocation10 + $0x80] sm:$0xff]
        %v2365 = vld [vmem:[#allocation10 + $0x88] sm:$0xff]
        %v2366 = vld [vmem:[#allocation10 + $0x90] sm:$0xff]
        %v2367 = vld [vmem:[#allocation10 + $0x98] sm:$0xff]
        %v2368 = vld [vmem:[#allocation10 + $0xa0] sm:$0xff]
        %v2369 = vld [vmem:[#allocation10 + $0xa8] sm:$0xff]
        %v2370 = vld [vmem:[#allocation10 + $0xb0] sm:$0xff]
        %v2371 = vld [vmem:[#allocation10 + $0xb8] sm:$0xff]
        %v2372 = vld [vmem:[#allocation10 + $0xc0] sm:$0xff]
        %v2373 = vld [vmem:[#allocation10 + $0xc8] sm:$0xff]
        %v2374 = vld [vmem:[#allocation10 + $0xd0] sm:$0xff]
        %v2375 = vld [vmem:[#allocation10 + $0xd8] sm:$0xff]
        %v2376 = vld [vmem:[#allocation10 + $0xe0] sm:$0xff]
        %v2377 = vld [vmem:[#allocation10 + $0xe8] sm:$0xff]
        %v2378 = vld [vmem:[#allocation10 + $0xf0] sm:$0xff]
        %v2379 = vld [vmem:[#allocation10 + $0xf8] sm:$0xff]
        %v2380 = vld [vmem:[#allocation10 + $0x100] sm:$0xff]
        %v2381 = vld [vmem:[#allocation10 + $0x108] sm:$0xff]
        %v2382 = vld [vmem:[#allocation10 + $0x110] sm:$0xff]
        %v2383 = vld [vmem:[#allocation10 + $0x118] sm:$0xff]
        %v2384 = vld [vmem:[#allocation10 + $0x120] sm:$0xff]
        %v2385 = vld [vmem:[#allocation10 + $0x128] sm:$0xff]
        %v2386 = vld [vmem:[#allocation10 + $0x130] sm:$0xff]
        %v2387 = vld [vmem:[#allocation10 + $0x138] sm:$0xff]
        %v2388 = vld [vmem:[#allocation10 + $0x140] sm:$0xff]
        %v2389 = vld [vmem:[#allocation10 + $0x148] sm:$0xff]
        %v2390 = vld [vmem:[#allocation10 + $0x150] sm:$0xff]
        %v2391 = vld [vmem:[#allocation10 + $0x158] sm:$0xff]
        %v2392 = vld [vmem:[#allocation10 + $0x160] sm:$0xff]
        %v2393 = vld [vmem:[#allocation10 + $0x168] sm:$0xff]
        %v2394 = vld [vmem:[#allocation10 + $0x170] sm:$0xff]
        %v2395 = vld [vmem:[#allocation10 + $0x178] sm:$0xff]
        %v2396 = vld [vmem:[#allocation10 + $0x180] sm:$0xff]
        %v2397 = vld [vmem:[#allocation10 + $0x188] sm:$0xff]
        %v2398 = vld [vmem:[#allocation10 + $0x190] sm:$0xff]
        %v2399 = vld [vmem:[#allocation10 + $0x198] sm:$0xff]
        %v2400 = vld [vmem:[#allocation10 + $0x1a0] sm:$0xff]
        %v2401 = vld [vmem:[#allocation10 + $0x1a8] sm:$0xff]
        %v2402 = vld [vmem:[#allocation10 + $0x1b0] sm:$0xff]
        %v2403 = vld [vmem:[#allocation10 + $0x1b8] sm:$0xff]
        %v2404 = vld [vmem:[#allocation10 + $0x1c0] sm:$0xff]
        %v2405 = vld [vmem:[#allocation10 + $0x1c8] sm:$0xff]
        %v2406 = vld [vmem:[#allocation10 + $0x1d0] sm:$0xff]
        %v2407 = vld [vmem:[#allocation10 + $0x1d8] sm:$0xff]
        %v2408 = vld [vmem:[#allocation10 + $0x1e0] sm:$0xff]
        %v2409 = vld [vmem:[#allocation10 + $0x1e8] sm:$0xff]
        %v2410 = vld [vmem:[#allocation10 + $0x1f0] sm:$0xff]
        %v2411 = vld [vmem:[#allocation10 + $0x1f8] sm:$0xff]
        %v2412 = vld [vmem:[#allocation10 + $0x200] sm:$0xff]
        %v2413 = vld [vmem:[#allocation10 + $0x208] sm:$0xff]
        %v2414 = vld [vmem:[#allocation10 + $0x210] sm:$0xff]
        %v2415 = vld [vmem:[#allocation10 + $0x218] sm:$0xff]
        %v2416 = vld [vmem:[#allocation10 + $0x220] sm:$0xff]
        %v2417 = vld [vmem:[#allocation10 + $0x228] sm:$0xff]
        %v2418 = vld [vmem:[#allocation10 + $0x230] sm:$0xff]
        %v2419 = vld [vmem:[#allocation10 + $0x238] sm:$0xff]
        %v2420 = vld [vmem:[#allocation10 + $0x240] sm:$0xff]
        %v2421 = vld [vmem:[#allocation10 + $0x248] sm:$0xff]
        %v2422 = vld [vmem:[#allocation10 + $0x250] sm:$0xff]
        %v2423 = vld [vmem:[#allocation10 + $0x258] sm:$0xff]
        %v2424 = vld [vmem:[#allocation10 + $0x260] sm:$0xff]
        %v2425 = vld [vmem:[#allocation10 + $0x268] sm:$0xff]
        %v2426 = vld [vmem:[#allocation10 + $0x270] sm:$0xff]
        %v2427 = vld [vmem:[#allocation10 + $0x278] sm:$0xff]
        %v2428 = vld [vmem:[#allocation10 + $0x280] sm:$0xff]
        %v2429 = vld [vmem:[#allocation10 + $0x288] sm:$0xff]
        %v2430 = vld [vmem:[#allocation10 + $0x290] sm:$0xff]
        %v2431 = vld [vmem:[#allocation10 + $0x298] sm:$0xff]
        %v2432 = vld [vmem:[#allocation10 + $0x2a0] sm:$0xff]
        %v2433 = vld [vmem:[#allocation10 + $0x2a8] sm:$0xff]
        %v2434 = vld [vmem:[#allocation10 + $0x2b0] sm:$0xff]
        %v2435 = vld [vmem:[#allocation10 + $0x2b8] sm:$0xff]
        %v2436 = vld [vmem:[#allocation10 + $0x2c0] sm:$0xff]
        %v2437 = vld [vmem:[#allocation10 + $0x2c8] sm:$0xff]
        %v2438 = vld [vmem:[#allocation10 + $0x2d0] sm:$0xff]
        %v2439 = vld [vmem:[#allocation10 + $0x2d8] sm:$0xff]
        %v2440 = vld [vmem:[#allocation10 + $0x2e0] sm:$0xff]
        %v2441 = vld [vmem:[#allocation10 + $0x2e8] sm:$0xff]
        %v2442 = vld [vmem:[#allocation10 + $0x2f0] sm:$0xff]
        %v2443 = vld [vmem:[#allocation10 + $0x2f8] sm:$0xff]
        %v2444 = vld [vmem:[#allocation10 + $0x300] sm:$0xff]
        %v2445 = vld [vmem:[#allocation10 + $0x308] sm:$0xff]
        %v2446 = vld [vmem:[#allocation10 + $0x310] sm:$0xff]
        %v2447 = vld [vmem:[#allocation10 + $0x318] sm:$0xff]
        %v2448 = vld [vmem:[#allocation10 + $0x320] sm:$0xff]
        %v2449 = vld [vmem:[#allocation10 + $0x328] sm:$0xff]
        %v2450 = vld [vmem:[#allocation10 + $0x330] sm:$0xff]
        %v2451 = vld [vmem:[#allocation10 + $0x338] sm:$0xff]
        %v2452 = vld [vmem:[#allocation10 + $0x340] sm:$0xff]
        %v2453 = vld [vmem:[#allocation10 + $0x348] sm:$0xff]
        %v2454 = vld [vmem:[#allocation10 + $0x350] sm:$0xff]
        %v2455 = vld [vmem:[#allocation10 + $0x358] sm:$0xff]
        %v2456 = vld [vmem:[#allocation10 + $0x360] sm:$0xff]
        %v2457 = vld [vmem:[#allocation10 + $0x368] sm:$0xff]
        %v2458 = vld [vmem:[#allocation10 + $0x370] sm:$0xff]
        %v2459 = vld [vmem:[#allocation10 + $0x378] sm:$0xff]
        %v2460 = vld [vmem:[#allocation10 + $0x380] sm:$0xff]
        %v2461 = vld [vmem:[#allocation10 + $0x388] sm:$0xff]
        %v2462 = vld [vmem:[#allocation10 + $0x390] sm:$0xff]
        %v2463 = vld [vmem:[#allocation10 + $0x398] sm:$0xff]
        %v2464 = vld [vmem:[#allocation10 + $0x3a0] sm:$0xff]
        %v2465 = vld [vmem:[#allocation10 + $0x3a8] sm:$0xff]
        %v2466 = vld [vmem:[#allocation10 + $0x3b0] sm:$0xff]
        %v2467 = vld [vmem:[#allocation10 + $0x3b8] sm:$0xff]
        %v2468 = vld [vmem:[#allocation10 + $0x3c0] sm:$0xff]
        %v2469 = vld [vmem:[#allocation10 + $0x3c8] sm:$0xff]
        %v2470 = vld [vmem:[#allocation10 + $0x3d0] sm:$0xff]
        %v2471 = vld [vmem:[#allocation10 + $0x3d8] sm:$0xff]
        %v2472 = vld [vmem:[#allocation10 + $0x3e0] sm:$0xff]
        %v2473 = vld [vmem:[#allocation10 + $0x3e8] sm:$0xff]
        %v2474 = vld [vmem:[#allocation10 + $0x3f0] sm:$0xff]
        %v2475 = vld [vmem:[#allocation10 + $0x3f8] sm:$0xff]
        %v2476 = vld [vmem:[#allocation10 + $0x400] sm:$0xff]
        %v2477 = vld [vmem:[#allocation10 + $0x408] sm:$0xff]
        %v2478 = vld [vmem:[#allocation10 + $0x410] sm:$0xff]
        %v2479 = vld [vmem:[#allocation10 + $0x418] sm:$0xff]
        %v2480 = vld [vmem:[#allocation10 + $0x420] sm:$0xff]
        %v2481 = vld [vmem:[#allocation10 + $0x428] sm:$0xff]
        %v2482 = vld [vmem:[#allocation10 + $0x430] sm:$0xff]
        %v2483 = vld [vmem:[#allocation10 + $0x438] sm:$0xff]
        %v2484 = vld [vmem:[#allocation10 + $0x440] sm:$0xff]
        %v2485 = vld [vmem:[#allocation10 + $0x448] sm:$0xff]
        %v2486 = vld [vmem:[#allocation10 + $0x450] sm:$0xff]
        %v2487 = vld [vmem:[#allocation10 + $0x458] sm:$0xff]
        %v2488 = vld [vmem:[#allocation10 + $0x460] sm:$0xff]
        %v2489 = vld [vmem:[#allocation10 + $0x468] sm:$0xff]
        %v2490 = vld [vmem:[#allocation10 + $0x470] sm:$0xff]
        %v2491 = vld [vmem:[#allocation10 + $0x478] sm:$0xff]
        %v2492 = vld [vmem:[#allocation10 + $0x480] sm:$0xff]
        %v2493 = vld [vmem:[#allocation10 + $0x488] sm:$0xff]
        %v2494 = vld [vmem:[#allocation10 + $0x490] sm:$0xff]
        %v2495 = vld [vmem:[#allocation10 + $0x498] sm:$0xff]
        %v2496 = vld [vmem:[#allocation10 + $0x4a0] sm:$0xff]
        %v2497 = vld [vmem:[#allocation10 + $0x4a8] sm:$0xff]
        %v2498 = vld [vmem:[#allocation10 + $0x4b0] sm:$0xff]
        %v2499 = vld [vmem:[#allocation10 + $0x4b8] sm:$0xff]
        %v2500 = vld [vmem:[#allocation10 + $0x4c0] sm:$0xff]
        %v2501 = vld [vmem:[#allocation10 + $0x4c8] sm:$0xff]
        %v2502 = vld [vmem:[#allocation10 + $0x4d0] sm:$0xff]
        %v2503 = vld [vmem:[#allocation10 + $0x4d8] sm:$0xff]
        %v2504 = vld [vmem:[#allocation10 + $0x4e0] sm:$0xff]
        %v2505 = vld [vmem:[#allocation10 + $0x4e8] sm:$0xff]
        %v2506 = vld [vmem:[#allocation10 + $0x4f0] sm:$0xff]
        %v2507 = vld [vmem:[#allocation10 + $0x4f8] sm:$0xff]
        %v2508 = vld [vmem:[#allocation10 + $0x500] sm:$0xff]
        %v2509 = vld [vmem:[#allocation10 + $0x508] sm:$0xff]
        %v2510 = vld [vmem:[#allocation10 + $0x510] sm:$0xff]
        %v2511 = vld [vmem:[#allocation10 + $0x518] sm:$0xff]
        %v2512 = vld [vmem:[#allocation10 + $0x520] sm:$0xff]
        %v2513 = vld [vmem:[#allocation10 + $0x528] sm:$0xff]
        %v2514 = vld [vmem:[#allocation10 + $0x530] sm:$0xff]
        %v2515 = vld [vmem:[#allocation10 + $0x538] sm:$0xff]
        %v2516 = vld [vmem:[#allocation10 + $0x540] sm:$0xff]
        %v2517 = vld [vmem:[#allocation10 + $0x548] sm:$0xff]
        %v2518 = vld [vmem:[#allocation10 + $0x550] sm:$0xff]
        %v2519 = vld [vmem:[#allocation10 + $0x558] sm:$0xff]
        %v2520 = vld [vmem:[#allocation10 + $0x560] sm:$0xff]
        %v2521 = vld [vmem:[#allocation10 + $0x568] sm:$0xff]
        %v2522 = vld [vmem:[#allocation10 + $0x570] sm:$0xff]
        %v2523 = vld [vmem:[#allocation10 + $0x578] sm:$0xff]
        %v2524 = vld [vmem:[#allocation10 + $0x580] sm:$0xff]
        %v2525 = vld [vmem:[#allocation10 + $0x588] sm:$0xff]
        %v2526 = vld [vmem:[#allocation10 + $0x590] sm:$0xff]
        %v2527 = vld [vmem:[#allocation10 + $0x598] sm:$0xff]
        %v2528 = vld [vmem:[#allocation10 + $0x5a0] sm:$0xff]
        %v2529 = vld [vmem:[#allocation10 + $0x5a8] sm:$0xff]
        %v2530 = vld [vmem:[#allocation10 + $0x5b0] sm:$0xff]
        %v2531 = vld [vmem:[#allocation10 + $0x5b8] sm:$0xff]
        %v2532 = vld [vmem:[#allocation10 + $0x5c0] sm:$0xff]
        %v2533 = vld [vmem:[#allocation10 + $0x5c8] sm:$0xff]
        %v2534 = vld [vmem:[#allocation10 + $0x5d0] sm:$0xff]
        %v2535 = vld [vmem:[#allocation10 + $0x5d8] sm:$0xff]
        %v2536 = vld [vmem:[#allocation10 + $0x5e0] sm:$0xff]
        %v2537 = vld [vmem:[#allocation10 + $0x5e8] sm:$0xff]
        %v2538 = vld [vmem:[#allocation10 + $0x5f0] sm:$0xff]
        %v2539 = vld [vmem:[#allocation10 + $0x5f8] sm:$0xff]
        %v2540 = vld [vmem:[%s5] sm:$0x3]
        %v2542 = vlaneseq
        %v2543 = vshrl.u32 %v2542, 7
        %v2544 = vsub.s32 0, %v2543
        %v2545 = vrot.slane %v2540, %v2544
        %v2546 = vlaneseq
        %v2547 = vshrl.u32 %v2546, 7
        %v2548 = vsub.s32 1, %v2547
        %v2549 = vrot.slane %v2540, %v2548
        %2552 = vmatprep.subr.mxu0 %v2379
        %2553 = vmatpush1.msra.mxu0 %v2378
        %2554 = vmatprep.subr.mxu0 %v2377
        %2555 = vmatpush1.msra.mxu0 %v2376
        %2556 = vmatprep.subr.mxu0 %v2375
        %2557 = vmatpush1.msra.mxu0 %v2374
        %2558 = vmatprep.subr.mxu0 %v2373
        %2559 = vmatpush1.msra.mxu0 %v2372
        %2560 = vmatprep.subr.mxu0 %v2371
        %2561 = vmatpush1.msra.mxu0 %v2370
        %2562 = vmatprep.subr.mxu0 %v2369
        %2563 = vmatpush1.msra.mxu0 %v2368
        %2564 = vmatprep.subr.mxu0 %v2367
        %2565 = vmatpush1.msra.mxu0 %v2366
        %2566 = vmatprep.subr.mxu0 %v2365
        %2567 = vmatpush1.msra.mxu0 %v2364
        %2568 = vmatprep.subr.mxu0 %v2363
        %2569 = vmatpush1.msra.mxu0 %v2362
        %2570 = vmatprep.subr.mxu0 %v2361
        %2571 = vmatpush1.msra.mxu0 %v2360
        %2572 = vmatprep.subr.mxu0 %v2359
        %2573 = vmatpush1.msra.mxu0 %v2358
        %2574 = vmatprep.subr.mxu0 %v2357
        %2575 = vmatpush1.msra.mxu0 %v2356
        %2576 = vmatprep.subr.mxu0 %v2355
        %2577 = vmatpush1.msra.mxu0 %v2354
        %2578 = vmatprep.subr.mxu0 %v2353
        %2579 = vmatpush1.msra.mxu0 %v2352
        %2580 = vmatprep.subr.mxu0 %v2351
        %2581 = vmatpush1.msra.mxu0 %v2350
        %2582 = vmatprep.subr.mxu0 %v2349
        %2583 = vmatpush1.msra.mxu0 %v2348
        %2584 = vmatprep.subr.mxu0 %v2411
        %2585 = vmatpush2.msra.mxu0 %v2410
        %2586 = vmatprep.subr.mxu0 %v2409
        %2587 = vmatpush2.msra.mxu0 %v2408
        %2588 = vmatprep.subr.mxu0 %v2407
        %2589 = vmatpush2.msra.mxu0 %v2406
        %2590 = vmatprep.subr.mxu0 %v2405
        %2591 = vmatpush2.msra.mxu0 %v2404
        %2592 = vmatprep.subr.mxu0 %v2403
        %2593 = vmatpush2.msra.mxu0 %v2402
        %2594 = vmatprep.subr.mxu0 %v2401
        %2595 = vmatpush2.msra.mxu0 %v2400
        %2596 = vmatprep.subr.mxu0 %v2399
        %2597 = vmatpush2.msra.mxu0 %v2398
        %2598 = vmatprep.subr.mxu0 %v2397
        %2599 = vmatpush2.msra.mxu0 %v2396
        %2600 = vmatprep.subr.mxu0 %v2395
        %2601 = vmatpush2.msra.mxu0 %v2394
        %2602 = vmatprep.subr.mxu0 %v2393
        %2603 = vmatpush2.msra.mxu0 %v2392
        %2604 = vmatprep.subr.mxu0 %v2391
        %2605 = vmatpush2.msra.mxu0 %v2390
        %2606 = vmatprep.subr.mxu0 %v2389
        %2607 = vmatpush2.msra.mxu0 %v2388
        %2608 = vmatprep.subr.mxu0 %v2387
        %2609 = vmatpush2.msra.mxu0 %v2386
        %2610 = vmatprep.subr.mxu0 %v2385
        %2611 = vmatpush2.msra.mxu0 %v2384
        %2612 = vmatprep.subr.mxu0 %v2383
        %2613 = vmatpush2.msra.mxu0 %v2382
        %2614 = vmatprep.subr.mxu0 %v2381
        %2615 = vmatpush2.msra.mxu0 %v2380
        %2616 = vmatprep.mubr.f32.mxu0 %v2297
        %2617 = vmatmul.mubr.f32.gmra.mxu0 %v2296
        %v2618 = vpop.f32.mrf.mxu0
        %v2619 = vadd.f32 %v2545, %v2618
        %v2620 = vpop.f32.mrf.mxu0
        %v2621 = vadd.f32 %v2549, %v2620
        %2622 = vmatprep.mubr.f32.mxu0 %v2299
        %2623 = vmatmul.mubr.f32.gmra.mxu0 %v2298
        %v2624 = vpop.f32.mrf.mxu0
        %v2625 = vadd.f32 %v2545, %v2624
        %v2626 = vpop.f32.mrf.mxu0
        %v2627 = vadd.f32 %v2549, %v2626
        %2628 = vdwg.mxu0
        %2629 = vmatprep.subr.mxu0 %v2443
        %2630 = vmatpush1.msra.mxu0 %v2442
        %2631 = vmatprep.subr.mxu0 %v2441
        %2632 = vmatpush1.msra.mxu0 %v2440
        %2633 = vmatprep.subr.mxu0 %v2439
        %2634 = vmatpush1.msra.mxu0 %v2438
        %2635 = vmatprep.subr.mxu0 %v2437
        %2636 = vmatpush1.msra.mxu0 %v2436
        %2637 = vmatprep.subr.mxu0 %v2435
        %2638 = vmatpush1.msra.mxu0 %v2434
        %2639 = vmatprep.subr.mxu0 %v2433
        %2640 = vmatpush1.msra.mxu0 %v2432
        %2641 = vmatprep.subr.mxu0 %v2431
        %2642 = vmatpush1.msra.mxu0 %v2430
        %2643 = vmatprep.subr.mxu0 %v2429
        %2644 = vmatpush1.msra.mxu0 %v2428
        %2645 = vmatprep.subr.mxu0 %v2427
        %2646 = vmatpush1.msra.mxu0 %v2426
        %2647 = vmatprep.subr.mxu0 %v2425
        %2648 = vmatpush1.msra.mxu0 %v2424
        %2649 = vmatprep.subr.mxu0 %v2423
        %2650 = vmatpush1.msra.mxu0 %v2422
        %2651 = vmatprep.subr.mxu0 %v2421
        %2652 = vmatpush1.msra.mxu0 %v2420
        %2653 = vmatprep.subr.mxu0 %v2419
        %2654 = vmatpush1.msra.mxu0 %v2418
        %2655 = vmatprep.subr.mxu0 %v2417
        %2656 = vmatpush1.msra.mxu0 %v2416
        %2657 = vmatprep.subr.mxu0 %v2415
        %2658 = vmatpush1.msra.mxu0 %v2414
        %2659 = vmatprep.subr.mxu0 %v2413
        %2660 = vmatpush1.msra.mxu0 %v2412
        %2661 = vmatprep.subr.mxu0 %v2475
        %2662 = vmatpush2.msra.mxu0 %v2474
        %2663 = vmatprep.subr.mxu0 %v2473
        %2664 = vmatpush2.msra.mxu0 %v2472
        %2665 = vmatprep.subr.mxu0 %v2471
        %2666 = vmatpush2.msra.mxu0 %v2470
        %2667 = vmatprep.subr.mxu0 %v2469
        %2668 = vmatpush2.msra.mxu0 %v2468
        %2669 = vmatprep.subr.mxu0 %v2467
        %2670 = vmatpush2.msra.mxu0 %v2466
        %2671 = vmatprep.subr.mxu0 %v2465
        %2672 = vmatpush2.msra.mxu0 %v2464
        %2673 = vmatprep.subr.mxu0 %v2463
        %2674 = vmatpush2.msra.mxu0 %v2462
        %2675 = vmatprep.subr.mxu0 %v2461
        %2676 = vmatpush2.msra.mxu0 %v2460
        %2677 = vmatprep.subr.mxu0 %v2459
        %2678 = vmatpush2.msra.mxu0 %v2458
        %2679 = vmatprep.subr.mxu0 %v2457
        %2680 = vmatpush2.msra.mxu0 %v2456
        %2681 = vmatprep.subr.mxu0 %v2455
        %2682 = vmatpush2.msra.mxu0 %v2454
        %2683 = vmatprep.subr.mxu0 %v2453
        %2684 = vmatpush2.msra.mxu0 %v2452
        %2685 = vmatprep.subr.mxu0 %v2451
        %2686 = vmatpush2.msra.mxu0 %v2450
        %2687 = vmatprep.subr.mxu0 %v2449
        %2688 = vmatpush2.msra.mxu0 %v2448
        %2689 = vmatprep.subr.mxu0 %v2447
        %2690 = vmatpush2.msra.mxu0 %v2446
        %2691 = vmatprep.subr.mxu0 %v2445
        %2692 = vmatpush2.msra.mxu0 %v2444
        %2693 = vmatprep.mubr.f32.mxu0 %v2320
        %2694 = vmatmul.mubr.f32.gmra.mxu0 %v2317
        %v2695 = vpop.f32.mrf.mxu0
        %v2696 = vadd.f32 %v2619, %v2695
        %v2697 = vpop.f32.mrf.mxu0
        %v2698 = vadd.f32 %v2621, %v2697
        %2699 = vmatprep.mubr.f32.mxu0 %v2324
        %2700 = vmatmul.mubr.f32.gmra.mxu0 %v2322
        %v2701 = vpop.f32.mrf.mxu0
        %v2702 = vadd.f32 %v2625, %v2701
        %v2703 = vpop.f32.mrf.mxu0
        %v2704 = vadd.f32 %v2627, %v2703
        %2705 = vdwg.mxu0
        %2706 = vmatprep.subr.mxu0 %v2507
        %2707 = vmatpush1.msra.mxu0 %v2506
        %2708 = vmatprep.subr.mxu0 %v2505
        %2709 = vmatpush1.msra.mxu0 %v2504
        %2710 = vmatprep.subr.mxu0 %v2503
        %2711 = vmatpush1.msra.mxu0 %v2502
        %2712 = vmatprep.subr.mxu0 %v2501
        %2713 = vmatpush1.msra.mxu0 %v2500
        %2714 = vmatprep.subr.mxu0 %v2499
        %2715 = vmatpush1.msra.mxu0 %v2498
        %2716 = vmatprep.subr.mxu0 %v2497
        %2717 = vmatpush1.msra.mxu0 %v2496
        %2718 = vmatprep.subr.mxu0 %v2495
        %2719 = vmatpush1.msra.mxu0 %v2494
        %2720 = vmatprep.subr.mxu0 %v2493
        %2721 = vmatpush1.msra.mxu0 %v2492
        %2722 = vmatprep.subr.mxu0 %v2491
        %2723 = vmatpush1.msra.mxu0 %v2490
        %2724 = vmatprep.subr.mxu0 %v2489
        %2725 = vmatpush1.msra.mxu0 %v2488
        %2726 = vmatprep.subr.mxu0 %v2487
        %2727 = vmatpush1.msra.mxu0 %v2486
        %2728 = vmatprep.subr.mxu0 %v2485
        %2729 = vmatpush1.msra.mxu0 %v2484
        %2730 = vmatprep.subr.mxu0 %v2483
        %2731 = vmatpush1.msra.mxu0 %v2482
        %2732 = vmatprep.subr.mxu0 %v2481
        %2733 = vmatpush1.msra.mxu0 %v2480
        %2734 = vmatprep.subr.mxu0 %v2479
        %2735 = vmatpush1.msra.mxu0 %v2478
        %2736 = vmatprep.subr.mxu0 %v2477
        %2737 = vmatpush1.msra.mxu0 %v2476
        %2738 = vmatprep.subr.mxu0 %v2539
        %2739 = vmatpush2.msra.mxu0 %v2538
        %2740 = vmatprep.subr.mxu0 %v2537
        %2741 = vmatpush2.msra.mxu0 %v2536
        %2742 = vmatprep.subr.mxu0 %v2535
        %2743 = vmatpush2.msra.mxu0 %v2534
        %2744 = vmatprep.subr.mxu0 %v2533
        %2745 = vmatpush2.msra.mxu0 %v2532
        %2746 = vmatprep.subr.mxu0 %v2531
        %2747 = vmatpush2.msra.mxu0 %v2530
        %2748 = vmatprep.subr.mxu0 %v2529
        %2749 = vmatpush2.msra.mxu0 %v2528
        %2750 = vmatprep.subr.mxu0 %v2527
        %2751 = vmatpush2.msra.mxu0 %v2526
        %2752 = vmatprep.subr.mxu0 %v2525
        %2753 = vmatpush2.msra.mxu0 %v2524
        %2754 = vmatprep.subr.mxu0 %v2523
        %2755 = vmatpush2.msra.mxu0 %v2522
        %2756 = vmatprep.subr.mxu0 %v2521
        %2757 = vmatpush2.msra.mxu0 %v2520
        %2758 = vmatprep.subr.mxu0 %v2519
        %2759 = vmatpush2.msra.mxu0 %v2518
        %2760 = vmatprep.subr.mxu0 %v2517
        %2761 = vmatpush2.msra.mxu0 %v2516
        %2762 = vmatprep.subr.mxu0 %v2515
        %2763 = vmatpush2.msra.mxu0 %v2514
        %2764 = vmatprep.subr.mxu0 %v2513
        %2765 = vmatpush2.msra.mxu0 %v2512
        %2766 = vmatprep.subr.mxu0 %v2511
        %2767 = vmatpush2.msra.mxu0 %v2510
        %2768 = vmatprep.subr.mxu0 %v2509
        %2769 = vmatpush2.msra.mxu0 %v2508
        %2770 = vmatprep.mubr.f32.mxu0 %v2339
        %2771 = vmatmul.mubr.f32.gmra.mxu0 %v2336
        %v2772 = vpop.f32.mrf.mxu0
        %v2773 = vadd.f32 %v2696, %v2772
        %v2774 = vpop.f32.mrf.mxu0
        %v2775 = vadd.f32 %v2698, %v2774
        %2776 = vmatprep.mubr.f32.mxu0 %v2343
        %2777 = vmatmul.mubr.f32.gmra.mxu0 %v2341
        %v2778 = vpop.f32.mrf.mxu0
        %v2779 = vadd.f32 %v2702, %v2778
        %v2780 = vpop.f32.mrf.mxu0
        %v2781 = vadd.f32 %v2704, %v2780
        %2782 = vdwg.mxu0
        %v2783 = vmax.f32 %v2773, 0.0
        %v2784 = vmax.f32 %v2775, 0.0
        %v2785 = vmax.f32 %v2779, 0.0
        %v2786 = vmax.f32 %v2781, 0.0
        %v2787 = vld [vmem:[#allocation11] sm:$0xff]
        %v2788 = vld [vmem:[#allocation11 + $0x8] sm:$0xff]
        %v2789 = vld [vmem:[#allocation11 + $0x10] sm:$0xff]
        %v2790 = vld [vmem:[#allocation11 + $0x18] sm:$0xff]
        %v2791 = vld [vmem:[#allocation11 + $0x20] sm:$0xff]
        %v2792 = vld [vmem:[#allocation11 + $0x28] sm:$0xff]
        %v2793 = vld [vmem:[#allocation11 + $0x30] sm:$0xff]
        %v2794 = vld [vmem:[#allocation11 + $0x38] sm:$0xff]
        %v2795 = vld [vmem:[#allocation11 + $0x40] sm:$0xff]
        %v2796 = vld [vmem:[#allocation11 + $0x48] sm:$0xff]
        %v2797 = vld [vmem:[#allocation11 + $0x50] sm:$0xff]
        %v2798 = vld [vmem:[#allocation11 + $0x58] sm:$0xff]
        %v2799 = vld [vmem:[#allocation11 + $0x60] sm:$0xff]
        %v2800 = vld [vmem:[#allocation11 + $0x68] sm:$0xff]
        %v2801 = vld [vmem:[#allocation11 + $0x70] sm:$0xff]
        %v2802 = vld [vmem:[#allocation11 + $0x78] sm:$0xff]
        %v2803 = vld [vmem:[#allocation11 + $0x80] sm:$0xff]
        %v2804 = vld [vmem:[#allocation11 + $0x88] sm:$0xff]
        %v2805 = vld [vmem:[#allocation11 + $0x90] sm:$0xff]
        %v2806 = vld [vmem:[#allocation11 + $0x98] sm:$0xff]
        %v2807 = vld [vmem:[#allocation11 + $0xa0] sm:$0xff]
        %v2808 = vld [vmem:[#allocation11 + $0xa8] sm:$0xff]
        %v2809 = vld [vmem:[#allocation11 + $0xb0] sm:$0xff]
        %v2810 = vld [vmem:[#allocation11 + $0xb8] sm:$0xff]
        %v2811 = vld [vmem:[#allocation11 + $0xc0] sm:$0xff]
        %v2812 = vld [vmem:[#allocation11 + $0xc8] sm:$0xff]
        %v2813 = vld [vmem:[#allocation11 + $0xd0] sm:$0xff]
        %v2814 = vld [vmem:[#allocation11 + $0xd8] sm:$0xff]
        %v2815 = vld [vmem:[#allocation11 + $0xe0] sm:$0xff]
        %v2816 = vld [vmem:[#allocation11 + $0xe8] sm:$0xff]
        %v2817 = vld [vmem:[#allocation11 + $0xf0] sm:$0xff]
        %v2818 = vld [vmem:[#allocation11 + $0xf8] sm:$0xff]
        %v2819 = vld [vmem:[#allocation11 + $0x100] sm:$0xff]
        %v2820 = vld [vmem:[#allocation11 + $0x108] sm:$0xff]
        %v2821 = vld [vmem:[#allocation11 + $0x110] sm:$0xff]
        %v2822 = vld [vmem:[#allocation11 + $0x118] sm:$0xff]
        %v2823 = vld [vmem:[#allocation11 + $0x120] sm:$0xff]
        %v2824 = vld [vmem:[#allocation11 + $0x128] sm:$0xff]
        %v2825 = vld [vmem:[#allocation11 + $0x130] sm:$0xff]
        %v2826 = vld [vmem:[#allocation11 + $0x138] sm:$0xff]
        %v2827 = vld [vmem:[#allocation11 + $0x140] sm:$0xff]
        %v2828 = vld [vmem:[#allocation11 + $0x148] sm:$0xff]
        %v2829 = vld [vmem:[#allocation11 + $0x150] sm:$0xff]
        %v2830 = vld [vmem:[#allocation11 + $0x158] sm:$0xff]
        %v2831 = vld [vmem:[#allocation11 + $0x160] sm:$0xff]
        %v2832 = vld [vmem:[#allocation11 + $0x168] sm:$0xff]
        %v2833 = vld [vmem:[#allocation11 + $0x170] sm:$0xff]
        %v2834 = vld [vmem:[#allocation11 + $0x178] sm:$0xff]
        %v2835 = vld [vmem:[#allocation11 + $0x180] sm:$0xff]
        %v2836 = vld [vmem:[#allocation11 + $0x188] sm:$0xff]
        %v2837 = vld [vmem:[#allocation11 + $0x190] sm:$0xff]
        %v2838 = vld [vmem:[#allocation11 + $0x198] sm:$0xff]
        %v2839 = vld [vmem:[#allocation11 + $0x1a0] sm:$0xff]
        %v2840 = vld [vmem:[#allocation11 + $0x1a8] sm:$0xff]
        %v2841 = vld [vmem:[#allocation11 + $0x1b0] sm:$0xff]
        %v2842 = vld [vmem:[#allocation11 + $0x1b8] sm:$0xff]
        %v2843 = vld [vmem:[#allocation11 + $0x1c0] sm:$0xff]
        %v2844 = vld [vmem:[#allocation11 + $0x1c8] sm:$0xff]
        %v2845 = vld [vmem:[#allocation11 + $0x1d0] sm:$0xff]
        %v2846 = vld [vmem:[#allocation11 + $0x1d8] sm:$0xff]
        %v2847 = vld [vmem:[#allocation11 + $0x1e0] sm:$0xff]
        %v2848 = vld [vmem:[#allocation11 + $0x1e8] sm:$0xff]
        %v2849 = vld [vmem:[#allocation11 + $0x1f0] sm:$0xff]
        %v2850 = vld [vmem:[#allocation11 + $0x1f8] sm:$0xff]
        %v2851 = vld [vmem:[#allocation11 + $0x200] sm:$0xff]
        %v2852 = vld [vmem:[#allocation11 + $0x208] sm:$0xff]
        %v2853 = vld [vmem:[#allocation11 + $0x210] sm:$0xff]
        %v2854 = vld [vmem:[#allocation11 + $0x218] sm:$0xff]
        %v2855 = vld [vmem:[#allocation11 + $0x220] sm:$0xff]
        %v2856 = vld [vmem:[#allocation11 + $0x228] sm:$0xff]
        %v2857 = vld [vmem:[#allocation11 + $0x230] sm:$0xff]
        %v2858 = vld [vmem:[#allocation11 + $0x238] sm:$0xff]
        %v2859 = vld [vmem:[#allocation11 + $0x240] sm:$0xff]
        %v2860 = vld [vmem:[#allocation11 + $0x248] sm:$0xff]
        %v2861 = vld [vmem:[#allocation11 + $0x250] sm:$0xff]
        %v2862 = vld [vmem:[#allocation11 + $0x258] sm:$0xff]
        %v2863 = vld [vmem:[#allocation11 + $0x260] sm:$0xff]
        %v2864 = vld [vmem:[#allocation11 + $0x268] sm:$0xff]
        %v2865 = vld [vmem:[#allocation11 + $0x270] sm:$0xff]
        %v2866 = vld [vmem:[#allocation11 + $0x278] sm:$0xff]
        %v2867 = vld [vmem:[#allocation11 + $0x280] sm:$0xff]
        %v2868 = vld [vmem:[#allocation11 + $0x288] sm:$0xff]
        %v2869 = vld [vmem:[#allocation11 + $0x290] sm:$0xff]
        %v2870 = vld [vmem:[#allocation11 + $0x298] sm:$0xff]
        %v2871 = vld [vmem:[#allocation11 + $0x2a0] sm:$0xff]
        %v2872 = vld [vmem:[#allocation11 + $0x2a8] sm:$0xff]
        %v2873 = vld [vmem:[#allocation11 + $0x2b0] sm:$0xff]
        %v2874 = vld [vmem:[#allocation11 + $0x2b8] sm:$0xff]
        %v2875 = vld [vmem:[#allocation11 + $0x2c0] sm:$0xff]
        %v2876 = vld [vmem:[#allocation11 + $0x2c8] sm:$0xff]
        %v2877 = vld [vmem:[#allocation11 + $0x2d0] sm:$0xff]
        %v2878 = vld [vmem:[#allocation11 + $0x2d8] sm:$0xff]
        %v2879 = vld [vmem:[#allocation11 + $0x2e0] sm:$0xff]
        %v2880 = vld [vmem:[#allocation11 + $0x2e8] sm:$0xff]
        %v2881 = vld [vmem:[#allocation11 + $0x2f0] sm:$0xff]
        %v2882 = vld [vmem:[#allocation11 + $0x2f8] sm:$0xff]
        %v2883 = vld [vmem:[#allocation11 + $0x300] sm:$0xff]
        %v2884 = vld [vmem:[#allocation11 + $0x308] sm:$0xff]
        %v2885 = vld [vmem:[#allocation11 + $0x310] sm:$0xff]
        %v2886 = vld [vmem:[#allocation11 + $0x318] sm:$0xff]
        %v2887 = vld [vmem:[#allocation11 + $0x320] sm:$0xff]
        %v2888 = vld [vmem:[#allocation11 + $0x328] sm:$0xff]
        %v2889 = vld [vmem:[#allocation11 + $0x330] sm:$0xff]
        %v2890 = vld [vmem:[#allocation11 + $0x338] sm:$0xff]
        %v2891 = vld [vmem:[#allocation11 + $0x340] sm:$0xff]
        %v2892 = vld [vmem:[#allocation11 + $0x348] sm:$0xff]
        %v2893 = vld [vmem:[#allocation11 + $0x350] sm:$0xff]
        %v2894 = vld [vmem:[#allocation11 + $0x358] sm:$0xff]
        %v2895 = vld [vmem:[#allocation11 + $0x360] sm:$0xff]
        %v2896 = vld [vmem:[#allocation11 + $0x368] sm:$0xff]
        %v2897 = vld [vmem:[#allocation11 + $0x370] sm:$0xff]
        %v2898 = vld [vmem:[#allocation11 + $0x378] sm:$0xff]
        %v2899 = vld [vmem:[#allocation11 + $0x380] sm:$0xff]
        %v2900 = vld [vmem:[#allocation11 + $0x388] sm:$0xff]
        %v2901 = vld [vmem:[#allocation11 + $0x390] sm:$0xff]
        %v2902 = vld [vmem:[#allocation11 + $0x398] sm:$0xff]
        %v2903 = vld [vmem:[#allocation11 + $0x3a0] sm:$0xff]
        %v2904 = vld [vmem:[#allocation11 + $0x3a8] sm:$0xff]
        %v2905 = vld [vmem:[#allocation11 + $0x3b0] sm:$0xff]
        %v2906 = vld [vmem:[#allocation11 + $0x3b8] sm:$0xff]
        %v2907 = vld [vmem:[#allocation11 + $0x3c0] sm:$0xff]
        %v2908 = vld [vmem:[#allocation11 + $0x3c8] sm:$0xff]
        %v2909 = vld [vmem:[#allocation11 + $0x3d0] sm:$0xff]
        %v2910 = vld [vmem:[#allocation11 + $0x3d8] sm:$0xff]
        %v2911 = vld [vmem:[#allocation11 + $0x3e0] sm:$0xff]
        %v2912 = vld [vmem:[#allocation11 + $0x3e8] sm:$0xff]
        %v2913 = vld [vmem:[#allocation11 + $0x3f0] sm:$0xff]
        %v2914 = vld [vmem:[#allocation11 + $0x3f8] sm:$0xff]
        %v2915 = vld [vmem:[#allocation11 + $0x400] sm:$0xff]
        %v2916 = vld [vmem:[#allocation11 + $0x408] sm:$0xff]
        %v2917 = vld [vmem:[#allocation11 + $0x410] sm:$0xff]
        %v2918 = vld [vmem:[#allocation11 + $0x418] sm:$0xff]
        %v2919 = vld [vmem:[#allocation11 + $0x420] sm:$0xff]
        %v2920 = vld [vmem:[#allocation11 + $0x428] sm:$0xff]
        %v2921 = vld [vmem:[#allocation11 + $0x430] sm:$0xff]
        %v2922 = vld [vmem:[#allocation11 + $0x438] sm:$0xff]
        %v2923 = vld [vmem:[#allocation11 + $0x440] sm:$0xff]
        %v2924 = vld [vmem:[#allocation11 + $0x448] sm:$0xff]
        %v2925 = vld [vmem:[#allocation11 + $0x450] sm:$0xff]
        %v2926 = vld [vmem:[#allocation11 + $0x458] sm:$0xff]
        %v2927 = vld [vmem:[#allocation11 + $0x460] sm:$0xff]
        %v2928 = vld [vmem:[#allocation11 + $0x468] sm:$0xff]
        %v2929 = vld [vmem:[#allocation11 + $0x470] sm:$0xff]
        %v2930 = vld [vmem:[#allocation11 + $0x478] sm:$0xff]
        %v2931 = vld [vmem:[#allocation11 + $0x480] sm:$0xff]
        %v2932 = vld [vmem:[#allocation11 + $0x488] sm:$0xff]
        %v2933 = vld [vmem:[#allocation11 + $0x490] sm:$0xff]
        %v2934 = vld [vmem:[#allocation11 + $0x498] sm:$0xff]
        %v2935 = vld [vmem:[#allocation11 + $0x4a0] sm:$0xff]
        %v2936 = vld [vmem:[#allocation11 + $0x4a8] sm:$0xff]
        %v2937 = vld [vmem:[#allocation11 + $0x4b0] sm:$0xff]
        %v2938 = vld [vmem:[#allocation11 + $0x4b8] sm:$0xff]
        %v2939 = vld [vmem:[#allocation11 + $0x4c0] sm:$0xff]
        %v2940 = vld [vmem:[#allocation11 + $0x4c8] sm:$0xff]
        %v2941 = vld [vmem:[#allocation11 + $0x4d0] sm:$0xff]
        %v2942 = vld [vmem:[#allocation11 + $0x4d8] sm:$0xff]
        %v2943 = vld [vmem:[#allocation11 + $0x4e0] sm:$0xff]
        %v2944 = vld [vmem:[#allocation11 + $0x4e8] sm:$0xff]
        %v2945 = vld [vmem:[#allocation11 + $0x4f0] sm:$0xff]
        %v2946 = vld [vmem:[#allocation11 + $0x4f8] sm:$0xff]
        %v2947 = vld [vmem:[#allocation11 + $0x500] sm:$0xff]
        %v2948 = vld [vmem:[#allocation11 + $0x508] sm:$0xff]
        %v2949 = vld [vmem:[#allocation11 + $0x510] sm:$0xff]
        %v2950 = vld [vmem:[#allocation11 + $0x518] sm:$0xff]
        %v2951 = vld [vmem:[#allocation11 + $0x520] sm:$0xff]
        %v2952 = vld [vmem:[#allocation11 + $0x528] sm:$0xff]
        %v2953 = vld [vmem:[#allocation11 + $0x530] sm:$0xff]
        %v2954 = vld [vmem:[#allocation11 + $0x538] sm:$0xff]
        %v2955 = vld [vmem:[#allocation11 + $0x540] sm:$0xff]
        %v2956 = vld [vmem:[#allocation11 + $0x548] sm:$0xff]
        %v2957 = vld [vmem:[#allocation11 + $0x550] sm:$0xff]
        %v2958 = vld [vmem:[#allocation11 + $0x558] sm:$0xff]
        %v2959 = vld [vmem:[#allocation11 + $0x560] sm:$0xff]
        %v2960 = vld [vmem:[#allocation11 + $0x568] sm:$0xff]
        %v2961 = vld [vmem:[#allocation11 + $0x570] sm:$0xff]
        %v2962 = vld [vmem:[#allocation11 + $0x578] sm:$0xff]
        %v2963 = vld [vmem:[#allocation11 + $0x580] sm:$0xff]
        %v2964 = vld [vmem:[#allocation11 + $0x588] sm:$0xff]
        %v2965 = vld [vmem:[#allocation11 + $0x590] sm:$0xff]
        %v2966 = vld [vmem:[#allocation11 + $0x598] sm:$0xff]
        %v2967 = vld [vmem:[#allocation11 + $0x5a0] sm:$0xff]
        %v2968 = vld [vmem:[#allocation11 + $0x5a8] sm:$0xff]
        %v2969 = vld [vmem:[#allocation11 + $0x5b0] sm:$0xff]
        %v2970 = vld [vmem:[#allocation11 + $0x5b8] sm:$0xff]
        %v2971 = vld [vmem:[#allocation11 + $0x5c0] sm:$0xff]
        %v2972 = vld [vmem:[#allocation11 + $0x5c8] sm:$0xff]
        %v2973 = vld [vmem:[#allocation11 + $0x5d0] sm:$0xff]
        %v2974 = vld [vmem:[#allocation11 + $0x5d8] sm:$0xff]
        %v2975 = vld [vmem:[#allocation11 + $0x5e0] sm:$0xff]
        %v2976 = vld [vmem:[#allocation11 + $0x5e8] sm:$0xff]
        %v2977 = vld [vmem:[#allocation11 + $0x5f0] sm:$0xff]
        %v2978 = vld [vmem:[#allocation11 + $0x5f8] sm:$0xff]
        %v2979 = vld [vmem:[#allocation11 + $0x600] sm:$0xff]
        %v2980 = vld [vmem:[#allocation11 + $0x608] sm:$0xff]
        %v2981 = vld [vmem:[#allocation11 + $0x610] sm:$0xff]
        %v2982 = vld [vmem:[#allocation11 + $0x618] sm:$0xff]
        %v2983 = vld [vmem:[#allocation11 + $0x620] sm:$0xff]
        %v2984 = vld [vmem:[#allocation11 + $0x628] sm:$0xff]
        %v2985 = vld [vmem:[#allocation11 + $0x630] sm:$0xff]
        %v2986 = vld [vmem:[#allocation11 + $0x638] sm:$0xff]
        %v2987 = vld [vmem:[#allocation11 + $0x640] sm:$0xff]
        %v2988 = vld [vmem:[#allocation11 + $0x648] sm:$0xff]
        %v2989 = vld [vmem:[#allocation11 + $0x650] sm:$0xff]
        %v2990 = vld [vmem:[#allocation11 + $0x658] sm:$0xff]
        %v2991 = vld [vmem:[#allocation11 + $0x660] sm:$0xff]
        %v2992 = vld [vmem:[#allocation11 + $0x668] sm:$0xff]
        %v2993 = vld [vmem:[#allocation11 + $0x670] sm:$0xff]
        %v2994 = vld [vmem:[#allocation11 + $0x678] sm:$0xff]
        %v2995 = vld [vmem:[#allocation11 + $0x680] sm:$0xff]
        %v2996 = vld [vmem:[#allocation11 + $0x688] sm:$0xff]
        %v2997 = vld [vmem:[#allocation11 + $0x690] sm:$0xff]
        %v2998 = vld [vmem:[#allocation11 + $0x698] sm:$0xff]
        %v2999 = vld [vmem:[#allocation11 + $0x6a0] sm:$0xff]
        %v3000 = vld [vmem:[#allocation11 + $0x6a8] sm:$0xff]
        %v3001 = vld [vmem:[#allocation11 + $0x6b0] sm:$0xff]
        %v3002 = vld [vmem:[#allocation11 + $0x6b8] sm:$0xff]
        %v3003 = vld [vmem:[#allocation11 + $0x6c0] sm:$0xff]
        %v3004 = vld [vmem:[#allocation11 + $0x6c8] sm:$0xff]
        %v3005 = vld [vmem:[#allocation11 + $0x6d0] sm:$0xff]
        %v3006 = vld [vmem:[#allocation11 + $0x6d8] sm:$0xff]
        %v3007 = vld [vmem:[#allocation11 + $0x6e0] sm:$0xff]
        %v3008 = vld [vmem:[#allocation11 + $0x6e8] sm:$0xff]
        %v3009 = vld [vmem:[#allocation11 + $0x6f0] sm:$0xff]
        %v3010 = vld [vmem:[#allocation11 + $0x6f8] sm:$0xff]
        %v3011 = vld [vmem:[#allocation11 + $0x700] sm:$0xff]
        %v3012 = vld [vmem:[#allocation11 + $0x708] sm:$0xff]
        %v3013 = vld [vmem:[#allocation11 + $0x710] sm:$0xff]
        %v3014 = vld [vmem:[#allocation11 + $0x718] sm:$0xff]
        %v3015 = vld [vmem:[#allocation11 + $0x720] sm:$0xff]
        %v3016 = vld [vmem:[#allocation11 + $0x728] sm:$0xff]
        %v3017 = vld [vmem:[#allocation11 + $0x730] sm:$0xff]
        %v3018 = vld [vmem:[#allocation11 + $0x738] sm:$0xff]
        %v3019 = vld [vmem:[#allocation11 + $0x740] sm:$0xff]
        %v3020 = vld [vmem:[#allocation11 + $0x748] sm:$0xff]
        %v3021 = vld [vmem:[#allocation11 + $0x750] sm:$0xff]
        %v3022 = vld [vmem:[#allocation11 + $0x758] sm:$0xff]
        %v3023 = vld [vmem:[#allocation11 + $0x760] sm:$0xff]
        %v3024 = vld [vmem:[#allocation11 + $0x768] sm:$0xff]
        %v3025 = vld [vmem:[#allocation11 + $0x770] sm:$0xff]
        %v3026 = vld [vmem:[#allocation11 + $0x778] sm:$0xff]
        %v3027 = vld [vmem:[#allocation11 + $0x780] sm:$0xff]
        %v3028 = vld [vmem:[#allocation11 + $0x788] sm:$0xff]
        %v3029 = vld [vmem:[#allocation11 + $0x790] sm:$0xff]
        %v3030 = vld [vmem:[#allocation11 + $0x798] sm:$0xff]
        %v3031 = vld [vmem:[#allocation11 + $0x7a0] sm:$0xff]
        %v3032 = vld [vmem:[#allocation11 + $0x7a8] sm:$0xff]
        %v3033 = vld [vmem:[#allocation11 + $0x7b0] sm:$0xff]
        %v3034 = vld [vmem:[#allocation11 + $0x7b8] sm:$0xff]
        %v3035 = vld [vmem:[#allocation11 + $0x7c0] sm:$0xff]
        %v3036 = vld [vmem:[#allocation11 + $0x7c8] sm:$0xff]
        %v3037 = vld [vmem:[#allocation11 + $0x7d0] sm:$0xff]
        %v3038 = vld [vmem:[#allocation11 + $0x7d8] sm:$0xff]
        %v3039 = vld [vmem:[#allocation11 + $0x7e0] sm:$0xff]
        %v3040 = vld [vmem:[#allocation11 + $0x7e8] sm:$0xff]
        %v3041 = vld [vmem:[#allocation11 + $0x7f0] sm:$0xff]
        %v3042 = vld [vmem:[#allocation11 + $0x7f8] sm:$0xff]
        %v3043 = vld [vmem:[%s7] sm:$0xff]
        %v3045 = vlaneseq
        %v3046 = vshrl.u32 %v3045, 7
        %v3047 = vsub.s32 0, %v3046
        %v3048 = vrot.slane %v3043, %v3047
        %v3049 = vlaneseq
        %v3050 = vshrl.u32 %v3049, 7
        %v3051 = vsub.s32 1, %v3050
        %v3052 = vrot.slane %v3043, %v3051
        %v3053 = vlaneseq
        %v3054 = vshrl.u32 %v3053, 7
        %v3055 = vsub.s32 2, %v3054
        %v3056 = vrot.slane %v3043, %v3055
        %v3057 = vlaneseq
        %v3058 = vshrl.u32 %v3057, 7
        %v3059 = vsub.s32 3, %v3058
        %v3060 = vrot.slane %v3043, %v3059
        %v3061 = vlaneseq
        %v3062 = vshrl.u32 %v3061, 7
        %v3063 = vsub.s32 4, %v3062
        %v3064 = vrot.slane %v3043, %v3063
        %v3065 = vlaneseq
        %v3066 = vshrl.u32 %v3065, 7
        %v3067 = vsub.s32 5, %v3066
        %v3068 = vrot.slane %v3043, %v3067
        %v3069 = vlaneseq
        %v3070 = vshrl.u32 %v3069, 7
        %v3071 = vsub.s32 6, %v3070
        %v3072 = vrot.slane %v3043, %v3071
        %v3073 = vlaneseq
        %v3074 = vshrl.u32 %v3073, 7
        %v3075 = vsub.s32 7, %v3074
        %v3076 = vrot.slane %v3043, %v3075
        %3085 = vmatprep.subr.mxu0 %v2908
        %3086 = vmatpush1.msra.mxu0 %v2907
        %3087 = vmatprep.subr.mxu0 %v2900
        %3088 = vmatpush1.msra.mxu0 %v2899
        %3089 = vmatprep.subr.mxu0 %v2892
        %3090 = vmatpush1.msra.mxu0 %v2891
        %3091 = vmatprep.subr.mxu0 %v2884
        %3092 = vmatpush1.msra.mxu0 %v2883
        %3093 = vmatprep.subr.mxu0 %v2876
        %3094 = vmatpush1.msra.mxu0 %v2875
        %3095 = vmatprep.subr.mxu0 %v2868
        %3096 = vmatpush1.msra.mxu0 %v2867
        %3097 = vmatprep.subr.mxu0 %v2860
        %3098 = vmatpush1.msra.mxu0 %v2859
        %3099 = vmatprep.subr.mxu0 %v2852
        %3100 = vmatpush1.msra.mxu0 %v2851
        %3101 = vmatprep.subr.mxu0 %v2844
        %3102 = vmatpush1.msra.mxu0 %v2843
        %3103 = vmatprep.subr.mxu0 %v2836
        %3104 = vmatpush1.msra.mxu0 %v2835
        %3105 = vmatprep.subr.mxu0 %v2828
        %3106 = vmatpush1.msra.mxu0 %v2827
        %3107 = vmatprep.subr.mxu0 %v2820
        %3108 = vmatpush1.msra.mxu0 %v2819
        %3109 = vmatprep.subr.mxu0 %v2812
        %3110 = vmatpush1.msra.mxu0 %v2811
        %3111 = vmatprep.subr.mxu0 %v2804
        %3112 = vmatpush1.msra.mxu0 %v2803
        %3113 = vmatprep.subr.mxu0 %v2796
        %3114 = vmatpush1.msra.mxu0 %v2795
        %3115 = vmatprep.subr.mxu0 %v2788
        %3116 = vmatpush1.msra.mxu0 %v2787
        %3117 = vmatprep.subr.mxu0 %v3036
        %3118 = vmatpush2.msra.mxu0 %v3035
        %3119 = vmatprep.subr.mxu0 %v3028
        %3120 = vmatpush2.msra.mxu0 %v3027
        %3121 = vmatprep.subr.mxu0 %v3020
        %3122 = vmatpush2.msra.mxu0 %v3019
        %3123 = vmatprep.subr.mxu0 %v3012
        %3124 = vmatpush2.msra.mxu0 %v3011
        %3125 = vmatprep.subr.mxu0 %v3004
        %3126 = vmatpush2.msra.mxu0 %v3003
        %3127 = vmatprep.subr.mxu0 %v2996
        %3128 = vmatpush2.msra.mxu0 %v2995
        %3129 = vmatprep.subr.mxu0 %v2988
        %3130 = vmatpush2.msra.mxu0 %v2987
        %3131 = vmatprep.subr.mxu0 %v2980
        %3132 = vmatpush2.msra.mxu0 %v2979
        %3133 = vmatprep.subr.mxu0 %v2972
        %3134 = vmatpush2.msra.mxu0 %v2971
        %3135 = vmatprep.subr.mxu0 %v2964
        %3136 = vmatpush2.msra.mxu0 %v2963
        %3137 = vmatprep.subr.mxu0 %v2956
        %3138 = vmatpush2.msra.mxu0 %v2955
        %3139 = vmatprep.subr.mxu0 %v2948
        %3140 = vmatpush2.msra.mxu0 %v2947
        %3141 = vmatprep.subr.mxu0 %v2940
        %3142 = vmatpush2.msra.mxu0 %v2939
        %3143 = vmatprep.subr.mxu0 %v2932
        %3144 = vmatpush2.msra.mxu0 %v2931
        %3145 = vmatprep.subr.mxu0 %v2924
        %3146 = vmatpush2.msra.mxu0 %v2923
        %3147 = vmatprep.subr.mxu0 %v2916
        %3148 = vmatpush2.msra.mxu0 %v2915
        %3149 = vmatprep.mubr.f32.mxu0 %v2784
        %3150 = vmatmul.mubr.f32.gmra.mxu0 %v2783
        %v3151 = vpop.f32.mrf.mxu0
        %v3152 = vadd.f32 %v3048, %v3151
        %v3153 = vpop.f32.mrf.mxu0
        %v3154 = vadd.f32 %v3052, %v3153
        %3155 = vmatprep.mubr.f32.mxu0 %v2786
        %3156 = vmatmul.mubr.f32.gmra.mxu0 %v2785
        %v3157 = vpop.f32.mrf.mxu0
        %v3158 = vadd.f32 %v3048, %v3157
        %v3159 = vpop.f32.mrf.mxu0
        %v3160 = vadd.f32 %v3052, %v3159
        %3161 = vdwg.mxu0
        %3162 = vmatprep.subr.mxu0 %v2910
        %3163 = vmatpush1.msra.mxu0 %v2909
        %3164 = vmatprep.subr.mxu0 %v2902
        %3165 = vmatpush1.msra.mxu0 %v2901
        %3166 = vmatprep.subr.mxu0 %v2894
        %3167 = vmatpush1.msra.mxu0 %v2893
        %3168 = vmatprep.subr.mxu0 %v2886
        %3169 = vmatpush1.msra.mxu0 %v2885
        %3170 = vmatprep.subr.mxu0 %v2878
        %3171 = vmatpush1.msra.mxu0 %v2877
        %3172 = vmatprep.subr.mxu0 %v2870
        %3173 = vmatpush1.msra.mxu0 %v2869
        %3174 = vmatprep.subr.mxu0 %v2862
        %3175 = vmatpush1.msra.mxu0 %v2861
        %3176 = vmatprep.subr.mxu0 %v2854
        %3177 = vmatpush1.msra.mxu0 %v2853
        %3178 = vmatprep.subr.mxu0 %v2846
        %3179 = vmatpush1.msra.mxu0 %v2845
        %3180 = vmatprep.subr.mxu0 %v2838
        %3181 = vmatpush1.msra.mxu0 %v2837
        %3182 = vmatprep.subr.mxu0 %v2830
        %3183 = vmatpush1.msra.mxu0 %v2829
        %3184 = vmatprep.subr.mxu0 %v2822
        %3185 = vmatpush1.msra.mxu0 %v2821
        %3186 = vmatprep.subr.mxu0 %v2814
        %3187 = vmatpush1.msra.mxu0 %v2813
        %3188 = vmatprep.subr.mxu0 %v2806
        %3189 = vmatpush1.msra.mxu0 %v2805
        %3190 = vmatprep.subr.mxu0 %v2798
        %3191 = vmatpush1.msra.mxu0 %v2797
        %3192 = vmatprep.subr.mxu0 %v2790
        %3193 = vmatpush1.msra.mxu0 %v2789
        %3194 = vmatprep.subr.mxu0 %v3038
        %3195 = vmatpush2.msra.mxu0 %v3037
        %3196 = vmatprep.subr.mxu0 %v3030
        %3197 = vmatpush2.msra.mxu0 %v3029
        %3198 = vmatprep.subr.mxu0 %v3022
        %3199 = vmatpush2.msra.mxu0 %v3021
        %3200 = vmatprep.subr.mxu0 %v3014
        %3201 = vmatpush2.msra.mxu0 %v3013
        %3202 = vmatprep.subr.mxu0 %v3006
        %3203 = vmatpush2.msra.mxu0 %v3005
        %3204 = vmatprep.subr.mxu0 %v2998
        %3205 = vmatpush2.msra.mxu0 %v2997
        %3206 = vmatprep.subr.mxu0 %v2990
        %3207 = vmatpush2.msra.mxu0 %v2989
        %3208 = vmatprep.subr.mxu0 %v2982
        %3209 = vmatpush2.msra.mxu0 %v2981
        %3210 = vmatprep.subr.mxu0 %v2974
        %3211 = vmatpush2.msra.mxu0 %v2973
        %3212 = vmatprep.subr.mxu0 %v2966
        %3213 = vmatpush2.msra.mxu0 %v2965
        %3214 = vmatprep.subr.mxu0 %v2958
        %3215 = vmatpush2.msra.mxu0 %v2957
        %3216 = vmatprep.subr.mxu0 %v2950
        %3217 = vmatpush2.msra.mxu0 %v2949
        %3218 = vmatprep.subr.mxu0 %v2942
        %3219 = vmatpush2.msra.mxu0 %v2941
        %3220 = vmatprep.subr.mxu0 %v2934
        %3221 = vmatpush2.msra.mxu0 %v2933
        %3222 = vmatprep.subr.mxu0 %v2926
        %3223 = vmatpush2.msra.mxu0 %v2925
        %3224 = vmatprep.subr.mxu0 %v2918
        %3225 = vmatpush2.msra.mxu0 %v2917
        %3226 = vmatprep.mubr.f32.mxu0 %v2784
        %3227 = vmatmul.mubr.f32.gmra.mxu0 %v2783
        %v3228 = vpop.f32.mrf.mxu0
        %v3229 = vadd.f32 %v3056, %v3228
        %v3230 = vpop.f32.mrf.mxu0
        %v3231 = vadd.f32 %v3060, %v3230
        %3232 = vmatprep.mubr.f32.mxu0 %v2786
        %3233 = vmatmul.mubr.f32.gmra.mxu0 %v2785
        %v3234 = vpop.f32.mrf.mxu0
        %v3235 = vadd.f32 %v3056, %v3234
        %v3236 = vpop.f32.mrf.mxu0
        %v3237 = vadd.f32 %v3060, %v3236
        %3238 = vdwg.mxu0
        %3239 = vmatprep.subr.mxu0 %v2912
        %3240 = vmatpush1.msra.mxu0 %v2911
        %3241 = vmatprep.subr.mxu0 %v2904
        %3242 = vmatpush1.msra.mxu0 %v2903
        %3243 = vmatprep.subr.mxu0 %v2896
        %3244 = vmatpush1.msra.mxu0 %v2895
        %3245 = vmatprep.subr.mxu0 %v2888
        %3246 = vmatpush1.msra.mxu0 %v2887
        %3247 = vmatprep.subr.mxu0 %v2880
        %3248 = vmatpush1.msra.mxu0 %v2879
        %3249 = vmatprep.subr.mxu0 %v2872
        %3250 = vmatpush1.msra.mxu0 %v2871
        %3251 = vmatprep.subr.mxu0 %v2864
        %3252 = vmatpush1.msra.mxu0 %v2863
        %3253 = vmatprep.subr.mxu0 %v2856
        %3254 = vmatpush1.msra.mxu0 %v2855
        %3255 = vmatprep.subr.mxu0 %v2848
        %3256 = vmatpush1.msra.mxu0 %v2847
        %3257 = vmatprep.subr.mxu0 %v2840
        %3258 = vmatpush1.msra.mxu0 %v2839
        %3259 = vmatprep.subr.mxu0 %v2832
        %3260 = vmatpush1.msra.mxu0 %v2831
        %3261 = vmatprep.subr.mxu0 %v2824
        %3262 = vmatpush1.msra.mxu0 %v2823
        %3263 = vmatprep.subr.mxu0 %v2816
        %3264 = vmatpush1.msra.mxu0 %v2815
        %3265 = vmatprep.subr.mxu0 %v2808
        %3266 = vmatpush1.msra.mxu0 %v2807
        %3267 = vmatprep.subr.mxu0 %v2800
        %3268 = vmatpush1.msra.mxu0 %v2799
        %3269 = vmatprep.subr.mxu0 %v2792
        %3270 = vmatpush1.msra.mxu0 %v2791
        %3271 = vmatprep.subr.mxu0 %v3040
        %3272 = vmatpush2.msra.mxu0 %v3039
        %3273 = vmatprep.subr.mxu0 %v3032
        %3274 = vmatpush2.msra.mxu0 %v3031
        %3275 = vmatprep.subr.mxu0 %v3024
        %3276 = vmatpush2.msra.mxu0 %v3023
        %3277 = vmatprep.subr.mxu0 %v3016
        %3278 = vmatpush2.msra.mxu0 %v3015
        %3279 = vmatprep.subr.mxu0 %v3008
        %3280 = vmatpush2.msra.mxu0 %v3007
        %3281 = vmatprep.subr.mxu0 %v3000
        %3282 = vmatpush2.msra.mxu0 %v2999
        %3283 = vmatprep.subr.mxu0 %v2992
        %3284 = vmatpush2.msra.mxu0 %v2991
        %3285 = vmatprep.subr.mxu0 %v2984
        %3286 = vmatpush2.msra.mxu0 %v2983
        %3287 = vmatprep.subr.mxu0 %v2976
        %3288 = vmatpush2.msra.mxu0 %v2975
        %3289 = vmatprep.subr.mxu0 %v2968
        %3290 = vmatpush2.msra.mxu0 %v2967
        %3291 = vmatprep.subr.mxu0 %v2960
        %3292 = vmatpush2.msra.mxu0 %v2959
        %3293 = vmatprep.subr.mxu0 %v2952
        %3294 = vmatpush2.msra.mxu0 %v2951
        %3295 = vmatprep.subr.mxu0 %v2944
        %3296 = vmatpush2.msra.mxu0 %v2943
        %3297 = vmatprep.subr.mxu0 %v2936
        %3298 = vmatpush2.msra.mxu0 %v2935
        %3299 = vmatprep.subr.mxu0 %v2928
        %3300 = vmatpush2.msra.mxu0 %v2927
        %3301 = vmatprep.subr.mxu0 %v2920
        %3302 = vmatpush2.msra.mxu0 %v2919
        %3303 = vmatprep.mubr.f32.mxu0 %v2784
        %3304 = vmatmul.mubr.f32.gmra.mxu0 %v2783
        %v3305 = vpop.f32.mrf.mxu0
        %v3306 = vadd.f32 %v3064, %v3305
        %v3307 = vpop.f32.mrf.mxu0
        %v3308 = vadd.f32 %v3068, %v3307
        %3309 = vmatprep.mubr.f32.mxu0 %v2786
        %3310 = vmatmul.mubr.f32.gmra.mxu0 %v2785
        %v3311 = vpop.f32.mrf.mxu0
        %v3312 = vadd.f32 %v3064, %v3311
        %v3313 = vpop.f32.mrf.mxu0
        %v3314 = vadd.f32 %v3068, %v3313
        %3315 = vdwg.mxu0
        %3316 = vmatprep.subr.mxu0 %v2914
        %3317 = vmatpush1.msra.mxu0 %v2913
        %3318 = vmatprep.subr.mxu0 %v2906
        %3319 = vmatpush1.msra.mxu0 %v2905
        %3320 = vmatprep.subr.mxu0 %v2898
        %3321 = vmatpush1.msra.mxu0 %v2897
        %3322 = vmatprep.subr.mxu0 %v2890
        %3323 = vmatpush1.msra.mxu0 %v2889
        %3324 = vmatprep.subr.mxu0 %v2882
        %3325 = vmatpush1.msra.mxu0 %v2881
        %3326 = vmatprep.subr.mxu0 %v2874
        %3327 = vmatpush1.msra.mxu0 %v2873
        %3328 = vmatprep.subr.mxu0 %v2866
        %3329 = vmatpush1.msra.mxu0 %v2865
        %3330 = vmatprep.subr.mxu0 %v2858
        %3331 = vmatpush1.msra.mxu0 %v2857
        %3332 = vmatprep.subr.mxu0 %v2850
        %3333 = vmatpush1.msra.mxu0 %v2849
        %3334 = vmatprep.subr.mxu0 %v2842
        %3335 = vmatpush1.msra.mxu0 %v2841
        %3336 = vmatprep.subr.mxu0 %v2834
        %3337 = vmatpush1.msra.mxu0 %v2833
        %3338 = vmatprep.subr.mxu0 %v2826
        %3339 = vmatpush1.msra.mxu0 %v2825
        %3340 = vmatprep.subr.mxu0 %v2818
        %3341 = vmatpush1.msra.mxu0 %v2817
        %3342 = vmatprep.subr.mxu0 %v2810
        %3343 = vmatpush1.msra.mxu0 %v2809
        %3344 = vmatprep.subr.mxu0 %v2802
        %3345 = vmatpush1.msra.mxu0 %v2801
        %3346 = vmatprep.subr.mxu0 %v2794
        %3347 = vmatpush1.msra.mxu0 %v2793
        %3348 = vmatprep.subr.mxu0 %v3042
        %3349 = vmatpush2.msra.mxu0 %v3041
        %3350 = vmatprep.subr.mxu0 %v3034
        %3351 = vmatpush2.msra.mxu0 %v3033
        %3352 = vmatprep.subr.mxu0 %v3026
        %3353 = vmatpush2.msra.mxu0 %v3025
        %3354 = vmatprep.subr.mxu0 %v3018
        %3355 = vmatpush2.msra.mxu0 %v3017
        %3356 = vmatprep.subr.mxu0 %v3010
        %3357 = vmatpush2.msra.mxu0 %v3009
        %3358 = vmatprep.subr.mxu0 %v3002
        %3359 = vmatpush2.msra.mxu0 %v3001
        %3360 = vmatprep.subr.mxu0 %v2994
        %3361 = vmatpush2.msra.mxu0 %v2993
        %3362 = vmatprep.subr.mxu0 %v2986
        %3363 = vmatpush2.msra.mxu0 %v2985
        %3364 = vmatprep.subr.mxu0 %v2978
        %3365 = vmatpush2.msra.mxu0 %v2977
        %3366 = vmatprep.subr.mxu0 %v2970
        %3367 = vmatpush2.msra.mxu0 %v2969
        %3368 = vmatprep.subr.mxu0 %v2962
        %3369 = vmatpush2.msra.mxu0 %v2961
        %3370 = vmatprep.subr.mxu0 %v2954
        %3371 = vmatpush2.msra.mxu0 %v2953
        %3372 = vmatprep.subr.mxu0 %v2946
        %3373 = vmatpush2.msra.mxu0 %v2945
        %3374 = vmatprep.subr.mxu0 %v2938
        %3375 = vmatpush2.msra.mxu0 %v2937
        %3376 = vmatprep.subr.mxu0 %v2930
        %3377 = vmatpush2.msra.mxu0 %v2929
        %3378 = vmatprep.subr.mxu0 %v2922
        %3379 = vmatpush2.msra.mxu0 %v2921
        %3380 = vmatprep.mubr.f32.mxu0 %v2784
        %3381 = vmatmul.mubr.f32.gmra.mxu0 %v2783
        %v3382 = vpop.f32.mrf.mxu0
        %v3383 = vadd.f32 %v3072, %v3382
        %v3384 = vpop.f32.mrf.mxu0
        %v3385 = vadd.f32 %v3076, %v3384
        %3386 = vmatprep.mubr.f32.mxu0 %v2786
        %3387 = vmatmul.mubr.f32.gmra.mxu0 %v2785
        %v3388 = vpop.f32.mrf.mxu0
        %v3389 = vadd.f32 %v3072, %v3388
        %v3390 = vpop.f32.mrf.mxu0
        %v3391 = vadd.f32 %v3076, %v3390
        %3392 = vdwg.mxu0
        %v3393 = vmax.f32 %v3152, 0.0
        %v3394 = vmax.f32 %v3154, 0.0
        %v3395 = vmax.f32 %v3229, 0.0
        %v3396 = vmax.f32 %v3231, 0.0
        %v3397 = vmax.f32 %v3306, 0.0
        %v3398 = vmax.f32 %v3308, 0.0
        %v3399 = vmax.f32 %v3383, 0.0
        %v3400 = vmax.f32 %v3385, 0.0
        %v3401 = vmax.f32 %v3158, 0.0
        %v3402 = vmax.f32 %v3160, 0.0
        %v3403 = vmax.f32 %v3235, 0.0
        %v3404 = vmax.f32 %v3237, 0.0
        %v3405 = vmax.f32 %v3312, 0.0
        %v3406 = vmax.f32 %v3314, 0.0
        %v3407 = vmax.f32 %v3389, 0.0
        %v3408 = vmax.f32 %v3391, 0.0
        %v3409 = vadd.f32 %v402, %v3393
        %v3410 = vadd.f32 %v403, %v3394
        %v3411 = vadd.f32 %v404, %v3395
        %v3412 = vadd.f32 %v405, %v3396
        %v3413 = vadd.f32 %v406, %v3397
        %v3414 = vadd.f32 %v407, %v3398
        %v3415 = vadd.f32 %v408, %v3399
        %v3416 = vadd.f32 %v409, %v3400
        %v3417 = vadd.f32 %v410, %v3401
        %v3418 = vadd.f32 %v411, %v3402
        %v3419 = vadd.f32 %v412, %v3403
        %v3420 = vadd.f32 %v413, %v3404
        %v3421 = vadd.f32 %v414, %v3405
        %v3422 = vadd.f32 %v415, %v3406
        %v3423 = vadd.f32 %v416, %v3407
        %v3424 = vadd.f32 %v417, %v3408
        %v3425 = vmax.f32 %v3409, 0.0
        %v3426 = vmax.f32 %v3410, 0.0
        %v3427 = vmax.f32 %v3411, 0.0
        %v3428 = vmax.f32 %v3412, 0.0
        %v3429 = vmax.f32 %v3413, 0.0
        %v3430 = vmax.f32 %v3414, 0.0
        %v3431 = vmax.f32 %v3415, 0.0
        %v3432 = vmax.f32 %v3416, 0.0
        %v3433 = vmax.f32 %v3417, 0.0
        %v3434 = vmax.f32 %v3418, 0.0
        %v3435 = vmax.f32 %v3419, 0.0
        %v3436 = vmax.f32 %v3420, 0.0
        %v3437 = vmax.f32 %v3421, 0.0
        %v3438 = vmax.f32 %v3422, 0.0
        %v3439 = vmax.f32 %v3423, 0.0
        %v3440 = vmax.f32 %v3424, 0.0
        %3441 = vst [vmem:[%s360] sm:$0xff] %v3425
        %3442 = vst [vmem:[%s360 + $0x8] sm:$0xff] %v3426
        %3443 = vst [vmem:[%s360 + $0x10] sm:$0xff] %v3427
        %3444 = vst [vmem:[%s360 + $0x18] sm:$0xff] %v3428
        %3445 = vst [vmem:[%s360 + $0x20] sm:$0xff] %v3429
        %3446 = vst [vmem:[%s360 + $0x28] sm:$0xff] %v3430
        %3447 = vst [vmem:[%s360 + $0x30] sm:$0xff] %v3431
        %3448 = vst [vmem:[%s360 + $0x38] sm:$0xff] %v3432
        %3449 = vst [vmem:[%s360 + $0x40] sm:$0xff] %v3433
        %3450 = vst [vmem:[%s360 + $0x48] sm:$0xff] %v3434
        %3451 = vst [vmem:[%s360 + $0x50] sm:$0xff] %v3435
        %3452 = vst [vmem:[%s360 + $0x58] sm:$0xff] %v3436
        %3453 = vst [vmem:[%s360 + $0x60] sm:$0xff] %v3437
        %3454 = vst [vmem:[%s360 + $0x68] sm:$0xff] %v3438
        %3455 = vst [vmem:[%s360 + $0x70] sm:$0xff] %v3439
        %3456 = vst [vmem:[%s360 + $0x78] sm:$0xff] %v3440
        %s3457 = sand.u32 %s203, 1
        %s3458 = scalar_lea.sflag [#allocation7], %s3457
        %s3459 = sand.u32 %s203, 1
        %s3460 = smul.addr %s3459, 128
        %s3461 = scalar_lea.vmem [#allocation13], %s3460
        // Predicated region
        $region89: #{tpu_custom_call.1} parent=47 // pred_check
          %p3462 = pneg %p213
        $region90: #{tpu_custom_call.1} parent=47 // pred_check_branch
          %3464 = sbr.rel (%p3462) target = $region92
        $region91: #{tpu_custom_call.1} parent=47 // pred_region
          %s3465 = smul.u32 2, %s32
          %s3467 = ssub.s32 2048, 2048
          %3468 = vsyncadd %s3458, %s3467
          %s3469 = smul.addr %s3465, 8
          %s3470 = smul.addr %s31, 16
          %s3471 = sadd.s32 %s3469, %s3470
          %s3472 = smul.addr %s3471, 128
          %s3473 = scalar_lea.hbm %s8, %s3472
          %s3474 = sshll.u32 %s3461, 4
          %s3475 = int_to_ptr.vmem [resolvable:$true] %s3474
          %3480 = dma.vmem_to_hbm [thread:$0]  %s3475, 2048, %s3473, %s3458, 1024, 1024, 64
        $region92: #{tpu_custom_call.1} parent=47 // pred_fallthru
          _
      $region48: #{tpu_custom_call.1} parent=5 // pred_fallthru
        _
      %p3481 = scmp.le.s32.totalorder 2, %s22
      // Predicated region
      $region93: #{tpu_custom_call.1} parent=5 // pred_check
        %p3482 = pneg %p3481
      $region94: #{tpu_custom_call.1} parent=5 // pred_check_branch
        %3484 = sbr.rel (%p3482) target = $region96
      $region95: #{tpu_custom_call.1} parent=5 // pred_region
        %s3485 = ssub.s32 %s22, 2
        // Predicated region
        $region97: #{tpu_custom_call.1} parent=95 // pred_check
          %p3486 = pneg %p219
        $region98: #{tpu_custom_call.1} parent=95 // pred_check_branch
          %3488 = sbr.rel (%p3486) target = $region100
        $region99: #{tpu_custom_call.1} parent=95 // pred_region
          %s3489 = sand.u32 %s204, 1
          %s3490 = scalar_lea.sflag [#allocation7], %s3489
          %s3491 = sand.u32 %s204, 1
          %s3492 = smul.addr %s3491, 128
          %s3493 = scalar_lea.vmem [#allocation13], %s3492
          %3494 = dma.done %s3490, 2048
        $region100: #{tpu_custom_call.1} parent=95 // pred_fallthru
          _
      $region96: #{tpu_custom_call.1} parent=5 // pred_fallthru
        _
    $region6: #{tpu_custom_call.1} parent=1 // loop_footer
      %s26 = sadd.s32 1, %s22
    $region7: #{tpu_custom_call.1} parent=1 // loop_footer_branch
      %21 = sbr.rel target = $region3
    $region8: #{tpu_custom_call.1} parent=1 // loop_exit
      _
    %3495 = vsyncpa [#allocation6], 1
    %s3496 = scalar_lea.sflag [#allocation6], 1
    %3497 = vsyncpa %s3496, 1
    %3498 = vsyncpa [#allocation9], 1
    %3499 = vsyncpa [#allocation12], 1
    %3500 = vsyncpa [#allocation7], 1
    %s3501 = scalar_lea.sflag [#allocation7], 1
    %3502 = vsyncpa %s3501, 1
  %3503 = vsyncmov [#allocation4]
  %s3504 = vpop.sfrf %3503
  %p3505 = scmp.eq.s32.totalorder %s3504, 0
  %p3506 = pneg %p3505
  %3508 = shalt.err (%p3506)
  %s3509 = scalar_lea.sflag [#allocation4], 1
  %3510 = vsyncmov %s3509
  %s3511 = vpop.sfrf %3510
  %p3512 = scmp.eq.s32.totalorder %s3511, 0
  %p3513 = pneg %p3512
  %3515 = shalt.err (%p3513)

</llo_original>
